<compile_context>
chip_gen: v6e
topology: v6e:2x2x1
jax: 0.10.0
libtpu: 0.0.40
codegen_flags: <defaults>
</compile_context>

<pallas_src>
import jax
import jax.numpy as jnp
from jax import lax
from jax.experimental import pallas as pl
from jax.experimental.pallas import tpu as pltpu


_LANE = 128          # lane width: fc output padded to this for unmasked stores
_K = 3               # conv kernel size (pad = 1)


# ----------------------------------------------------------------------------
# Forward kernel: per-sample conv (9 shifted matmuls) + bias + ReLU +
# global mean pool (sublane reduction) + fc, all on-chip.
# ----------------------------------------------------------------------------
def _forward_kernel(x_ref, wc_ref, bc_ref, wf_ref, bf_ref, out_ref):
    # x_ref: (1, Hp, Wp, Cin) padded NHWC tile for one sample
    _, hp, wp, cin = x_ref.shape
    h, w = hp - (_K - 1), wp - (_K - 1)
    cout = wc_ref.shape[-1]

    xv = x_ref[0]                                   # (Hp, Wp, Cin), loaded once

    # conv as 9 shifted (H*W, Cin) @ (Cin, Cout) accumulating MXU matmuls
    acc = jnp.zeros((h * w, cout), jnp.float32)
    for kh in range(_K):
        for kw in range(_K):
            patch = xv[kh:kh + h, kw:kw + w, :].reshape(h * w, cin)
            acc = acc + jnp.dot(patch, wc_ref[kh * _K + kw],
                                preferred_element_type=jnp.float32)

    act = jnp.maximum(acc + bc_ref[...], 0.0)       # bias + ReLU (VPU)

    # global average pool: sublane-sum reduction (XLU), no dense pool matrix
    pooled = jnp.sum(act, axis=0, keepdims=True) * (1.0 / (h * w))   # (1, Cout)

    # fc into a lane-padded (1, 128) slab -> unmasked store
    out = jnp.dot(pooled, wf_ref[...],
                  preferred_element_type=jnp.float32) + bf_ref[...]  # (1, 128)
    out_ref[0] = out


def gossip_forward(x, params):
    """Forward pass of GossipDataParallel (single-device scatter == identity)."""
    n, c, h, w = x.shape
    wc, bc, wf, bf = params
    cout = wc.shape[0]
    nclass = wf.shape[0]
    hp, wp = h + 2, w + 2

    # Layout prep (tiny, one-time): NCHW -> padded NHWC; pack conv weights as
    # (k*k, Cin, Cout); lane-pad the fc weight/bias to 128.
    x_pad = jnp.pad(jnp.transpose(x, (0, 2, 3, 1)),
                    ((0, 0), (1, 1), (1, 1), (0, 0))).astype(jnp.float32)
    wc_packed = jnp.transpose(wc, (2, 3, 1, 0)).reshape(_K * _K, c, cout)
    wc_packed = wc_packed.astype(jnp.float32)
    bc_mat = bc.reshape(1, cout).astype(jnp.float32)
    wf_pad = jnp.zeros((cout, _LANE), jnp.float32).at[:, :nclass].set(wf.T)
    bf_pad = jnp.zeros((1, _LANE), jnp.float32).at[0, :nclass].set(bf)

    out = pl.pallas_call(
        _forward_kernel,
        out_shape=jax.ShapeDtypeStruct((n, 1, _LANE), jnp.float32),
        grid=(n,),
        in_specs=[
            pl.BlockSpec((1, hp, wp, c), lambda i: (i, 0, 0, 0)),   # per-sample x
            pl.BlockSpec((_K * _K, c, cout), lambda i: (0, 0, 0)),  # resident
            pl.BlockSpec((1, cout), lambda i: (0, 0)),              # resident
            pl.BlockSpec((cout, _LANE), lambda i: (0, 0)),          # resident
            pl.BlockSpec((1, _LANE), lambda i: (0, 0)),             # resident
        ],
        out_specs=pl.BlockSpec((1, 1, _LANE), lambda i: (i, 0, 0)),
        compiler_params=pltpu.CompilerParams(
            dimension_semantics=("parallel",),
            vmem_limit_bytes=32 * 1024 * 1024),
    )(x_pad, wc_packed, bc_mat, wf_pad, bf_pad)

    return out.reshape(n, _LANE)[:, :nclass]


# ----------------------------------------------------------------------------
# gossip_averaging: p += eta * r, in place, gridded, lane-dense tiles.
# ----------------------------------------------------------------------------
def _gossip_avg_kernel(p_ref, r_ref, eta_ref, out_ref):
    out_ref[...] = p_ref[...] + eta_ref[0] * r_ref[...]


def gossip_averaging(p2, r2, eta, *, tile_rows=1024):
    """In-place parameter update p += eta * r over a (rows, 512) f32 slab."""
    rows, cols = p2.shape
    tm = min(tile_rows, rows)
    eta_arr = jnp.full((1,), eta, p2.dtype)

    vspec = pl.BlockSpec((tm, cols), lambda i: (i, 0))
    return pl.pallas_call(
        _gossip_avg_kernel,
        out_shape=jax.ShapeDtypeStruct(p2.shape, p2.dtype),
        grid=(pl.cdiv(rows, tm),),
        in_specs=[vspec, vspec,
                  pl.BlockSpec(memory_space=pltpu.MemorySpace.SMEM)],
        out_specs=vspec,
        input_output_aliases={0: 0},                 # update p in place
        compiler_params=pltpu.CompilerParams(
            dimension_semantics=("parallel",),
            vmem_limit_bytes=32 * 1024 * 1024),
    )(p2, r2, eta_arr)


# ----------------------------------------------------------------------------
# Deterministic parameter init + pure-JAX reference.
# ----------------------------------------------------------------------------
def init_params(key, cin=4, cout=8, k=3, nclass=10):
    k1, k2, k3, k4 = jax.random.split(key, 4)
    wc = jax.random.normal(k1, (cout, cin, k, k), jnp.float32) * 0.1
    bc = jax.random.normal(k2, (cout,), jnp.float32) * 0.1
    wf = jax.random.normal(k3, (nclass, cout), jnp.float32) * 0.1
    bf = jax.random.normal(k4, (nclass,), jnp.float32) * 0.1
    return wc, bc, wf, bf


def reference_forward(x, params):
    wc, bc, wf, bf = params
    y = lax.conv_general_dilated(x, wc, (1, 1), ((1, 1), (1, 1)),
                                 dimension_numbers=("NCHW", "OIHW", "NCHW"))
    y = jnp.maximum(y + bc[None, :, None, None], 0.0)
    pooled = jnp.mean(y, axis=(2, 3))
    return pooled @ wf.T + bf[None, :]


if __name__ == "__main__":
    key = jax.random.PRNGKey(0)
    kx, kp, kr = jax.random.split(key, 3)

    # inputs consistent with NCHW conv: batch=2, channels=4, spatial=16
    x = jax.random.normal(kx, (2, 4, 16, 16), jnp.float32)
    params = init_params(kp)

    # ---- forward pass ----
    out = gossip_forward(x, params)
    jax.block_until_ready(out)
    ref = reference_forward(x, params)
    assert out.shape == (2, 10)
    assert jnp.allclose(out, ref, atol=1e-4, rtol=1e-4), "forward mismatch"

    # ---- gossip_averaging (hot path): persistent lane-dense (rows, 512) slab,
    # built once at setup (mirrors flatten_tensors in the original module); the
    # kernel itself runs in place with no per-call pad/concat copies. ----
    COLS = 512
    flat = jnp.concatenate([p.reshape(-1) for p in params])
    num = flat.shape[0]
    padded = ((num + COLS - 1) // COLS) * COLS
    p2 = jnp.pad(flat, (0, padded - num)).reshape(-1, COLS)
    gbuf = jax.random.normal(kr, (num,), jnp.float32)
    r2 = jnp.pad(gbuf, (0, padded - num)).reshape(-1, COLS)

    eta = 1.0
    new_p2 = gossip_averaging(p2, r2, eta)
    jax.block_until_ready(new_p2)
    new_flat = new_p2.reshape(-1)[:num]
    assert jnp.allclose(new_flat, flat + eta * gbuf, atol=1e-5), "avg mismatch"

    # TODO(synk): dist.barrier / gossiper.mix / transfer_params (cross-process
    # gossip exchange) need remote DMA collectives (make_async_remote_copy +
    # barrier semaphores) on a real multi-chip mesh; not modeled here.

    print("KERNEL_OK")
</pallas_src>

<mosaic_0001>
module attributes {stable_mosaic.version = 11 : i64} {
  func.func @_forward_kernel(%arg0: i32, %arg1: memref<1x18x18x4xf32, #tpu.memory_space<vmem>>, %arg2: memref<9x4x8xf32, #tpu.memory_space<vmem>>, %arg3: memref<1x8xf32, #tpu.memory_space<vmem>>, %arg4: memref<8x128xf32, #tpu.memory_space<vmem>>, %arg5: memref<1x128xf32, #tpu.memory_space<vmem>>, %arg6: memref<1x1x128xf32, #tpu.memory_space<vmem>>) attributes {dimension_semantics = [#tpu.dimension_semantics<parallel>], iteration_bounds = array<i64: 2>, scalar_prefetch = 0 : i64, scratch_operands = 0 : i64, tpu.core_type = #tpu.core_type<tc>, window_params = [{transform_indices = @transform_0, window_bounds = array<i64: 1, 18, 18, 4>}, {pipeline_mode = #tpu.pipeline_mode<synchronous>, transform_indices = @transform_1, window_bounds = array<i64: 9, 4, 8>}, {pipeline_mode = #tpu.pipeline_mode<synchronous>, transform_indices = @transform_2, window_bounds = array<i64: 1, 8>}, {pipeline_mode = #tpu.pipeline_mode<synchronous>, transform_indices = @transform_3, window_bounds = array<i64: 8, 128>}, {pipeline_mode = #tpu.pipeline_mode<synchronous>, transform_indices = @transform_4, window_bounds = array<i64: 1, 128>}, {transform_indices = @transform_5, window_bounds = array<i64: 1, 1, 128>}]} {
    %c0 = arith.constant 0 : index
    %c0_0 = arith.constant 0 : index
    %c0_1 = arith.constant 0 : index
    %c0_2 = arith.constant 0 : index
    %0 = vector.load %arg1[%c0, %c0_0, %c0_1, %c0_2] : memref<1x18x18x4xf32, #tpu.memory_space<vmem>>, vector<1x18x18x4xf32>
    %1 = vector.shape_cast %0 : vector<1x18x18x4xf32> to vector<18x18x4xf32>
    %cst = arith.constant 0.000000e+00 : f32
    %2 = vector.broadcast %cst : f32 to vector<256x8xf32>
    %3 = vector.extract_strided_slice %1 {offsets = [0, 0, 0], sizes = [16, 16, 4], strides = [1, 1, 1]} : vector<18x18x4xf32> to vector<16x16x4xf32>
    %4 = vector.shape_cast %3 : vector<16x16x4xf32> to vector<256x4xf32>
    %c0_3 = arith.constant 0 : index
    %c0_4 = arith.constant 0 : index
    %c0_5 = arith.constant 0 : index
    %5 = vector.load %arg2[%c0_3, %c0_4, %c0_5] : memref<9x4x8xf32, #tpu.memory_space<vmem>>, vector<1x4x8xf32>
    %6 = vector.shape_cast %5 : vector<1x4x8xf32> to vector<4x8xf32>
    %cst_6 = arith.constant dense<0.000000e+00> : vector<256x8xf32>
    %7 = tpu.matmul %4, %6, %cst_6 {dimension_numbers = #tpu.dot_dimension_numbers<[1], [0], [0], [1], [0, 0, 1, 1], [], []>} : vector<256x4xf32>, vector<4x8xf32>, vector<256x8xf32> -> vector<256x8xf32>
    %8 = arith.addf %2, %7 : vector<256x8xf32>
    %9 = vector.extract_strided_slice %1 {offsets = [0, 1, 0], sizes = [16, 16, 4], strides = [1, 1, 1]} : vector<18x18x4xf32> to vector<16x16x4xf32>
    %10 = vector.shape_cast %9 : vector<16x16x4xf32> to vector<256x4xf32>
    %c1 = arith.constant 1 : index
    %c0_7 = arith.constant 0 : index
    %c0_8 = arith.constant 0 : index
    %11 = vector.load %arg2[%c1, %c0_7, %c0_8] : memref<9x4x8xf32, #tpu.memory_space<vmem>>, vector<1x4x8xf32>
    %12 = vector.shape_cast %11 : vector<1x4x8xf32> to vector<4x8xf32>
    %cst_9 = arith.constant dense<0.000000e+00> : vector<256x8xf32>
    %13 = tpu.matmul %10, %12, %cst_9 {dimension_numbers = #tpu.dot_dimension_numbers<[1], [0], [0], [1], [0, 0, 1, 1], [], []>} : vector<256x4xf32>, vector<4x8xf32>, vector<256x8xf32> -> vector<256x8xf32>
    %14 = arith.addf %8, %13 : vector<256x8xf32>
    %15 = vector.extract_strided_slice %1 {offsets = [0, 2, 0], sizes = [16, 16, 4], strides = [1, 1, 1]} : vector<18x18x4xf32> to vector<16x16x4xf32>
    %16 = vector.shape_cast %15 : vector<16x16x4xf32> to vector<256x4xf32>
    %c2 = arith.constant 2 : index
    %c0_10 = arith.constant 0 : index
    %c0_11 = arith.constant 0 : index
    %17 = vector.load %arg2[%c2, %c0_10, %c0_11] : memref<9x4x8xf32, #tpu.memory_space<vmem>>, vector<1x4x8xf32>
    %18 = vector.shape_cast %17 : vector<1x4x8xf32> to vector<4x8xf32>
    %cst_12 = arith.constant dense<0.000000e+00> : vector<256x8xf32>
    %19 = tpu.matmul %16, %18, %cst_12 {dimension_numbers = #tpu.dot_dimension_numbers<[1], [0], [0], [1], [0, 0, 1, 1], [], []>} : vector<256x4xf32>, vector<4x8xf32>, vector<256x8xf32> -> vector<256x8xf32>
    %20 = arith.addf %14, %19 : vector<256x8xf32>
    %21 = vector.extract_strided_slice %1 {offsets = [1, 0, 0], sizes = [16, 16, 4], strides = [1, 1, 1]} : vector<18x18x4xf32> to vector<16x16x4xf32>
    %22 = vector.shape_cast %21 : vector<16x16x4xf32> to vector<256x4xf32>
    %c3 = arith.constant 3 : index
    %c0_13 = arith.constant 0 : index
    %c0_14 = arith.constant 0 : index
    %23 = vector.load %arg2[%c3, %c0_13, %c0_14] : memref<9x4x8xf32, #tpu.memory_space<vmem>>, vector<1x4x8xf32>
    %24 = vector.shape_cast %23 : vector<1x4x8xf32> to vector<4x8xf32>
    %cst_15 = arith.constant dense<0.000000e+00> : vector<256x8xf32>
    %25 = tpu.matmul %22, %24, %cst_15 {dimension_numbers = #tpu.dot_dimension_numbers<[1], [0], [0], [1], [0, 0, 1, 1], [], []>} : vector<256x4xf32>, vector<4x8xf32>, vector<256x8xf32> -> vector<256x8xf32>
    %26 = arith.addf %20, %25 : vector<256x8xf32>
    %27 = vector.extract_strided_slice %1 {offsets = [1, 1, 0], sizes = [16, 16, 4], strides = [1, 1, 1]} : vector<18x18x4xf32> to vector<16x16x4xf32>
    %28 = vector.shape_cast %27 : vector<16x16x4xf32> to vector<256x4xf32>
    %c4 = arith.constant 4 : index
    %c0_16 = arith.constant 0 : index
    %c0_17 = arith.constant 0 : index
    %29 = vector.load %arg2[%c4, %c0_16, %c0_17] : memref<9x4x8xf32, #tpu.memory_space<vmem>>, vector<1x4x8xf32>
    %30 = vector.shape_cast %29 : vector<1x4x8xf32> to vector<4x8xf32>
    %cst_18 = arith.constant dense<0.000000e+00> : vector<256x8xf32>
    %31 = tpu.matmul %28, %30, %cst_18 {dimension_numbers = #tpu.dot_dimension_numbers<[1], [0], [0], [1], [0, 0, 1, 1], [], []>} : vector<256x4xf32>, vector<4x8xf32>, vector<256x8xf32> -> vector<256x8xf32>
    %32 = arith.addf %26, %31 : vector<256x8xf32>
    %33 = vector.extract_strided_slice %1 {offsets = [1, 2, 0], sizes = [16, 16, 4], strides = [1, 1, 1]} : vector<18x18x4xf32> to vector<16x16x4xf32>
    %34 = vector.shape_cast %33 : vector<16x16x4xf32> to vector<256x4xf32>
    %c5 = arith.constant 5 : index
    %c0_19 = arith.constant 0 : index
    %c0_20 = arith.constant 0 : index
    %35 = vector.load %arg2[%c5, %c0_19, %c0_20] : memref<9x4x8xf32, #tpu.memory_space<vmem>>, vector<1x4x8xf32>
    %36 = vector.shape_cast %35 : vector<1x4x8xf32> to vector<4x8xf32>
    %cst_21 = arith.constant dense<0.000000e+00> : vector<256x8xf32>
    %37 = tpu.matmul %34, %36, %cst_21 {dimension_numbers = #tpu.dot_dimension_numbers<[1], [0], [0], [1], [0, 0, 1, 1], [], []>} : vector<256x4xf32>, vector<4x8xf32>, vector<256x8xf32> -> vector<256x8xf32>
    %38 = arith.addf %32, %37 : vector<256x8xf32>
    %39 = vector.extract_strided_slice %1 {offsets = [2, 0, 0], sizes = [16, 16, 4], strides = [1, 1, 1]} : vector<18x18x4xf32> to vector<16x16x4xf32>
    %40 = vector.shape_cast %39 : vector<16x16x4xf32> to vector<256x4xf32>
    %c6 = arith.constant 6 : index
    %c0_22 = arith.constant 0 : index
    %c0_23 = arith.constant 0 : index
    %41 = vector.load %arg2[%c6, %c0_22, %c0_23] : memref<9x4x8xf32, #tpu.memory_space<vmem>>, vector<1x4x8xf32>
    %42 = vector.shape_cast %41 : vector<1x4x8xf32> to vector<4x8xf32>
    %cst_24 = arith.constant dense<0.000000e+00> : vector<256x8xf32>
    %43 = tpu.matmul %40, %42, %cst_24 {dimension_numbers = #tpu.dot_dimension_numbers<[1], [0], [0], [1], [0, 0, 1, 1], [], []>} : vector<256x4xf32>, vector<4x8xf32>, vector<256x8xf32> -> vector<256x8xf32>
    %44 = arith.addf %38, %43 : vector<256x8xf32>
    %45 = vector.extract_strided_slice %1 {offsets = [2, 1, 0], sizes = [16, 16, 4], strides = [1, 1, 1]} : vector<18x18x4xf32> to vector<16x16x4xf32>
    %46 = vector.shape_cast %45 : vector<16x16x4xf32> to vector<256x4xf32>
    %c7 = arith.constant 7 : index
    %c0_25 = arith.constant 0 : index
    %c0_26 = arith.constant 0 : index
    %47 = vector.load %arg2[%c7, %c0_25, %c0_26] : memref<9x4x8xf32, #tpu.memory_space<vmem>>, vector<1x4x8xf32>
    %48 = vector.shape_cast %47 : vector<1x4x8xf32> to vector<4x8xf32>
    %cst_27 = arith.constant dense<0.000000e+00> : vector<256x8xf32>
    %49 = tpu.matmul %46, %48, %cst_27 {dimension_numbers = #tpu.dot_dimension_numbers<[1], [0], [0], [1], [0, 0, 1, 1], [], []>} : vector<256x4xf32>, vector<4x8xf32>, vector<256x8xf32> -> vector<256x8xf32>
    %50 = arith.addf %44, %49 : vector<256x8xf32>
    %51 = vector.extract_strided_slice %1 {offsets = [2, 2, 0], sizes = [16, 16, 4], strides = [1, 1, 1]} : vector<18x18x4xf32> to vector<16x16x4xf32>
    %52 = vector.shape_cast %51 : vector<16x16x4xf32> to vector<256x4xf32>
    %c8 = arith.constant 8 : index
    %c0_28 = arith.constant 0 : index
    %c0_29 = arith.constant 0 : index
    %53 = vector.load %arg2[%c8, %c0_28, %c0_29] : memref<9x4x8xf32, #tpu.memory_space<vmem>>, vector<1x4x8xf32>
    %54 = vector.shape_cast %53 : vector<1x4x8xf32> to vector<4x8xf32>
    %cst_30 = arith.constant dense<0.000000e+00> : vector<256x8xf32>
    %55 = tpu.matmul %52, %54, %cst_30 {dimension_numbers = #tpu.dot_dimension_numbers<[1], [0], [0], [1], [0, 0, 1, 1], [], []>} : vector<256x4xf32>, vector<4x8xf32>, vector<256x8xf32> -> vector<256x8xf32>
    %56 = arith.addf %50, %55 : vector<256x8xf32>
    %c0_31 = arith.constant 0 : index
    %c0_32 = arith.constant 0 : index
    %57 = vector.load %arg3[%c0_31, %c0_32] : memref<1x8xf32, #tpu.memory_space<vmem>>, vector<1x8xf32>
    %58 = vector.broadcast %57 : vector<1x8xf32> to vector<256x8xf32>
    %59 = arith.addf %56, %58 : vector<256x8xf32>
    %cst_33 = arith.constant 0.000000e+00 : f32
    %60 = vector.broadcast %cst_33 : f32 to vector<256x8xf32>
    %61 = arith.maximumf %59, %60 : vector<256x8xf32>
    %cst_34 = arith.constant dense<0.000000e+00> : vector<8xf32>
    %62 = vector.multi_reduction <add>, %61, %cst_34 [0] : vector<256x8xf32> to vector<8xf32>
    %63 = vector.shape_cast %62 : vector<8xf32> to vector<1x8xf32>
    %cst_35 = arith.constant 3.906250e-03 : f32
    %64 = vector.broadcast %cst_35 : f32 to vector<1x8xf32>
    %65 = arith.mulf %63, %64 : vector<1x8xf32>
    %c0_36 = arith.constant 0 : index
    %c0_37 = arith.constant 0 : index
    %66 = vector.load %arg4[%c0_36, %c0_37] : memref<8x128xf32, #tpu.memory_space<vmem>>, vector<8x128xf32>
    %cst_38 = arith.constant dense<0.000000e+00> : vector<1x128xf32>
    %67 = tpu.matmul %65, %66, %cst_38 {dimension_numbers = #tpu.dot_dimension_numbers<[1], [0], [0], [1], [0, 0, 1, 1], [], []>} : vector<1x8xf32>, vector<8x128xf32>, vector<1x128xf32> -> vector<1x128xf32>
    %c0_39 = arith.constant 0 : index
    %c0_40 = arith.constant 0 : index
    %68 = vector.load %arg5[%c0_39, %c0_40] : memref<1x128xf32, #tpu.memory_space<vmem>>, vector<1x128xf32>
    %69 = arith.addf %67, %68 : vector<1x128xf32>
    %c0_41 = arith.constant 0 : index
    %c0_42 = arith.constant 0 : index
    %c0_43 = arith.constant 0 : index
    %70 = vector.load %arg6[%c0_41, %c0_42, %c0_43] : memref<1x1x128xf32, #tpu.memory_space<vmem>>, vector<1x1x128xf32>
    %71 = vector.shape_cast %70 : vector<1x1x128xf32> to vector<1x128xf32>
    %72 = vector.shape_cast %69 : vector<1x128xf32> to vector<1x1x128xf32>
    tpu.vector_store %arg6[%c0_41, %c0_42, %c0_43], %72 {strides = array<i32>} : memref<1x1x128xf32, #tpu.memory_space<vmem>>, vector<1x1x128xf32>,
    return
  }
  func.func @transform_0(%arg0: i32) -> (i32, i32, i32, i32) {
    %c0_i32 = arith.constant 0 : i32
    %c0_i32_0 = arith.constant 0 : i32
    %c0_i32_1 = arith.constant 0 : i32
    %c0_i32_2 = arith.constant 0 : i32
    return %arg0, %c0_i32, %c0_i32_0, %c0_i32_1 : i32, i32, i32, i32
  }
  func.func @transform_1(%arg0: i32) -> (i32, i32, i32) {
    %c0_i32 = arith.constant 0 : i32
    %c0_i32_0 = arith.constant 0 : i32
    %c0_i32_1 = arith.constant 0 : i32
    %c0_i32_2 = arith.constant 0 : i32
    return %c0_i32, %c0_i32_0, %c0_i32_1 : i32, i32, i32
  }
  func.func @transform_2(%arg0: i32) -> (i32, i32) {
    %c0_i32 = arith.constant 0 : i32
    %c0_i32_0 = arith.constant 0 : i32
    %c0_i32_1 = arith.constant 0 : i32
    return %c0_i32, %c0_i32_0 : i32, i32
  }
  func.func @transform_3(%arg0: i32) -> (i32, i32) {
    %c0_i32 = arith.constant 0 : i32
    %c0_i32_0 = arith.constant 0 : i32
    %c0_i32_1 = arith.constant 0 : i32
    return %c0_i32, %c0_i32_0 : i32, i32
  }
  func.func @transform_4(%arg0: i32) -> (i32, i32) {
    %c0_i32 = arith.constant 0 : i32
    %c0_i32_0 = arith.constant 0 : i32
    %c0_i32_1 = arith.constant 0 : i32
    return %c0_i32, %c0_i32_0 : i32, i32
  }
  func.func @transform_5(%arg0: i32) -> (i32, i32, i32) {
    %c0_i32 = arith.constant 0 : i32
    %c0_i32_0 = arith.constant 0 : i32
    %c0_i32_1 = arith.constant 0 : i32
    return %arg0, %c0_i32, %c0_i32_0 : i32, i32, i32
  }
}

</mosaic_0001>

<llo_original>
// kernel: tpu_custom_call.1
$region0: #{tpu_custom_call.1}
  #allocation0 [shape = 'u32[]', space=smem, size = 0x4, offset = 0x4, fixed_abs, tag = 'smem constant byte address 0x4 - core index']
  #allocation1 [shape = 'u32[144,128]{1,0:T(1,128)}', space=vmem, size = 0x12000, scoped, tag = 'internal scratch']
  %s0 = inlined_call_operand.vmem [shape: f32[2,18,18,4], index: 0, kind: input, shape index: {}]
  %s1 = inlined_call_operand.vmem [shape: f32[9,4,8], index: 1, kind: input, shape index: {}]
  %s2 = inlined_call_operand.vmem [shape: f32[1,8], index: 2, kind: input, shape index: {}]
  %s3 = inlined_call_operand.vmem [shape: f32[8,128], index: 3, kind: input, shape index: {}]
  %s4 = inlined_call_operand.vmem [shape: f32[1,128], index: 4, kind: input, shape index: {}]
  %s5 = inlined_call_operand.hbm [shape: f32[2,1,128], index: 5, kind: output, shape index: {}]
  %s6 = sld [smem:[#allocation0]]
  $region53: #{tpu_custom_call.1} parent=0
    _
  %s8 = ssub.s32 1, %s6
  %s9 = scalar_select 0, %s8, %s6
  $region1: #{tpu_custom_call.1} parent=0
    #allocation2 [shape = 'u8[1024]{0}', space=vmem, size = 0x400, scoped, tag = 'output window, operand 0']
    #allocation3 [shape = 's32[2]{0}', space=sflag, size = 0x8, scoped, tag = 'scoped memory for tpu_custom_call.1']
    %10 = vsyncpa [#allocation3], 0
    %s11 = scalar_lea.sflag [#allocation3], 1
    %12 = vsyncpa %s11, 0
    loop: start=0, step=1, limit=4
    $region2: #{tpu_custom_call.1} parent=1 // loop_pre_header
      _
    $region3: #{tpu_custom_call.1} parent=1 // loop_header
      %s14 = sphi 0, %s18
      %p15 = scmp.ge.s32.totalorder %s14, 4
      %s24 = sphi 0, %s26
      %s27 = sphi 0, %s24
      %s28 = sphi 0, %s27
      %s44 = sphi 0, %s28
      %s48 = sphi 0, %s48
      %s50 = sphi 0, %s48
      %s51 = sphi 0, %s50
      %s65 = sphi 0, %s51
      %s69 = sphi 0, %s69
      %s71 = sphi 0, %s69
      %s72 = sphi 0, %s71
      %s86 = sphi 0, %s72
      %s90 = sphi 0, %s90
      %s92 = sphi 0, %s90
      %s93 = sphi 0, %s92
      %s107 = sphi 0, %s93
      %s111 = sphi 0, %s111
      %s113 = sphi 0, %s111
      %s114 = sphi 0, %s113
      %s128 = sphi 0, %s114
      %s134 = sphi 0, %s136
      %s137 = sphi 0, %s134
      %s138 = sphi 0, %s137
      %s154 = sphi 0, %s138
    $region4: #{tpu_custom_call.1} parent=1 // loop_header_branch
      %17 = sbr.rel (%p15) target = $region8
    $region5: #{tpu_custom_call.1} parent=1 // loop_body
      %s19 = ssub.s32 %s14, 1
      %s20 = ssub.s32 %s14, 2
      %s21 = sadd.s32 %s14, 1
      %s22 = ssub.s32 %s14, %s21
      %p23 = scmp.eq.s32.totalorder %s22, 0
      %s25 = sadd.s32 %s24, 1
      %s26 = scalar_select %p23, %s24, %s25
      %p29 = pneg %p23
      %p30 = scmp.eq.s32.totalorder %s14, 1
      %p31 = por %p29, %p30
      %p32 = scmp.ne.s32.totalorder %s24, %s27
      %p33 = scmp.eq.s32.totalorder %s14, 0
      %p34 = por %p32, %p33
      %p35 = scmp.ne.s32.totalorder %s24, %s27
      %p36 = scmp.eq.s32.totalorder %s19, 1
      %p37 = por %p35, %p36
      %p38 = scmp.ne.s32.totalorder %s27, %s28
      %p39 = scmp.eq.s32.totalorder %s19, 0
      %p40 = por %p38, %p39
      %p41 = scmp.ne.s32.totalorder %s27, %s28
      %p42 = scmp.eq.s32.totalorder %s20, 1
      %p43 = por %p41, %p42
      %p45 = scmp.ne.s32.totalorder %s28, %s44
      %p46 = scmp.eq.s32.totalorder %s20, 0
      %p47 = por %p45, %p46
      %s49 = sadd.s32 %s48, 1
      %p52 = scmp.eq.s32.totalorder %s14, 1
      %p53 = scmp.ne.s32.totalorder %s48, %s50
      %p54 = scmp.eq.s32.totalorder %s14, 0
      %p55 = por %p53, %p54
      %p56 = scmp.ne.s32.totalorder %s48, %s50
      %p57 = scmp.eq.s32.totalorder %s19, 1
      %p58 = por %p56, %p57
      %p59 = scmp.ne.s32.totalorder %s50, %s51
      %p60 = scmp.eq.s32.totalorder %s19, 0
      %p61 = por %p59, %p60
      %p62 = scmp.ne.s32.totalorder %s50, %s51
      %p63 = scmp.eq.s32.totalorder %s20, 1
      %p64 = por %p62, %p63
      %p66 = scmp.ne.s32.totalorder %s51, %s65
      %p67 = scmp.eq.s32.totalorder %s20, 0
      %p68 = por %p66, %p67
      %s70 = sadd.s32 %s69, 1
      %p73 = scmp.eq.s32.totalorder %s14, 1
      %p74 = scmp.ne.s32.totalorder %s69, %s71
      %p75 = scmp.eq.s32.totalorder %s14, 0
      %p76 = por %p74, %p75
      %p77 = scmp.ne.s32.totalorder %s69, %s71
      %p78 = scmp.eq.s32.totalorder %s19, 1
      %p79 = por %p77, %p78
      %p80 = scmp.ne.s32.totalorder %s71, %s72
      %p81 = scmp.eq.s32.totalorder %s19, 0
      %p82 = por %p80, %p81
      %p83 = scmp.ne.s32.totalorder %s71, %s72
      %p84 = scmp.eq.s32.totalorder %s20, 1
      %p85 = por %p83, %p84
      %p87 = scmp.ne.s32.totalorder %s72, %s86
      %p88 = scmp.eq.s32.totalorder %s20, 0
      %p89 = por %p87, %p88
      %s91 = sadd.s32 %s90, 1
      %p94 = scmp.eq.s32.totalorder %s14, 1
      %p95 = scmp.ne.s32.totalorder %s90, %s92
      %p96 = scmp.eq.s32.totalorder %s14, 0
      %p97 = por %p95, %p96
      %p98 = scmp.ne.s32.totalorder %s90, %s92
      %p99 = scmp.eq.s32.totalorder %s19, 1
      %p100 = por %p98, %p99
      %p101 = scmp.ne.s32.totalorder %s92, %s93
      %p102 = scmp.eq.s32.totalorder %s19, 0
      %p103 = por %p101, %p102
      %p104 = scmp.ne.s32.totalorder %s92, %s93
      %p105 = scmp.eq.s32.totalorder %s20, 1
      %p106 = por %p104, %p105
      %p108 = scmp.ne.s32.totalorder %s93, %s107
      %p109 = scmp.eq.s32.totalorder %s20, 0
      %p110 = por %p108, %p109
      %s112 = sadd.s32 %s111, 1
      %p115 = scmp.eq.s32.totalorder %s14, 1
      %p116 = scmp.ne.s32.totalorder %s111, %s113
      %p117 = scmp.eq.s32.totalorder %s14, 0
      %p118 = por %p116, %p117
      %p119 = scmp.ne.s32.totalorder %s111, %s113
      %p120 = scmp.eq.s32.totalorder %s19, 1
      %p121 = por %p119, %p120
      %p122 = scmp.ne.s32.totalorder %s113, %s114
      %p123 = scmp.eq.s32.totalorder %s19, 0
      %p124 = por %p122, %p123
      %p125 = scmp.ne.s32.totalorder %s113, %s114
      %p126 = scmp.eq.s32.totalorder %s20, 1
      %p127 = por %p125, %p126
      %p129 = scmp.ne.s32.totalorder %s114, %s128
      %p130 = scmp.eq.s32.totalorder %s20, 0
      %p131 = por %p129, %p130
      %s132 = ssub.s32 %s14, %s21
      %p133 = scmp.eq.s32.totalorder %s132, 0
      %s135 = sadd.s32 %s134, 1
      %s136 = scalar_select %p133, %s134, %s135
      %p139 = pneg %p133
      %p140 = scmp.eq.s32.totalorder %s14, 1
      %p141 = por %p139, %p140
      %p142 = scmp.ne.s32.totalorder %s134, %s137
      %p143 = scmp.eq.s32.totalorder %s14, 0
      %p144 = por %p142, %p143
      %p145 = scmp.ne.s32.totalorder %s134, %s137
      %p146 = scmp.eq.s32.totalorder %s19, 1
      %p147 = por %p145, %p146
      %p148 = scmp.ne.s32.totalorder %s137, %s138
      %p149 = scmp.eq.s32.totalorder %s19, 0
      %p150 = por %p148, %p149
      %p151 = scmp.ne.s32.totalorder %s137, %s138
      %p152 = scmp.eq.s32.totalorder %s20, 1
      %p153 = por %p151, %p152
      %p155 = scmp.ne.s32.totalorder %s138, %s154
      %p156 = scmp.eq.s32.totalorder %s20, 0
      %p157 = por %p155, %p156
      %p158 = scmp.le.s32.totalorder 1, %s14
      %p159 = scmp.lt.s32.totalorder %s14, 3
      %p160 = pnand %p158, %p159
      %p161 = pneg %p160
      // Predicated region
      $region9: #{tpu_custom_call.1} parent=5 // pred_check
        _
      $region10: #{tpu_custom_call.1} parent=5 // pred_check_branch
        %163 = sbr.rel (%p160) target = $region12
      $region11: #{tpu_custom_call.1} parent=5 // pred_region
        %s164 = ssub.s32 %s14, 1
        // Predicated region
        $region13: #{tpu_custom_call.1} parent=11 // pred_check
          %p165 = pneg %p61
        $region14: #{tpu_custom_call.1} parent=11 // pred_check_branch
          %167 = sbr.rel (%p165) target = $region16
        $region15: #{tpu_custom_call.1} parent=11 // pred_region
          _
        $region16: #{tpu_custom_call.1} parent=11 // pred_fallthru
          _
        // Predicated region
        $region17: #{tpu_custom_call.1} parent=11 // pred_check
          %p168 = pneg %p82
        $region18: #{tpu_custom_call.1} parent=11 // pred_check_branch
          %170 = sbr.rel (%p168) target = $region20
        $region19: #{tpu_custom_call.1} parent=11 // pred_region
          _
        $region20: #{tpu_custom_call.1} parent=11 // pred_fallthru
          _
        // Predicated region
        $region21: #{tpu_custom_call.1} parent=11 // pred_check
          %p171 = pneg %p103
        $region22: #{tpu_custom_call.1} parent=11 // pred_check_branch
          %173 = sbr.rel (%p171) target = $region24
        $region23: #{tpu_custom_call.1} parent=11 // pred_region
          _
        $region24: #{tpu_custom_call.1} parent=11 // pred_fallthru
          _
        // Predicated region
        $region25: #{tpu_custom_call.1} parent=11 // pred_check
          %p174 = pneg %p124
        $region26: #{tpu_custom_call.1} parent=11 // pred_check_branch
          %176 = sbr.rel (%p174) target = $region28
        $region27: #{tpu_custom_call.1} parent=11 // pred_region
          _
        $region28: #{tpu_custom_call.1} parent=11 // pred_fallthru
          _
      $region12: #{tpu_custom_call.1} parent=5 // pred_fallthru
        _
      %p177 = scmp.lt.s32.totalorder %s14, 2
      // Predicated region
      $region29: #{tpu_custom_call.1} parent=5 // pred_check
        %p178 = pneg %p177
      $region30: #{tpu_custom_call.1} parent=5 // pred_check_branch
        %180 = sbr.rel (%p178) target = $region32
      $region31: #{tpu_custom_call.1} parent=5 // pred_region
        // Predicated region
        $region33: #{tpu_custom_call.1} parent=31 // pred_check
          %p181 = pneg %p34
        $region34: #{tpu_custom_call.1} parent=31 // pred_check_branch
          %183 = sbr.rel (%p181) target = $region36
        $region35: #{tpu_custom_call.1} parent=31 // pred_region
          %p184 = scmp.lt.s32.totalorder %s14, 1
          %s185 = scalar_select %p184, %s14, 1
          %s186 = smul.addr %s185, 54
          %s187 = smul.addr %s186, 8
          %s188 = scalar_lea.vmem %s0, %s187
        $region36: #{tpu_custom_call.1} parent=31 // pred_fallthru
          _
      $region32: #{tpu_custom_call.1} parent=5 // pred_fallthru
        _
      %p189 = scmp.le.s32.totalorder 1, %s14
      %p190 = scmp.lt.s32.totalorder %s14, 3
      %p191 = pnand %p189, %p190
      %p192 = pneg %p191
      // Predicated region
      $region37: #{tpu_custom_call.1} parent=5 // pred_check
        _
      $region38: #{tpu_custom_call.1} parent=5 // pred_check_branch
        %194 = sbr.rel (%p191) target = $region40
      $region39: #{tpu_custom_call.1} parent=5 // pred_region
        %s195 = ssub.s32 %s14, 1
        %p196 = scmp.lt.s32.totalorder %s19, 1
        %s197 = scalar_select %p196, %s19, 1
        %s198 = smul.addr %s197, 54
        %s199 = smul.addr %s198, 8
        %s200 = scalar_lea.vmem %s0, %s199
        %p201 = pneg %p40
        %p202 = pneg %p37
        %p203 = pneg %p61
        %p204 = pneg %p58
        %p205 = pneg %p82
        %p206 = pneg %p79
        %p207 = pneg %p103
        %p208 = pneg %p100
        %p209 = pneg %p124
        %p210 = pneg %p121
        %p211 = pneg %p150
        %p212 = pneg %p147
        %s213 = sand.u32 %s137, 1
        %s214 = scalar_lea.sflag [#allocation3], %s213
        %s215 = sand.u32 %s137, 1
        %s216 = scalar_lea.vmem [#allocation2], %s215
        %p217 = scmp.lt.s32.totalorder %s19, 1
        %s218 = scalar_select %p217, %s19, 1
        %s219 = smul.addr %s218, 54
        %s220 = smul.addr %s219, 8
        %s221 = scalar_lea.vmem %s0, %s220
        %v222 = vld [vmem:[%s221] sm:$0xff]
        %v223 = vld [vmem:[%s221 + $0x8] sm:$0xff]
        %v224 = vld [vmem:[%s221 + $0x10] sm:$0x3]
        %v225 = vld [vmem:[%s221 + $0x18] sm:$0xff]
        %v226 = vld [vmem:[%s221 + $0x20] sm:$0xff]
        %v227 = vld [vmem:[%s221 + $0x28] sm:$0x3]
        %v228 = vld [vmem:[%s221 + $0x30] sm:$0xff]
        %v229 = vld [vmem:[%s221 + $0x38] sm:$0xff]
        %v230 = vld [vmem:[%s221 + $0x40] sm:$0x3]
        %v231 = vld [vmem:[%s221 + $0x48] sm:$0xff]
        %v232 = vld [vmem:[%s221 + $0x50] sm:$0xff]
        %v233 = vld [vmem:[%s221 + $0x58] sm:$0x3]
        %v234 = vld [vmem:[%s221 + $0x60] sm:$0xff]
        %v235 = vld [vmem:[%s221 + $0x68] sm:$0xff]
        %v236 = vld [vmem:[%s221 + $0x70] sm:$0x3]
        %v237 = vld [vmem:[%s221 + $0x78] sm:$0xff]
        %v238 = vld [vmem:[%s221 + $0x80] sm:$0xff]
        %v239 = vld [vmem:[%s221 + $0x88] sm:$0x3]
        %v240 = vld [vmem:[%s221 + $0x90] sm:$0xff]
        %v241 = vld [vmem:[%s221 + $0x98] sm:$0xff]
        %v242 = vld [vmem:[%s221 + $0xa0] sm:$0x3]
        %v243 = vld [vmem:[%s221 + $0xa8] sm:$0xff]
        %v244 = vld [vmem:[%s221 + $0xb0] sm:$0xff]
        %v245 = vld [vmem:[%s221 + $0xb8] sm:$0x3]
        %v246 = vld [vmem:[%s221 + $0xc0] sm:$0xff]
        %v247 = vld [vmem:[%s221 + $0xc8] sm:$0xff]
        %v248 = vld [vmem:[%s221 + $0xd0] sm:$0x3]
        %v249 = vld [vmem:[%s221 + $0xd8] sm:$0xff]
        %v250 = vld [vmem:[%s221 + $0xe0] sm:$0xff]
        %v251 = vld [vmem:[%s221 + $0xe8] sm:$0x3]
        %v252 = vld [vmem:[%s221 + $0xf0] sm:$0xff]
        %v253 = vld [vmem:[%s221 + $0xf8] sm:$0xff]
        %v254 = vld [vmem:[%s221 + $0x100] sm:$0x3]
        %v255 = vld [vmem:[%s221 + $0x108] sm:$0xff]
        %v256 = vld [vmem:[%s221 + $0x110] sm:$0xff]
        %v257 = vld [vmem:[%s221 + $0x118] sm:$0x3]
        %v258 = vld [vmem:[%s221 + $0x120] sm:$0xff]
        %v259 = vld [vmem:[%s221 + $0x128] sm:$0xff]
        %v260 = vld [vmem:[%s221 + $0x130] sm:$0x3]
        %v261 = vld [vmem:[%s221 + $0x138] sm:$0xff]
        %v262 = vld [vmem:[%s221 + $0x140] sm:$0xff]
        %v263 = vld [vmem:[%s221 + $0x148] sm:$0x3]
        %v264 = vld [vmem:[%s221 + $0x150] sm:$0xff]
        %v265 = vld [vmem:[%s221 + $0x158] sm:$0xff]
        %v266 = vld [vmem:[%s221 + $0x160] sm:$0x3]
        %v267 = vld [vmem:[%s221 + $0x168] sm:$0xff]
        %v268 = vld [vmem:[%s221 + $0x170] sm:$0xff]
        %v269 = vld [vmem:[%s221 + $0x178] sm:$0x3]
        %v270 = vld [vmem:[%s221 + $0x180] sm:$0xff]
        %v271 = vld [vmem:[%s221 + $0x188] sm:$0xff]
        %v272 = vld [vmem:[%s221 + $0x190] sm:$0x3]
        %v273 = vld [vmem:[%s221 + $0x198] sm:$0xff]
        %v274 = vld [vmem:[%s221 + $0x1a0] sm:$0xff]
        %v275 = vld [vmem:[%s221 + $0x1a8] sm:$0x3]
        %v276 = vld [vmem:[%s1] sm:$0xf]
        %vm325 = vcmask 1046528
        %v326 = vrot.slane %v222, 1
        %v327 = vrot.slane %v223, 1
        %v328 = vsel %vm325, %v326, %v327
        %v329 = vrot.slane %v224, 1
        %v330 = vsel %vm325, %v327, %v329
        %v331 = vrot.slane %v225, 1
        %v332 = vrot.slane %v226, 1
        %v333 = vsel %vm325, %v331, %v332
        %v334 = vrot.slane %v227, 1
        %v335 = vsel %vm325, %v332, %v334
        %v336 = vrot.slane %v228, 1
        %v337 = vrot.slane %v229, 1
        %v338 = vsel %vm325, %v336, %v337
        %v339 = vrot.slane %v230, 1
        %v340 = vsel %vm325, %v337, %v339
        %v341 = vrot.slane %v231, 1
        %v342 = vrot.slane %v232, 1
        %v343 = vsel %vm325, %v341, %v342
        %v344 = vrot.slane %v233, 1
        %v345 = vsel %vm325, %v342, %v344
        %v346 = vrot.slane %v234, 1
        %v347 = vrot.slane %v235, 1
        %v348 = vsel %vm325, %v346, %v347
        %v349 = vrot.slane %v236, 1
        %v350 = vsel %vm325, %v347, %v349
        %v351 = vrot.slane %v237, 1
        %v352 = vrot.slane %v238, 1
        %v353 = vsel %vm325, %v351, %v352
        %v354 = vrot.slane %v239, 1
        %v355 = vsel %vm325, %v352, %v354
        %v356 = vrot.slane %v240, 1
        %v357 = vrot.slane %v241, 1
        %v358 = vsel %vm325, %v356, %v357
        %v359 = vrot.slane %v242, 1
        %v360 = vsel %vm325, %v357, %v359
        %v361 = vrot.slane %v243, 1
        %v362 = vrot.slane %v244, 1
        %v363 = vsel %vm325, %v361, %v362
        %v364 = vrot.slane %v245, 1
        %v365 = vsel %vm325, %v362, %v364
        %v366 = vrot.slane %v246, 1
        %v367 = vrot.slane %v247, 1
        %v368 = vsel %vm325, %v366, %v367
        %v369 = vrot.slane %v248, 1
        %v370 = vsel %vm325, %v367, %v369
        %v371 = vrot.slane %v249, 1
        %v372 = vrot.slane %v250, 1
        %v373 = vsel %vm325, %v371, %v372
        %v374 = vrot.slane %v251, 1
        %v375 = vsel %vm325, %v372, %v374
        %v376 = vrot.slane %v252, 1
        %v377 = vrot.slane %v253, 1
        %v378 = vsel %vm325, %v376, %v377
        %v379 = vrot.slane %v254, 1
        %v380 = vsel %vm325, %v377, %v379
        %v381 = vrot.slane %v255, 1
        %v382 = vrot.slane %v256, 1
        %v383 = vsel %vm325, %v381, %v382
        %v384 = vrot.slane %v257, 1
        %v385 = vsel %vm325, %v382, %v384
        %v386 = vrot.slane %v258, 1
        %v387 = vrot.slane %v259, 1
        %v388 = vsel %vm325, %v386, %v387
        %v389 = vrot.slane %v260, 1
        %v390 = vsel %vm325, %v387, %v389
        %v391 = vrot.slane %v261, 1
        %v392 = vrot.slane %v262, 1
        %v393 = vsel %vm325, %v391, %v392
        %v394 = vrot.slane %v263, 1
        %v395 = vsel %vm325, %v392, %v394
        %v396 = vrot.slane %v264, 1
        %v397 = vrot.slane %v265, 1
        %v398 = vsel %vm325, %v396, %v397
        %v399 = vrot.slane %v266, 1
        %v400 = vsel %vm325, %v397, %v399
        %v401 = vrot.slane %v267, 1
        %v402 = vrot.slane %v268, 1
        %v403 = vsel %vm325, %v401, %v402
        %v404 = vrot.slane %v269, 1
        %v405 = vsel %vm325, %v402, %v404
        %s406 = scalar_lea.vmem %s1, 4
        %v407 = vld [vmem:[%s406] sm:$0xf]
        %vm408 = vcmask 31744
        %v409 = vsel %vm408, %v328, 0
        %v411 = vsel %vm408, %v330, 0
        %v413 = vsel %vm408, %v333, 0
        %v415 = vsel %vm408, %v335, 0
        %v417 = vsel %vm408, %v338, 0
        %v419 = vsel %vm408, %v340, 0
        %v421 = vsel %vm408, %v343, 0
        %v423 = vsel %vm408, %v345, 0
        %v425 = vsel %vm408, %v348, 0
        %v427 = vsel %vm408, %v350, 0
        %v429 = vsel %vm408, %v353, 0
        %v431 = vsel %vm408, %v355, 0
        %v433 = vsel %vm408, %v358, 0
        %v435 = vsel %vm408, %v360, 0
        %v437 = vsel %vm408, %v363, 0
        %v439 = vsel %vm408, %v365, 0
        %v441 = vsel %vm408, %v368, 0
        %v443 = vsel %vm408, %v370, 0
        %v445 = vsel %vm408, %v373, 0
        %v447 = vsel %vm408, %v375, 0
        %v449 = vsel %vm408, %v378, 0
        %v451 = vsel %vm408, %v380, 0
        %v453 = vsel %vm408, %v383, 0
        %v455 = vsel %vm408, %v385, 0
        %v457 = vsel %vm408, %v388, 0
        %v459 = vsel %vm408, %v390, 0
        %v461 = vsel %vm408, %v393, 0
        %v463 = vsel %vm408, %v395, 0
        %v465 = vsel %vm408, %v398, 0
        %v467 = vsel %vm408, %v400, 0
        %v469 = vsel %vm408, %v403, 0
        %v471 = vsel %vm408, %v405, 0
        %vm473 = vcmask 1043456
        %v475 = vsel %vm473, %v407, 0
        %477 = vmatprep.subr.mxu0 0.0
        %478 = vmatpush1.msra.mxu0 0.0
        %479 = vmatprep.subr.mxu0 0.0
        %480 = vmatpush1.msra.mxu0 0.0
        %481 = vmatprep.subr.mxu0 0.0
        %482 = vmatpush1.msra.mxu0 0.0
        %483 = vmatprep.subr.mxu0 0.0
        %484 = vmatpush1.msra.mxu0 0.0
        %485 = vmatprep.subr.mxu0 0.0
        %486 = vmatpush1.msra.mxu0 0.0
        %487 = vmatprep.subr.mxu0 0.0
        %488 = vmatpush1.msra.mxu0 0.0
        %489 = vmatprep.subr.mxu0 0.0
        %490 = vmatpush1.msra.mxu0 0.0
        %491 = vmatprep.subr.mxu0 0.0
        %492 = vmatpush1.msra.mxu0 0.0
        %493 = vmatprep.subr.mxu0 0.0
        %494 = vmatpush1.msra.mxu0 0.0
        %495 = vmatprep.subr.mxu0 0.0
        %496 = vmatpush1.msra.mxu0 0.0
        %497 = vmatprep.subr.mxu0 0.0
        %498 = vmatpush1.msra.mxu0 0.0
        %499 = vmatprep.subr.mxu0 0.0
        %500 = vmatpush1.msra.mxu0 0.0
        %501 = vmatprep.subr.mxu0 0.0
        %502 = vmatpush1.msra.mxu0 0.0
        %503 = vmatprep.subr.mxu0 0.0
        %504 = vmatpush1.msra.mxu0 0.0
        %505 = vmatprep.subr.mxu0 0.0
        %506 = vmatpush1.msra.mxu0 0.0
        %507 = vmatprep.subr.mxu0 0.0
        %508 = vmatpush1.msra.mxu0 %v475
        %509 = vmatprep.subr.mxu0 0.0
        %510 = vmatpush2.msra.mxu0 0.0
        %511 = vmatprep.subr.mxu0 0.0
        %512 = vmatpush2.msra.mxu0 0.0
        %513 = vmatprep.subr.mxu0 0.0
        %514 = vmatpush2.msra.mxu0 0.0
        %515 = vmatprep.subr.mxu0 0.0
        %516 = vmatpush2.msra.mxu0 0.0
        %517 = vmatprep.subr.mxu0 0.0
        %518 = vmatpush2.msra.mxu0 0.0
        %519 = vmatprep.subr.mxu0 0.0
        %520 = vmatpush2.msra.mxu0 0.0
        %521 = vmatprep.subr.mxu0 0.0
        %522 = vmatpush2.msra.mxu0 0.0
        %523 = vmatprep.subr.mxu0 0.0
        %524 = vmatpush2.msra.mxu0 0.0
        %525 = vmatprep.subr.mxu0 0.0
        %526 = vmatpush2.msra.mxu0 0.0
        %527 = vmatprep.subr.mxu0 0.0
        %528 = vmatpush2.msra.mxu0 0.0
        %529 = vmatprep.subr.mxu0 0.0
        %530 = vmatpush2.msra.mxu0 0.0
        %531 = vmatprep.subr.mxu0 0.0
        %532 = vmatpush2.msra.mxu0 0.0
        %533 = vmatprep.subr.mxu0 0.0
        %534 = vmatpush2.msra.mxu0 0.0
        %535 = vmatprep.subr.mxu0 0.0
        %536 = vmatpush2.msra.mxu0 0.0
        %537 = vmatprep.subr.mxu0 0.0
        %538 = vmatpush2.msra.mxu0 0.0
        %539 = vmatprep.subr.mxu0 0.0
        %540 = vmatpush2.msra.mxu0 0.0
        %541 = vmatprep.mubr.f32.mxu0 0.0
        %542 = vmatmul.mubr.f32.gmra.mxu0 %v409
        %v543 = vpop.f32.mrf.mxu0
        %v544 = vadd.f32 0.0, %v543
        %v545 = vpop.f32.mrf.mxu0
        %546 = vmatprep.mubr.f32.mxu0 0.0
        %547 = vmatmul.mubr.f32.gmra.mxu0 %v411
        %v548 = vpop.f32.mrf.mxu0
        %v549 = vadd.f32 0.0, %v548
        %v550 = vpop.f32.mrf.mxu0
        %551 = vmatprep.mubr.f32.mxu0 0.0
        %552 = vmatmul.mubr.f32.gmra.mxu0 %v413
        %v553 = vpop.f32.mrf.mxu0
        %v554 = vadd.f32 0.0, %v553
        %v555 = vpop.f32.mrf.mxu0
        %556 = vmatprep.mubr.f32.mxu0 0.0
        %557 = vmatmul.mubr.f32.gmra.mxu0 %v415
        %v558 = vpop.f32.mrf.mxu0
        %v559 = vadd.f32 0.0, %v558
        %v560 = vpop.f32.mrf.mxu0
        %561 = vmatprep.mubr.f32.mxu0 0.0
        %562 = vmatmul.mubr.f32.gmra.mxu0 %v417
        %v563 = vpop.f32.mrf.mxu0
        %v564 = vadd.f32 0.0, %v563
        %v565 = vpop.f32.mrf.mxu0
        %566 = vmatprep.mubr.f32.mxu0 0.0
        %567 = vmatmul.mubr.f32.gmra.mxu0 %v419
        %v568 = vpop.f32.mrf.mxu0
        %v569 = vadd.f32 0.0, %v568
        %v570 = vpop.f32.mrf.mxu0
        %571 = vmatprep.mubr.f32.mxu0 0.0
        %572 = vmatmul.mubr.f32.gmra.mxu0 %v421
        %v573 = vpop.f32.mrf.mxu0
        %v574 = vadd.f32 0.0, %v573
        %v575 = vpop.f32.mrf.mxu0
        %576 = vmatprep.mubr.f32.mxu0 0.0
        %577 = vmatmul.mubr.f32.gmra.mxu0 %v423
        %v578 = vpop.f32.mrf.mxu0
        %v579 = vadd.f32 0.0, %v578
        %v580 = vpop.f32.mrf.mxu0
        %581 = vmatprep.mubr.f32.mxu0 0.0
        %582 = vmatmul.mubr.f32.gmra.mxu0 %v425
        %v583 = vpop.f32.mrf.mxu0
        %v584 = vadd.f32 0.0, %v583
        %v585 = vpop.f32.mrf.mxu0
        %586 = vmatprep.mubr.f32.mxu0 0.0
        %587 = vmatmul.mubr.f32.gmra.mxu0 %v427
        %v588 = vpop.f32.mrf.mxu0
        %v589 = vadd.f32 0.0, %v588
        %v590 = vpop.f32.mrf.mxu0
        %591 = vmatprep.mubr.f32.mxu0 0.0
        %592 = vmatmul.mubr.f32.gmra.mxu0 %v429
        %v593 = vpop.f32.mrf.mxu0
        %v594 = vadd.f32 0.0, %v593
        %v595 = vpop.f32.mrf.mxu0
        %596 = vmatprep.mubr.f32.mxu0 0.0
        %597 = vmatmul.mubr.f32.gmra.mxu0 %v431
        %v598 = vpop.f32.mrf.mxu0
        %v599 = vadd.f32 0.0, %v598
        %v600 = vpop.f32.mrf.mxu0
        %601 = vmatprep.mubr.f32.mxu0 0.0
        %602 = vmatmul.mubr.f32.gmra.mxu0 %v433
        %v603 = vpop.f32.mrf.mxu0
        %v604 = vadd.f32 0.0, %v603
        %v605 = vpop.f32.mrf.mxu0
        %606 = vmatprep.mubr.f32.mxu0 0.0
        %607 = vmatmul.mubr.f32.gmra.mxu0 %v435
        %v608 = vpop.f32.mrf.mxu0
        %v609 = vadd.f32 0.0, %v608
        %v610 = vpop.f32.mrf.mxu0
        %611 = vmatprep.mubr.f32.mxu0 0.0
        %612 = vmatmul.mubr.f32.gmra.mxu0 %v437
        %v613 = vpop.f32.mrf.mxu0
        %v614 = vadd.f32 0.0, %v613
        %v615 = vpop.f32.mrf.mxu0
        %616 = vmatprep.mubr.f32.mxu0 0.0
        %617 = vmatmul.mubr.f32.gmra.mxu0 %v439
        %v618 = vpop.f32.mrf.mxu0
        %v619 = vadd.f32 0.0, %v618
        %v620 = vpop.f32.mrf.mxu0
        %621 = vmatprep.mubr.f32.mxu0 0.0
        %622 = vmatmul.mubr.f32.gmra.mxu0 %v441
        %v623 = vpop.f32.mrf.mxu0
        %v624 = vadd.f32 0.0, %v623
        %v625 = vpop.f32.mrf.mxu0
        %626 = vmatprep.mubr.f32.mxu0 0.0
        %627 = vmatmul.mubr.f32.gmra.mxu0 %v443
        %v628 = vpop.f32.mrf.mxu0
        %v629 = vadd.f32 0.0, %v628
        %v630 = vpop.f32.mrf.mxu0
        %631 = vmatprep.mubr.f32.mxu0 0.0
        %632 = vmatmul.mubr.f32.gmra.mxu0 %v445
        %v633 = vpop.f32.mrf.mxu0
        %v634 = vadd.f32 0.0, %v633
        %v635 = vpop.f32.mrf.mxu0
        %636 = vmatprep.mubr.f32.mxu0 0.0
        %637 = vmatmul.mubr.f32.gmra.mxu0 %v447
        %v638 = vpop.f32.mrf.mxu0
        %v639 = vadd.f32 0.0, %v638
        %v640 = vpop.f32.mrf.mxu0
        %641 = vmatprep.mubr.f32.mxu0 0.0
        %642 = vmatmul.mubr.f32.gmra.mxu0 %v449
        %v643 = vpop.f32.mrf.mxu0
        %v644 = vadd.f32 0.0, %v643
        %v645 = vpop.f32.mrf.mxu0
        %646 = vmatprep.mubr.f32.mxu0 0.0
        %647 = vmatmul.mubr.f32.gmra.mxu0 %v451
        %v648 = vpop.f32.mrf.mxu0
        %v649 = vadd.f32 0.0, %v648
        %v650 = vpop.f32.mrf.mxu0
        %651 = vmatprep.mubr.f32.mxu0 0.0
        %652 = vmatmul.mubr.f32.gmra.mxu0 %v453
        %v653 = vpop.f32.mrf.mxu0
        %v654 = vadd.f32 0.0, %v653
        %v655 = vpop.f32.mrf.mxu0
        %656 = vmatprep.mubr.f32.mxu0 0.0
        %657 = vmatmul.mubr.f32.gmra.mxu0 %v455
        %v658 = vpop.f32.mrf.mxu0
        %v659 = vadd.f32 0.0, %v658
        %v660 = vpop.f32.mrf.mxu0
        %661 = vmatprep.mubr.f32.mxu0 0.0
        %662 = vmatmul.mubr.f32.gmra.mxu0 %v457
        %v663 = vpop.f32.mrf.mxu0
        %v664 = vadd.f32 0.0, %v663
        %v665 = vpop.f32.mrf.mxu0
        %666 = vmatprep.mubr.f32.mxu0 0.0
        %667 = vmatmul.mubr.f32.gmra.mxu0 %v459
        %v668 = vpop.f32.mrf.mxu0
        %v669 = vadd.f32 0.0, %v668
        %v670 = vpop.f32.mrf.mxu0
        %671 = vmatprep.mubr.f32.mxu0 0.0
        %672 = vmatmul.mubr.f32.gmra.mxu0 %v461
        %v673 = vpop.f32.mrf.mxu0
        %v674 = vadd.f32 0.0, %v673
        %v675 = vpop.f32.mrf.mxu0
        %676 = vmatprep.mubr.f32.mxu0 0.0
        %677 = vmatmul.mubr.f32.gmra.mxu0 %v463
        %v678 = vpop.f32.mrf.mxu0
        %v679 = vadd.f32 0.0, %v678
        %v680 = vpop.f32.mrf.mxu0
        %681 = vmatprep.mubr.f32.mxu0 0.0
        %682 = vmatmul.mubr.f32.gmra.mxu0 %v465
        %v683 = vpop.f32.mrf.mxu0
        %v684 = vadd.f32 0.0, %v683
        %v685 = vpop.f32.mrf.mxu0
        %686 = vmatprep.mubr.f32.mxu0 0.0
        %687 = vmatmul.mubr.f32.gmra.mxu0 %v467
        %v688 = vpop.f32.mrf.mxu0
        %v689 = vadd.f32 0.0, %v688
        %v690 = vpop.f32.mrf.mxu0
        %691 = vmatprep.mubr.f32.mxu0 0.0
        %692 = vmatmul.mubr.f32.gmra.mxu0 %v469
        %v693 = vpop.f32.mrf.mxu0
        %v694 = vadd.f32 0.0, %v693
        %v695 = vpop.f32.mrf.mxu0
        %696 = vmatprep.mubr.f32.mxu0 0.0
        %697 = vmatmul.mubr.f32.gmra.mxu0 %v471
        %v698 = vpop.f32.mrf.mxu0
        %v699 = vadd.f32 0.0, %v698
        %v700 = vpop.f32.mrf.mxu0
        %701 = vdwg.mxu0
        %v702 = vsel %vm408, %v222, 0
        %v704 = vsel %vm408, %v223, 0
        %v706 = vsel %vm408, %v225, 0
        %v708 = vsel %vm408, %v226, 0
        %v710 = vsel %vm408, %v228, 0
        %v712 = vsel %vm408, %v229, 0
        %v714 = vsel %vm408, %v231, 0
        %v716 = vsel %vm408, %v232, 0
        %v718 = vsel %vm408, %v234, 0
        %v720 = vsel %vm408, %v235, 0
        %v722 = vsel %vm408, %v237, 0
        %v724 = vsel %vm408, %v238, 0
        %v726 = vsel %vm408, %v240, 0
        %v728 = vsel %vm408, %v241, 0
        %v730 = vsel %vm408, %v243, 0
        %v732 = vsel %vm408, %v244, 0
        %v734 = vsel %vm408, %v246, 0
        %v736 = vsel %vm408, %v247, 0
        %v738 = vsel %vm408, %v249, 0
        %v740 = vsel %vm408, %v250, 0
        %v742 = vsel %vm408, %v252, 0
        %v744 = vsel %vm408, %v253, 0
        %v746 = vsel %vm408, %v255, 0
        %v748 = vsel %vm408, %v256, 0
        %v750 = vsel %vm408, %v258, 0
        %v752 = vsel %vm408, %v259, 0
        %v754 = vsel %vm408, %v261, 0
        %v756 = vsel %vm408, %v262, 0
        %v758 = vsel %vm408, %v264, 0
        %v760 = vsel %vm408, %v265, 0
        %v762 = vsel %vm408, %v267, 0
        %v764 = vsel %vm408, %v268, 0
        %v767 = vsel %vm473, %v276, 0
        %769 = vmatprep.subr.mxu0 0.0
        %770 = vmatpush1.msra.mxu0 0.0
        %771 = vmatprep.subr.mxu0 0.0
        %772 = vmatpush1.msra.mxu0 0.0
        %773 = vmatprep.subr.mxu0 0.0
        %774 = vmatpush1.msra.mxu0 0.0
        %775 = vmatprep.subr.mxu0 0.0
        %776 = vmatpush1.msra.mxu0 0.0
        %777 = vmatprep.subr.mxu0 0.0
        %778 = vmatpush1.msra.mxu0 0.0
        %779 = vmatprep.subr.mxu0 0.0
        %780 = vmatpush1.msra.mxu0 0.0
        %781 = vmatprep.subr.mxu0 0.0
        %782 = vmatpush1.msra.mxu0 0.0
        %783 = vmatprep.subr.mxu0 0.0
        %784 = vmatpush1.msra.mxu0 0.0
        %785 = vmatprep.subr.mxu0 0.0
        %786 = vmatpush1.msra.mxu0 0.0
        %787 = vmatprep.subr.mxu0 0.0
        %788 = vmatpush1.msra.mxu0 0.0
        %789 = vmatprep.subr.mxu0 0.0
        %790 = vmatpush1.msra.mxu0 0.0
        %791 = vmatprep.subr.mxu0 0.0
        %792 = vmatpush1.msra.mxu0 0.0
        %793 = vmatprep.subr.mxu0 0.0
        %794 = vmatpush1.msra.mxu0 0.0
        %795 = vmatprep.subr.mxu0 0.0
        %796 = vmatpush1.msra.mxu0 0.0
        %797 = vmatprep.subr.mxu0 0.0
        %798 = vmatpush1.msra.mxu0 0.0
        %799 = vmatprep.subr.mxu0 0.0
        %800 = vmatpush1.msra.mxu0 %v767
        %801 = vmatprep.subr.mxu0 0.0
        %802 = vmatpush2.msra.mxu0 0.0
        %803 = vmatprep.subr.mxu0 0.0
        %804 = vmatpush2.msra.mxu0 0.0
        %805 = vmatprep.subr.mxu0 0.0
        %806 = vmatpush2.msra.mxu0 0.0
        %807 = vmatprep.subr.mxu0 0.0
        %808 = vmatpush2.msra.mxu0 0.0
        %809 = vmatprep.subr.mxu0 0.0
        %810 = vmatpush2.msra.mxu0 0.0
        %811 = vmatprep.subr.mxu0 0.0
        %812 = vmatpush2.msra.mxu0 0.0
        %813 = vmatprep.subr.mxu0 0.0
        %814 = vmatpush2.msra.mxu0 0.0
        %815 = vmatprep.subr.mxu0 0.0
        %816 = vmatpush2.msra.mxu0 0.0
        %817 = vmatprep.subr.mxu0 0.0
        %818 = vmatpush2.msra.mxu0 0.0
        %819 = vmatprep.subr.mxu0 0.0
        %820 = vmatpush2.msra.mxu0 0.0
        %821 = vmatprep.subr.mxu0 0.0
        %822 = vmatpush2.msra.mxu0 0.0
        %823 = vmatprep.subr.mxu0 0.0
        %824 = vmatpush2.msra.mxu0 0.0
        %825 = vmatprep.subr.mxu0 0.0
        %826 = vmatpush2.msra.mxu0 0.0
        %827 = vmatprep.subr.mxu0 0.0
        %828 = vmatpush2.msra.mxu0 0.0
        %829 = vmatprep.subr.mxu0 0.0
        %830 = vmatpush2.msra.mxu0 0.0
        %831 = vmatprep.subr.mxu0 0.0
        %832 = vmatpush2.msra.mxu0 0.0
        %833 = vmatprep.mubr.f32.mxu0 0.0
        %834 = vmatmul.mubr.f32.gmra.mxu0 %v702
        %v835 = vpop.f32.mrf.mxu0
        %v836 = vadd.f32 %v544, %v835
        %v837 = vpop.f32.mrf.mxu0
        %838 = vmatprep.mubr.f32.mxu0 0.0
        %839 = vmatmul.mubr.f32.gmra.mxu0 %v704
        %v840 = vpop.f32.mrf.mxu0
        %v841 = vadd.f32 %v549, %v840
        %v842 = vpop.f32.mrf.mxu0
        %843 = vmatprep.mubr.f32.mxu0 0.0
        %844 = vmatmul.mubr.f32.gmra.mxu0 %v706
        %v845 = vpop.f32.mrf.mxu0
        %v846 = vadd.f32 %v554, %v845
        %v847 = vpop.f32.mrf.mxu0
        %848 = vmatprep.mubr.f32.mxu0 0.0
        %849 = vmatmul.mubr.f32.gmra.mxu0 %v708
        %v850 = vpop.f32.mrf.mxu0
        %v851 = vadd.f32 %v559, %v850
        %v852 = vpop.f32.mrf.mxu0
        %853 = vmatprep.mubr.f32.mxu0 0.0
        %854 = vmatmul.mubr.f32.gmra.mxu0 %v710
        %v855 = vpop.f32.mrf.mxu0
        %v856 = vadd.f32 %v564, %v855
        %v857 = vpop.f32.mrf.mxu0
        %858 = vmatprep.mubr.f32.mxu0 0.0
        %859 = vmatmul.mubr.f32.gmra.mxu0 %v712
        %v860 = vpop.f32.mrf.mxu0
        %v861 = vadd.f32 %v569, %v860
        %v862 = vpop.f32.mrf.mxu0
        %863 = vmatprep.mubr.f32.mxu0 0.0
        %864 = vmatmul.mubr.f32.gmra.mxu0 %v714
        %v865 = vpop.f32.mrf.mxu0
        %v866 = vadd.f32 %v574, %v865
        %v867 = vpop.f32.mrf.mxu0
        %868 = vmatprep.mubr.f32.mxu0 0.0
        %869 = vmatmul.mubr.f32.gmra.mxu0 %v716
        %v870 = vpop.f32.mrf.mxu0
        %v871 = vadd.f32 %v579, %v870
        %v872 = vpop.f32.mrf.mxu0
        %873 = vmatprep.mubr.f32.mxu0 0.0
        %874 = vmatmul.mubr.f32.gmra.mxu0 %v718
        %v875 = vpop.f32.mrf.mxu0
        %v876 = vadd.f32 %v584, %v875
        %v877 = vpop.f32.mrf.mxu0
        %878 = vmatprep.mubr.f32.mxu0 0.0
        %879 = vmatmul.mubr.f32.gmra.mxu0 %v720
        %v880 = vpop.f32.mrf.mxu0
        %v881 = vadd.f32 %v589, %v880
        %v882 = vpop.f32.mrf.mxu0
        %883 = vmatprep.mubr.f32.mxu0 0.0
        %884 = vmatmul.mubr.f32.gmra.mxu0 %v722
        %v885 = vpop.f32.mrf.mxu0
        %v886 = vadd.f32 %v594, %v885
        %v887 = vpop.f32.mrf.mxu0
        %888 = vmatprep.mubr.f32.mxu0 0.0
        %889 = vmatmul.mubr.f32.gmra.mxu0 %v724
        %v890 = vpop.f32.mrf.mxu0
        %v891 = vadd.f32 %v599, %v890
        %v892 = vpop.f32.mrf.mxu0
        %893 = vmatprep.mubr.f32.mxu0 0.0
        %894 = vmatmul.mubr.f32.gmra.mxu0 %v726
        %v895 = vpop.f32.mrf.mxu0
        %v896 = vadd.f32 %v604, %v895
        %v897 = vpop.f32.mrf.mxu0
        %898 = vmatprep.mubr.f32.mxu0 0.0
        %899 = vmatmul.mubr.f32.gmra.mxu0 %v728
        %v900 = vpop.f32.mrf.mxu0
        %v901 = vadd.f32 %v609, %v900
        %v902 = vpop.f32.mrf.mxu0
        %903 = vmatprep.mubr.f32.mxu0 0.0
        %904 = vmatmul.mubr.f32.gmra.mxu0 %v730
        %v905 = vpop.f32.mrf.mxu0
        %v906 = vadd.f32 %v614, %v905
        %v907 = vpop.f32.mrf.mxu0
        %908 = vmatprep.mubr.f32.mxu0 0.0
        %909 = vmatmul.mubr.f32.gmra.mxu0 %v732
        %v910 = vpop.f32.mrf.mxu0
        %v911 = vadd.f32 %v619, %v910
        %v912 = vpop.f32.mrf.mxu0
        %913 = vmatprep.mubr.f32.mxu0 0.0
        %914 = vmatmul.mubr.f32.gmra.mxu0 %v734
        %v915 = vpop.f32.mrf.mxu0
        %v916 = vadd.f32 %v624, %v915
        %v917 = vpop.f32.mrf.mxu0
        %918 = vmatprep.mubr.f32.mxu0 0.0
        %919 = vmatmul.mubr.f32.gmra.mxu0 %v736
        %v920 = vpop.f32.mrf.mxu0
        %v921 = vadd.f32 %v629, %v920
        %v922 = vpop.f32.mrf.mxu0
        %923 = vmatprep.mubr.f32.mxu0 0.0
        %924 = vmatmul.mubr.f32.gmra.mxu0 %v738
        %v925 = vpop.f32.mrf.mxu0
        %v926 = vadd.f32 %v634, %v925
        %v927 = vpop.f32.mrf.mxu0
        %928 = vmatprep.mubr.f32.mxu0 0.0
        %929 = vmatmul.mubr.f32.gmra.mxu0 %v740
        %v930 = vpop.f32.mrf.mxu0
        %v931 = vadd.f32 %v639, %v930
        %v932 = vpop.f32.mrf.mxu0
        %933 = vmatprep.mubr.f32.mxu0 0.0
        %934 = vmatmul.mubr.f32.gmra.mxu0 %v742
        %v935 = vpop.f32.mrf.mxu0
        %v936 = vadd.f32 %v644, %v935
        %v937 = vpop.f32.mrf.mxu0
        %938 = vmatprep.mubr.f32.mxu0 0.0
        %939 = vmatmul.mubr.f32.gmra.mxu0 %v744
        %v940 = vpop.f32.mrf.mxu0
        %v941 = vadd.f32 %v649, %v940
        %v942 = vpop.f32.mrf.mxu0
        %943 = vmatprep.mubr.f32.mxu0 0.0
        %944 = vmatmul.mubr.f32.gmra.mxu0 %v746
        %v945 = vpop.f32.mrf.mxu0
        %v946 = vadd.f32 %v654, %v945
        %v947 = vpop.f32.mrf.mxu0
        %948 = vmatprep.mubr.f32.mxu0 0.0
        %949 = vmatmul.mubr.f32.gmra.mxu0 %v748
        %v950 = vpop.f32.mrf.mxu0
        %v951 = vadd.f32 %v659, %v950
        %v952 = vpop.f32.mrf.mxu0
        %953 = vmatprep.mubr.f32.mxu0 0.0
        %954 = vmatmul.mubr.f32.gmra.mxu0 %v750
        %v955 = vpop.f32.mrf.mxu0
        %v956 = vadd.f32 %v664, %v955
        %v957 = vpop.f32.mrf.mxu0
        %958 = vmatprep.mubr.f32.mxu0 0.0
        %959 = vmatmul.mubr.f32.gmra.mxu0 %v752
        %v960 = vpop.f32.mrf.mxu0
        %v961 = vadd.f32 %v669, %v960
        %v962 = vpop.f32.mrf.mxu0
        %963 = vmatprep.mubr.f32.mxu0 0.0
        %964 = vmatmul.mubr.f32.gmra.mxu0 %v754
        %v965 = vpop.f32.mrf.mxu0
        %v966 = vadd.f32 %v674, %v965
        %v967 = vpop.f32.mrf.mxu0
        %968 = vmatprep.mubr.f32.mxu0 0.0
        %969 = vmatmul.mubr.f32.gmra.mxu0 %v756
        %v970 = vpop.f32.mrf.mxu0
        %v971 = vadd.f32 %v679, %v970
        %v972 = vpop.f32.mrf.mxu0
        %973 = vmatprep.mubr.f32.mxu0 0.0
        %974 = vmatmul.mubr.f32.gmra.mxu0 %v758
        %v975 = vpop.f32.mrf.mxu0
        %v976 = vadd.f32 %v684, %v975
        %v977 = vpop.f32.mrf.mxu0
        %978 = vmatprep.mubr.f32.mxu0 0.0
        %979 = vmatmul.mubr.f32.gmra.mxu0 %v760
        %v980 = vpop.f32.mrf.mxu0
        %v981 = vadd.f32 %v689, %v980
        %v982 = vpop.f32.mrf.mxu0
        %983 = vmatprep.mubr.f32.mxu0 0.0
        %984 = vmatmul.mubr.f32.gmra.mxu0 %v762
        %v985 = vpop.f32.mrf.mxu0
        %v986 = vadd.f32 %v694, %v985
        %v987 = vpop.f32.mrf.mxu0
        %988 = vmatprep.mubr.f32.mxu0 0.0
        %989 = vmatmul.mubr.f32.gmra.mxu0 %v764
        %v990 = vpop.f32.mrf.mxu0
        %v991 = vadd.f32 %v699, %v990
        %v992 = vpop.f32.mrf.mxu0
        %993 = vdwg.mxu0
        %vm994 = vcmask 1045504
        %v995 = vrot.slane %v222, 2
        %v996 = vrot.slane %v223, 2
        %v997 = vsel %vm994, %v995, %v996
        %v998 = vrot.slane %v224, 2
        %v999 = vsel %vm994, %v996, %v998
        %v1000 = vrot.slane %v225, 2
        %v1001 = vrot.slane %v226, 2
        %v1002 = vsel %vm994, %v1000, %v1001
        %v1003 = vrot.slane %v227, 2
        %v1004 = vsel %vm994, %v1001, %v1003
        %v1005 = vrot.slane %v228, 2
        %v1006 = vrot.slane %v229, 2
        %v1007 = vsel %vm994, %v1005, %v1006
        %v1008 = vrot.slane %v230, 2
        %v1009 = vsel %vm994, %v1006, %v1008
        %v1010 = vrot.slane %v231, 2
        %v1011 = vrot.slane %v232, 2
        %v1012 = vsel %vm994, %v1010, %v1011
        %v1013 = vrot.slane %v233, 2
        %v1014 = vsel %vm994, %v1011, %v1013
        %v1015 = vrot.slane %v234, 2
        %v1016 = vrot.slane %v235, 2
        %v1017 = vsel %vm994, %v1015, %v1016
        %v1018 = vrot.slane %v236, 2
        %v1019 = vsel %vm994, %v1016, %v1018
        %v1020 = vrot.slane %v237, 2
        %v1021 = vrot.slane %v238, 2
        %v1022 = vsel %vm994, %v1020, %v1021
        %v1023 = vrot.slane %v239, 2
        %v1024 = vsel %vm994, %v1021, %v1023
        %v1025 = vrot.slane %v240, 2
        %v1026 = vrot.slane %v241, 2
        %v1027 = vsel %vm994, %v1025, %v1026
        %v1028 = vrot.slane %v242, 2
        %v1029 = vsel %vm994, %v1026, %v1028
        %v1030 = vrot.slane %v243, 2
        %v1031 = vrot.slane %v244, 2
        %v1032 = vsel %vm994, %v1030, %v1031
        %v1033 = vrot.slane %v245, 2
        %v1034 = vsel %vm994, %v1031, %v1033
        %v1035 = vrot.slane %v246, 2
        %v1036 = vrot.slane %v247, 2
        %v1037 = vsel %vm994, %v1035, %v1036
        %v1038 = vrot.slane %v248, 2
        %v1039 = vsel %vm994, %v1036, %v1038
        %v1040 = vrot.slane %v249, 2
        %v1041 = vrot.slane %v250, 2
        %v1042 = vsel %vm994, %v1040, %v1041
        %v1043 = vrot.slane %v251, 2
        %v1044 = vsel %vm994, %v1041, %v1043
        %v1045 = vrot.slane %v252, 2
        %v1046 = vrot.slane %v253, 2
        %v1047 = vsel %vm994, %v1045, %v1046
        %v1048 = vrot.slane %v254, 2
        %v1049 = vsel %vm994, %v1046, %v1048
        %v1050 = vrot.slane %v255, 2
        %v1051 = vrot.slane %v256, 2
        %v1052 = vsel %vm994, %v1050, %v1051
        %v1053 = vrot.slane %v257, 2
        %v1054 = vsel %vm994, %v1051, %v1053
        %v1055 = vrot.slane %v258, 2
        %v1056 = vrot.slane %v259, 2
        %v1057 = vsel %vm994, %v1055, %v1056
        %v1058 = vrot.slane %v260, 2
        %v1059 = vsel %vm994, %v1056, %v1058
        %v1060 = vrot.slane %v261, 2
        %v1061 = vrot.slane %v262, 2
        %v1062 = vsel %vm994, %v1060, %v1061
        %v1063 = vrot.slane %v263, 2
        %v1064 = vsel %vm994, %v1061, %v1063
        %v1065 = vrot.slane %v264, 2
        %v1066 = vrot.slane %v265, 2
        %v1067 = vsel %vm994, %v1065, %v1066
        %v1068 = vrot.slane %v266, 2
        %v1069 = vsel %vm994, %v1066, %v1068
        %v1070 = vrot.slane %v267, 2
        %v1071 = vrot.slane %v268, 2
        %v1072 = vsel %vm994, %v1070, %v1071
        %v1073 = vrot.slane %v269, 2
        %v1074 = vsel %vm994, %v1071, %v1073
        %s1075 = scalar_lea.vmem %s1, 8
        %v1076 = vld [vmem:[%s1075] sm:$0xf]
        %v1077 = vsel %vm408, %v997, 0
        %v1079 = vsel %vm408, %v999, 0
        %v1081 = vsel %vm408, %v1002, 0
        %v1083 = vsel %vm408, %v1004, 0
        %v1085 = vsel %vm408, %v1007, 0
        %v1087 = vsel %vm408, %v1009, 0
        %v1089 = vsel %vm408, %v1012, 0
        %v1091 = vsel %vm408, %v1014, 0
        %v1093 = vsel %vm408, %v1017, 0
        %v1095 = vsel %vm408, %v1019, 0
        %v1097 = vsel %vm408, %v1022, 0
        %v1099 = vsel %vm408, %v1024, 0
        %v1101 = vsel %vm408, %v1027, 0
        %v1103 = vsel %vm408, %v1029, 0
        %v1105 = vsel %vm408, %v1032, 0
        %v1107 = vsel %vm408, %v1034, 0
        %v1109 = vsel %vm408, %v1037, 0
        %v1111 = vsel %vm408, %v1039, 0
        %v1113 = vsel %vm408, %v1042, 0
        %v1115 = vsel %vm408, %v1044, 0
        %v1117 = vsel %vm408, %v1047, 0
        %v1119 = vsel %vm408, %v1049, 0
        %v1121 = vsel %vm408, %v1052, 0
        %v1123 = vsel %vm408, %v1054, 0
        %v1125 = vsel %vm408, %v1057, 0
        %v1127 = vsel %vm408, %v1059, 0
        %v1129 = vsel %vm408, %v1062, 0
        %v1131 = vsel %vm408, %v1064, 0
        %v1133 = vsel %vm408, %v1067, 0
        %v1135 = vsel %vm408, %v1069, 0
        %v1137 = vsel %vm408, %v1072, 0
        %v1139 = vsel %vm408, %v1074, 0
        %v1142 = vsel %vm473, %v1076, 0
        %1144 = vmatprep.subr.mxu0 0.0
        %1145 = vmatpush1.msra.mxu0 0.0
        %1146 = vmatprep.subr.mxu0 0.0
        %1147 = vmatpush1.msra.mxu0 0.0
        %1148 = vmatprep.subr.mxu0 0.0
        %1149 = vmatpush1.msra.mxu0 0.0
        %1150 = vmatprep.subr.mxu0 0.0
        %1151 = vmatpush1.msra.mxu0 0.0
        %1152 = vmatprep.subr.mxu0 0.0
        %1153 = vmatpush1.msra.mxu0 0.0
        %1154 = vmatprep.subr.mxu0 0.0
        %1155 = vmatpush1.msra.mxu0 0.0
        %1156 = vmatprep.subr.mxu0 0.0
        %1157 = vmatpush1.msra.mxu0 0.0
        %1158 = vmatprep.subr.mxu0 0.0
        %1159 = vmatpush1.msra.mxu0 0.0
        %1160 = vmatprep.subr.mxu0 0.0
        %1161 = vmatpush1.msra.mxu0 0.0
        %1162 = vmatprep.subr.mxu0 0.0
        %1163 = vmatpush1.msra.mxu0 0.0
        %1164 = vmatprep.subr.mxu0 0.0
        %1165 = vmatpush1.msra.mxu0 0.0
        %1166 = vmatprep.subr.mxu0 0.0
        %1167 = vmatpush1.msra.mxu0 0.0
        %1168 = vmatprep.subr.mxu0 0.0
        %1169 = vmatpush1.msra.mxu0 0.0
        %1170 = vmatprep.subr.mxu0 0.0
        %1171 = vmatpush1.msra.mxu0 0.0
        %1172 = vmatprep.subr.mxu0 0.0
        %1173 = vmatpush1.msra.mxu0 0.0
        %1174 = vmatprep.subr.mxu0 0.0
        %1175 = vmatpush1.msra.mxu0 %v1142
        %1176 = vmatprep.subr.mxu0 0.0
        %1177 = vmatpush2.msra.mxu0 0.0
        %1178 = vmatprep.subr.mxu0 0.0
        %1179 = vmatpush2.msra.mxu0 0.0
        %1180 = vmatprep.subr.mxu0 0.0
        %1181 = vmatpush2.msra.mxu0 0.0
        %1182 = vmatprep.subr.mxu0 0.0
        %1183 = vmatpush2.msra.mxu0 0.0
        %1184 = vmatprep.subr.mxu0 0.0
        %1185 = vmatpush2.msra.mxu0 0.0
        %1186 = vmatprep.subr.mxu0 0.0
        %1187 = vmatpush2.msra.mxu0 0.0
        %1188 = vmatprep.subr.mxu0 0.0
        %1189 = vmatpush2.msra.mxu0 0.0
        %1190 = vmatprep.subr.mxu0 0.0
        %1191 = vmatpush2.msra.mxu0 0.0
        %1192 = vmatprep.subr.mxu0 0.0
        %1193 = vmatpush2.msra.mxu0 0.0
        %1194 = vmatprep.subr.mxu0 0.0
        %1195 = vmatpush2.msra.mxu0 0.0
        %1196 = vmatprep.subr.mxu0 0.0
        %1197 = vmatpush2.msra.mxu0 0.0
        %1198 = vmatprep.subr.mxu0 0.0
        %1199 = vmatpush2.msra.mxu0 0.0
        %1200 = vmatprep.subr.mxu0 0.0
        %1201 = vmatpush2.msra.mxu0 0.0
        %1202 = vmatprep.subr.mxu0 0.0
        %1203 = vmatpush2.msra.mxu0 0.0
        %1204 = vmatprep.subr.mxu0 0.0
        %1205 = vmatpush2.msra.mxu0 0.0
        %1206 = vmatprep.subr.mxu0 0.0
        %1207 = vmatpush2.msra.mxu0 0.0
        %1208 = vmatprep.mubr.f32.mxu0 0.0
        %1209 = vmatmul.mubr.f32.gmra.mxu0 %v1077
        %v1210 = vpop.f32.mrf.mxu0
        %v1211 = vadd.f32 0.0, %v1210
        %v1212 = vpop.f32.mrf.mxu0
        %1213 = vmatprep.mubr.f32.mxu0 0.0
        %1214 = vmatmul.mubr.f32.gmra.mxu0 %v1079
        %v1215 = vpop.f32.mrf.mxu0
        %v1216 = vadd.f32 0.0, %v1215
        %v1217 = vpop.f32.mrf.mxu0
        %1218 = vmatprep.mubr.f32.mxu0 0.0
        %1219 = vmatmul.mubr.f32.gmra.mxu0 %v1081
        %v1220 = vpop.f32.mrf.mxu0
        %v1221 = vadd.f32 0.0, %v1220
        %v1222 = vpop.f32.mrf.mxu0
        %1223 = vmatprep.mubr.f32.mxu0 0.0
        %1224 = vmatmul.mubr.f32.gmra.mxu0 %v1083
        %v1225 = vpop.f32.mrf.mxu0
        %v1226 = vadd.f32 0.0, %v1225
        %v1227 = vpop.f32.mrf.mxu0
        %1228 = vmatprep.mubr.f32.mxu0 0.0
        %1229 = vmatmul.mubr.f32.gmra.mxu0 %v1085
        %v1230 = vpop.f32.mrf.mxu0
        %v1231 = vadd.f32 0.0, %v1230
        %v1232 = vpop.f32.mrf.mxu0
        %1233 = vmatprep.mubr.f32.mxu0 0.0
        %1234 = vmatmul.mubr.f32.gmra.mxu0 %v1087
        %v1235 = vpop.f32.mrf.mxu0
        %v1236 = vadd.f32 0.0, %v1235
        %v1237 = vpop.f32.mrf.mxu0
        %1238 = vmatprep.mubr.f32.mxu0 0.0
        %1239 = vmatmul.mubr.f32.gmra.mxu0 %v1089
        %v1240 = vpop.f32.mrf.mxu0
        %v1241 = vadd.f32 0.0, %v1240
        %v1242 = vpop.f32.mrf.mxu0
        %1243 = vmatprep.mubr.f32.mxu0 0.0
        %1244 = vmatmul.mubr.f32.gmra.mxu0 %v1091
        %v1245 = vpop.f32.mrf.mxu0
        %v1246 = vadd.f32 0.0, %v1245
        %v1247 = vpop.f32.mrf.mxu0
        %1248 = vmatprep.mubr.f32.mxu0 0.0
        %1249 = vmatmul.mubr.f32.gmra.mxu0 %v1093
        %v1250 = vpop.f32.mrf.mxu0
        %v1251 = vadd.f32 0.0, %v1250
        %v1252 = vpop.f32.mrf.mxu0
        %1253 = vmatprep.mubr.f32.mxu0 0.0
        %1254 = vmatmul.mubr.f32.gmra.mxu0 %v1095
        %v1255 = vpop.f32.mrf.mxu0
        %v1256 = vadd.f32 0.0, %v1255
        %v1257 = vpop.f32.mrf.mxu0
        %1258 = vmatprep.mubr.f32.mxu0 0.0
        %1259 = vmatmul.mubr.f32.gmra.mxu0 %v1097
        %v1260 = vpop.f32.mrf.mxu0
        %v1261 = vadd.f32 0.0, %v1260
        %v1262 = vpop.f32.mrf.mxu0
        %1263 = vmatprep.mubr.f32.mxu0 0.0
        %1264 = vmatmul.mubr.f32.gmra.mxu0 %v1099
        %v1265 = vpop.f32.mrf.mxu0
        %v1266 = vadd.f32 0.0, %v1265
        %v1267 = vpop.f32.mrf.mxu0
        %1268 = vmatprep.mubr.f32.mxu0 0.0
        %1269 = vmatmul.mubr.f32.gmra.mxu0 %v1101
        %v1270 = vpop.f32.mrf.mxu0
        %v1271 = vadd.f32 0.0, %v1270
        %v1272 = vpop.f32.mrf.mxu0
        %1273 = vmatprep.mubr.f32.mxu0 0.0
        %1274 = vmatmul.mubr.f32.gmra.mxu0 %v1103
        %v1275 = vpop.f32.mrf.mxu0
        %v1276 = vadd.f32 0.0, %v1275
        %v1277 = vpop.f32.mrf.mxu0
        %1278 = vmatprep.mubr.f32.mxu0 0.0
        %1279 = vmatmul.mubr.f32.gmra.mxu0 %v1105
        %v1280 = vpop.f32.mrf.mxu0
        %v1281 = vadd.f32 0.0, %v1280
        %v1282 = vpop.f32.mrf.mxu0
        %1283 = vmatprep.mubr.f32.mxu0 0.0
        %1284 = vmatmul.mubr.f32.gmra.mxu0 %v1107
        %v1285 = vpop.f32.mrf.mxu0
        %v1286 = vadd.f32 0.0, %v1285
        %v1287 = vpop.f32.mrf.mxu0
        %1288 = vmatprep.mubr.f32.mxu0 0.0
        %1289 = vmatmul.mubr.f32.gmra.mxu0 %v1109
        %v1290 = vpop.f32.mrf.mxu0
        %v1291 = vadd.f32 0.0, %v1290
        %v1292 = vpop.f32.mrf.mxu0
        %1293 = vmatprep.mubr.f32.mxu0 0.0
        %1294 = vmatmul.mubr.f32.gmra.mxu0 %v1111
        %v1295 = vpop.f32.mrf.mxu0
        %v1296 = vadd.f32 0.0, %v1295
        %v1297 = vpop.f32.mrf.mxu0
        %1298 = vmatprep.mubr.f32.mxu0 0.0
        %1299 = vmatmul.mubr.f32.gmra.mxu0 %v1113
        %v1300 = vpop.f32.mrf.mxu0
        %v1301 = vadd.f32 0.0, %v1300
        %v1302 = vpop.f32.mrf.mxu0
        %1303 = vmatprep.mubr.f32.mxu0 0.0
        %1304 = vmatmul.mubr.f32.gmra.mxu0 %v1115
        %v1305 = vpop.f32.mrf.mxu0
        %v1306 = vadd.f32 0.0, %v1305
        %v1307 = vpop.f32.mrf.mxu0
        %1308 = vmatprep.mubr.f32.mxu0 0.0
        %1309 = vmatmul.mubr.f32.gmra.mxu0 %v1117
        %v1310 = vpop.f32.mrf.mxu0
        %v1311 = vadd.f32 0.0, %v1310
        %v1312 = vpop.f32.mrf.mxu0
        %1313 = vmatprep.mubr.f32.mxu0 0.0
        %1314 = vmatmul.mubr.f32.gmra.mxu0 %v1119
        %v1315 = vpop.f32.mrf.mxu0
        %v1316 = vadd.f32 0.0, %v1315
        %v1317 = vpop.f32.mrf.mxu0
        %1318 = vmatprep.mubr.f32.mxu0 0.0
        %1319 = vmatmul.mubr.f32.gmra.mxu0 %v1121
        %v1320 = vpop.f32.mrf.mxu0
        %v1321 = vadd.f32 0.0, %v1320
        %v1322 = vpop.f32.mrf.mxu0
        %1323 = vmatprep.mubr.f32.mxu0 0.0
        %1324 = vmatmul.mubr.f32.gmra.mxu0 %v1123
        %v1325 = vpop.f32.mrf.mxu0
        %v1326 = vadd.f32 0.0, %v1325
        %v1327 = vpop.f32.mrf.mxu0
        %1328 = vmatprep.mubr.f32.mxu0 0.0
        %1329 = vmatmul.mubr.f32.gmra.mxu0 %v1125
        %v1330 = vpop.f32.mrf.mxu0
        %v1331 = vadd.f32 0.0, %v1330
        %v1332 = vpop.f32.mrf.mxu0
        %1333 = vmatprep.mubr.f32.mxu0 0.0
        %1334 = vmatmul.mubr.f32.gmra.mxu0 %v1127
        %v1335 = vpop.f32.mrf.mxu0
        %v1336 = vadd.f32 0.0, %v1335
        %v1337 = vpop.f32.mrf.mxu0
        %1338 = vmatprep.mubr.f32.mxu0 0.0
        %1339 = vmatmul.mubr.f32.gmra.mxu0 %v1129
        %v1340 = vpop.f32.mrf.mxu0
        %v1341 = vadd.f32 0.0, %v1340
        %v1342 = vpop.f32.mrf.mxu0
        %1343 = vmatprep.mubr.f32.mxu0 0.0
        %1344 = vmatmul.mubr.f32.gmra.mxu0 %v1131
        %v1345 = vpop.f32.mrf.mxu0
        %v1346 = vadd.f32 0.0, %v1345
        %v1347 = vpop.f32.mrf.mxu0
        %1348 = vmatprep.mubr.f32.mxu0 0.0
        %1349 = vmatmul.mubr.f32.gmra.mxu0 %v1133
        %v1350 = vpop.f32.mrf.mxu0
        %v1351 = vadd.f32 0.0, %v1350
        %v1352 = vpop.f32.mrf.mxu0
        %1353 = vmatprep.mubr.f32.mxu0 0.0
        %1354 = vmatmul.mubr.f32.gmra.mxu0 %v1135
        %v1355 = vpop.f32.mrf.mxu0
        %v1356 = vadd.f32 0.0, %v1355
        %v1357 = vpop.f32.mrf.mxu0
        %1358 = vmatprep.mubr.f32.mxu0 0.0
        %1359 = vmatmul.mubr.f32.gmra.mxu0 %v1137
        %v1360 = vpop.f32.mrf.mxu0
        %v1361 = vadd.f32 0.0, %v1360
        %v1362 = vpop.f32.mrf.mxu0
        %1363 = vmatprep.mubr.f32.mxu0 0.0
        %1364 = vmatmul.mubr.f32.gmra.mxu0 %v1139
        %v1365 = vpop.f32.mrf.mxu0
        %v1366 = vadd.f32 0.0, %v1365
        %v1367 = vpop.f32.mrf.mxu0
        %1368 = vdwg.mxu0
        %v1369 = vadd.f32 %v836, %v1211
        %v1370 = vadd.f32 %v841, %v1216
        %v1371 = vadd.f32 %v846, %v1221
        %v1372 = vadd.f32 %v851, %v1226
        %v1373 = vadd.f32 %v856, %v1231
        %v1374 = vadd.f32 %v861, %v1236
        %v1375 = vadd.f32 %v866, %v1241
        %v1376 = vadd.f32 %v871, %v1246
        %v1377 = vadd.f32 %v876, %v1251
        %v1378 = vadd.f32 %v881, %v1256
        %v1379 = vadd.f32 %v886, %v1261
        %v1380 = vadd.f32 %v891, %v1266
        %v1381 = vadd.f32 %v896, %v1271
        %v1382 = vadd.f32 %v901, %v1276
        %v1383 = vadd.f32 %v906, %v1281
        %v1384 = vadd.f32 %v911, %v1286
        %v1385 = vadd.f32 %v916, %v1291
        %v1386 = vadd.f32 %v921, %v1296
        %v1387 = vadd.f32 %v926, %v1301
        %v1388 = vadd.f32 %v931, %v1306
        %v1389 = vadd.f32 %v936, %v1311
        %v1390 = vadd.f32 %v941, %v1316
        %v1391 = vadd.f32 %v946, %v1321
        %v1392 = vadd.f32 %v951, %v1326
        %v1393 = vadd.f32 %v956, %v1331
        %v1394 = vadd.f32 %v961, %v1336
        %v1395 = vadd.f32 %v966, %v1341
        %v1396 = vadd.f32 %v971, %v1346
        %v1397 = vadd.f32 %v976, %v1351
        %v1398 = vadd.f32 %v981, %v1356
        %v1399 = vadd.f32 %v986, %v1361
        %v1400 = vadd.f32 %v991, %v1366
        %s1401 = scalar_lea.vmem %s1, 12
        %v1402 = vld [vmem:[%s1401] sm:$0xf]
        %v1404 = vsel %vm408, %v270, 0
        %v1407 = vsel %vm408, %v271, 0
        %v1410 = vsel %vm473, %v1402, 0
        %1412 = vmatprep.subr.mxu0 0.0
        %1413 = vmatpush1.msra.mxu0 0.0
        %1414 = vmatprep.subr.mxu0 0.0
        %1415 = vmatpush1.msra.mxu0 0.0
        %1416 = vmatprep.subr.mxu0 0.0
        %1417 = vmatpush1.msra.mxu0 0.0
        %1418 = vmatprep.subr.mxu0 0.0
        %1419 = vmatpush1.msra.mxu0 0.0
        %1420 = vmatprep.subr.mxu0 0.0
        %1421 = vmatpush1.msra.mxu0 0.0
        %1422 = vmatprep.subr.mxu0 0.0
        %1423 = vmatpush1.msra.mxu0 0.0
        %1424 = vmatprep.subr.mxu0 0.0
        %1425 = vmatpush1.msra.mxu0 0.0
        %1426 = vmatprep.subr.mxu0 0.0
        %1427 = vmatpush1.msra.mxu0 0.0
        %1428 = vmatprep.subr.mxu0 0.0
        %1429 = vmatpush1.msra.mxu0 0.0
        %1430 = vmatprep.subr.mxu0 0.0
        %1431 = vmatpush1.msra.mxu0 0.0
        %1432 = vmatprep.subr.mxu0 0.0
        %1433 = vmatpush1.msra.mxu0 0.0
        %1434 = vmatprep.subr.mxu0 0.0
        %1435 = vmatpush1.msra.mxu0 0.0
        %1436 = vmatprep.subr.mxu0 0.0
        %1437 = vmatpush1.msra.mxu0 0.0
        %1438 = vmatprep.subr.mxu0 0.0
        %1439 = vmatpush1.msra.mxu0 0.0
        %1440 = vmatprep.subr.mxu0 0.0
        %1441 = vmatpush1.msra.mxu0 0.0
        %1442 = vmatprep.subr.mxu0 0.0
        %1443 = vmatpush1.msra.mxu0 %v1410
        %1444 = vmatprep.subr.mxu0 0.0
        %1445 = vmatpush2.msra.mxu0 0.0
        %1446 = vmatprep.subr.mxu0 0.0
        %1447 = vmatpush2.msra.mxu0 0.0
        %1448 = vmatprep.subr.mxu0 0.0
        %1449 = vmatpush2.msra.mxu0 0.0
        %1450 = vmatprep.subr.mxu0 0.0
        %1451 = vmatpush2.msra.mxu0 0.0
        %1452 = vmatprep.subr.mxu0 0.0
        %1453 = vmatpush2.msra.mxu0 0.0
        %1454 = vmatprep.subr.mxu0 0.0
        %1455 = vmatpush2.msra.mxu0 0.0
        %1456 = vmatprep.subr.mxu0 0.0
        %1457 = vmatpush2.msra.mxu0 0.0
        %1458 = vmatprep.subr.mxu0 0.0
        %1459 = vmatpush2.msra.mxu0 0.0
        %1460 = vmatprep.subr.mxu0 0.0
        %1461 = vmatpush2.msra.mxu0 0.0
        %1462 = vmatprep.subr.mxu0 0.0
        %1463 = vmatpush2.msra.mxu0 0.0
        %1464 = vmatprep.subr.mxu0 0.0
        %1465 = vmatpush2.msra.mxu0 0.0
        %1466 = vmatprep.subr.mxu0 0.0
        %1467 = vmatpush2.msra.mxu0 0.0
        %1468 = vmatprep.subr.mxu0 0.0
        %1469 = vmatpush2.msra.mxu0 0.0
        %1470 = vmatprep.subr.mxu0 0.0
        %1471 = vmatpush2.msra.mxu0 0.0
        %1472 = vmatprep.subr.mxu0 0.0
        %1473 = vmatpush2.msra.mxu0 0.0
        %1474 = vmatprep.subr.mxu0 0.0
        %1475 = vmatpush2.msra.mxu0 0.0
        %1476 = vmatprep.mubr.f32.mxu0 0.0
        %1477 = vmatmul.mubr.f32.gmra.mxu0 %v706
        %v1478 = vpop.f32.mrf.mxu0
        %v1479 = vadd.f32 0.0, %v1478
        %v1480 = vpop.f32.mrf.mxu0
        %1481 = vmatprep.mubr.f32.mxu0 0.0
        %1482 = vmatmul.mubr.f32.gmra.mxu0 %v708
        %v1483 = vpop.f32.mrf.mxu0
        %v1484 = vadd.f32 0.0, %v1483
        %v1485 = vpop.f32.mrf.mxu0
        %1486 = vmatprep.mubr.f32.mxu0 0.0
        %1487 = vmatmul.mubr.f32.gmra.mxu0 %v710
        %v1488 = vpop.f32.mrf.mxu0
        %v1489 = vadd.f32 0.0, %v1488
        %v1490 = vpop.f32.mrf.mxu0
        %1491 = vmatprep.mubr.f32.mxu0 0.0
        %1492 = vmatmul.mubr.f32.gmra.mxu0 %v712
        %v1493 = vpop.f32.mrf.mxu0
        %v1494 = vadd.f32 0.0, %v1493
        %v1495 = vpop.f32.mrf.mxu0
        %1496 = vmatprep.mubr.f32.mxu0 0.0
        %1497 = vmatmul.mubr.f32.gmra.mxu0 %v714
        %v1498 = vpop.f32.mrf.mxu0
        %v1499 = vadd.f32 0.0, %v1498
        %v1500 = vpop.f32.mrf.mxu0
        %1501 = vmatprep.mubr.f32.mxu0 0.0
        %1502 = vmatmul.mubr.f32.gmra.mxu0 %v716
        %v1503 = vpop.f32.mrf.mxu0
        %v1504 = vadd.f32 0.0, %v1503
        %v1505 = vpop.f32.mrf.mxu0
        %1506 = vmatprep.mubr.f32.mxu0 0.0
        %1507 = vmatmul.mubr.f32.gmra.mxu0 %v718
        %v1508 = vpop.f32.mrf.mxu0
        %v1509 = vadd.f32 0.0, %v1508
        %v1510 = vpop.f32.mrf.mxu0
        %1511 = vmatprep.mubr.f32.mxu0 0.0
        %1512 = vmatmul.mubr.f32.gmra.mxu0 %v720
        %v1513 = vpop.f32.mrf.mxu0
        %v1514 = vadd.f32 0.0, %v1513
        %v1515 = vpop.f32.mrf.mxu0
        %1516 = vmatprep.mubr.f32.mxu0 0.0
        %1517 = vmatmul.mubr.f32.gmra.mxu0 %v722
        %v1518 = vpop.f32.mrf.mxu0
        %v1519 = vadd.f32 0.0, %v1518
        %v1520 = vpop.f32.mrf.mxu0
        %1521 = vmatprep.mubr.f32.mxu0 0.0
        %1522 = vmatmul.mubr.f32.gmra.mxu0 %v724
        %v1523 = vpop.f32.mrf.mxu0
        %v1524 = vadd.f32 0.0, %v1523
        %v1525 = vpop.f32.mrf.mxu0
        %1526 = vmatprep.mubr.f32.mxu0 0.0
        %1527 = vmatmul.mubr.f32.gmra.mxu0 %v726
        %v1528 = vpop.f32.mrf.mxu0
        %v1529 = vadd.f32 0.0, %v1528
        %v1530 = vpop.f32.mrf.mxu0
        %1531 = vmatprep.mubr.f32.mxu0 0.0
        %1532 = vmatmul.mubr.f32.gmra.mxu0 %v728
        %v1533 = vpop.f32.mrf.mxu0
        %v1534 = vadd.f32 0.0, %v1533
        %v1535 = vpop.f32.mrf.mxu0
        %1536 = vmatprep.mubr.f32.mxu0 0.0
        %1537 = vmatmul.mubr.f32.gmra.mxu0 %v730
        %v1538 = vpop.f32.mrf.mxu0
        %v1539 = vadd.f32 0.0, %v1538
        %v1540 = vpop.f32.mrf.mxu0
        %1541 = vmatprep.mubr.f32.mxu0 0.0
        %1542 = vmatmul.mubr.f32.gmra.mxu0 %v732
        %v1543 = vpop.f32.mrf.mxu0
        %v1544 = vadd.f32 0.0, %v1543
        %v1545 = vpop.f32.mrf.mxu0
        %1546 = vmatprep.mubr.f32.mxu0 0.0
        %1547 = vmatmul.mubr.f32.gmra.mxu0 %v734
        %v1548 = vpop.f32.mrf.mxu0
        %v1549 = vadd.f32 0.0, %v1548
        %v1550 = vpop.f32.mrf.mxu0
        %1551 = vmatprep.mubr.f32.mxu0 0.0
        %1552 = vmatmul.mubr.f32.gmra.mxu0 %v736
        %v1553 = vpop.f32.mrf.mxu0
        %v1554 = vadd.f32 0.0, %v1553
        %v1555 = vpop.f32.mrf.mxu0
        %1556 = vmatprep.mubr.f32.mxu0 0.0
        %1557 = vmatmul.mubr.f32.gmra.mxu0 %v738
        %v1558 = vpop.f32.mrf.mxu0
        %v1559 = vadd.f32 0.0, %v1558
        %v1560 = vpop.f32.mrf.mxu0
        %1561 = vmatprep.mubr.f32.mxu0 0.0
        %1562 = vmatmul.mubr.f32.gmra.mxu0 %v740
        %v1563 = vpop.f32.mrf.mxu0
        %v1564 = vadd.f32 0.0, %v1563
        %v1565 = vpop.f32.mrf.mxu0
        %1566 = vmatprep.mubr.f32.mxu0 0.0
        %1567 = vmatmul.mubr.f32.gmra.mxu0 %v742
        %v1568 = vpop.f32.mrf.mxu0
        %v1569 = vadd.f32 0.0, %v1568
        %v1570 = vpop.f32.mrf.mxu0
        %1571 = vmatprep.mubr.f32.mxu0 0.0
        %1572 = vmatmul.mubr.f32.gmra.mxu0 %v744
        %v1573 = vpop.f32.mrf.mxu0
        %v1574 = vadd.f32 0.0, %v1573
        %v1575 = vpop.f32.mrf.mxu0
        %1576 = vmatprep.mubr.f32.mxu0 0.0
        %1577 = vmatmul.mubr.f32.gmra.mxu0 %v746
        %v1578 = vpop.f32.mrf.mxu0
        %v1579 = vadd.f32 0.0, %v1578
        %v1580 = vpop.f32.mrf.mxu0
        %1581 = vmatprep.mubr.f32.mxu0 0.0
        %1582 = vmatmul.mubr.f32.gmra.mxu0 %v748
        %v1583 = vpop.f32.mrf.mxu0
        %v1584 = vadd.f32 0.0, %v1583
        %v1585 = vpop.f32.mrf.mxu0
        %1586 = vmatprep.mubr.f32.mxu0 0.0
        %1587 = vmatmul.mubr.f32.gmra.mxu0 %v750
        %v1588 = vpop.f32.mrf.mxu0
        %v1589 = vadd.f32 0.0, %v1588
        %v1590 = vpop.f32.mrf.mxu0
        %1591 = vmatprep.mubr.f32.mxu0 0.0
        %1592 = vmatmul.mubr.f32.gmra.mxu0 %v752
        %v1593 = vpop.f32.mrf.mxu0
        %v1594 = vadd.f32 0.0, %v1593
        %v1595 = vpop.f32.mrf.mxu0
        %1596 = vmatprep.mubr.f32.mxu0 0.0
        %1597 = vmatmul.mubr.f32.gmra.mxu0 %v754
        %v1598 = vpop.f32.mrf.mxu0
        %v1599 = vadd.f32 0.0, %v1598
        %v1600 = vpop.f32.mrf.mxu0
        %1601 = vmatprep.mubr.f32.mxu0 0.0
        %1602 = vmatmul.mubr.f32.gmra.mxu0 %v756
        %v1603 = vpop.f32.mrf.mxu0
        %v1604 = vadd.f32 0.0, %v1603
        %v1605 = vpop.f32.mrf.mxu0
        %1606 = vmatprep.mubr.f32.mxu0 0.0
        %1607 = vmatmul.mubr.f32.gmra.mxu0 %v758
        %v1608 = vpop.f32.mrf.mxu0
        %v1609 = vadd.f32 0.0, %v1608
        %v1610 = vpop.f32.mrf.mxu0
        %1611 = vmatprep.mubr.f32.mxu0 0.0
        %1612 = vmatmul.mubr.f32.gmra.mxu0 %v760
        %v1613 = vpop.f32.mrf.mxu0
        %v1614 = vadd.f32 0.0, %v1613
        %v1615 = vpop.f32.mrf.mxu0
        %1616 = vmatprep.mubr.f32.mxu0 0.0
        %1617 = vmatmul.mubr.f32.gmra.mxu0 %v762
        %v1618 = vpop.f32.mrf.mxu0
        %v1619 = vadd.f32 0.0, %v1618
        %v1620 = vpop.f32.mrf.mxu0
        %1621 = vmatprep.mubr.f32.mxu0 0.0
        %1622 = vmatmul.mubr.f32.gmra.mxu0 %v764
        %v1623 = vpop.f32.mrf.mxu0
        %v1624 = vadd.f32 0.0, %v1623
        %v1625 = vpop.f32.mrf.mxu0
        %1626 = vmatprep.mubr.f32.mxu0 0.0
        %1627 = vmatmul.mubr.f32.gmra.mxu0 %v1404
        %v1628 = vpop.f32.mrf.mxu0
        %v1629 = vadd.f32 0.0, %v1628
        %v1630 = vpop.f32.mrf.mxu0
        %1631 = vmatprep.mubr.f32.mxu0 0.0
        %1632 = vmatmul.mubr.f32.gmra.mxu0 %v1407
        %v1633 = vpop.f32.mrf.mxu0
        %v1634 = vadd.f32 0.0, %v1633
        %v1635 = vpop.f32.mrf.mxu0
        %1636 = vdwg.mxu0
        %v1637 = vadd.f32 %v1369, %v1479
        %v1638 = vadd.f32 %v1370, %v1484
        %v1639 = vadd.f32 %v1371, %v1489
        %v1640 = vadd.f32 %v1372, %v1494
        %v1641 = vadd.f32 %v1373, %v1499
        %v1642 = vadd.f32 %v1374, %v1504
        %v1643 = vadd.f32 %v1375, %v1509
        %v1644 = vadd.f32 %v1376, %v1514
        %v1645 = vadd.f32 %v1377, %v1519
        %v1646 = vadd.f32 %v1378, %v1524
        %v1647 = vadd.f32 %v1379, %v1529
        %v1648 = vadd.f32 %v1380, %v1534
        %v1649 = vadd.f32 %v1381, %v1539
        %v1650 = vadd.f32 %v1382, %v1544
        %v1651 = vadd.f32 %v1383, %v1549
        %v1652 = vadd.f32 %v1384, %v1554
        %v1653 = vadd.f32 %v1385, %v1559
        %v1654 = vadd.f32 %v1386, %v1564
        %v1655 = vadd.f32 %v1387, %v1569
        %v1656 = vadd.f32 %v1388, %v1574
        %v1657 = vadd.f32 %v1389, %v1579
        %v1658 = vadd.f32 %v1390, %v1584
        %v1659 = vadd.f32 %v1391, %v1589
        %v1660 = vadd.f32 %v1392, %v1594
        %v1661 = vadd.f32 %v1393, %v1599
        %v1662 = vadd.f32 %v1394, %v1604
        %v1663 = vadd.f32 %v1395, %v1609
        %v1664 = vadd.f32 %v1396, %v1614
        %v1665 = vadd.f32 %v1397, %v1619
        %v1666 = vadd.f32 %v1398, %v1624
        %v1667 = vadd.f32 %v1399, %v1629
        %v1668 = vadd.f32 %v1400, %v1634
        %v1670 = vrot.slane %v270, 1
        %v1671 = vrot.slane %v271, 1
        %v1672 = vsel %vm325, %v1670, %v1671
        %v1673 = vrot.slane %v272, 1
        %v1674 = vsel %vm325, %v1671, %v1673
        %s1675 = scalar_lea.vmem %s1, 16
        %v1676 = vld [vmem:[%s1675] sm:$0xf]
        %v1677 = vsel %vm408, %v1672, 0
        %v1679 = vsel %vm408, %v1674, 0
        %v1682 = vsel %vm473, %v1676, 0
        %1684 = vmatprep.subr.mxu0 0.0
        %1685 = vmatpush1.msra.mxu0 0.0
        %1686 = vmatprep.subr.mxu0 0.0
        %1687 = vmatpush1.msra.mxu0 0.0
        %1688 = vmatprep.subr.mxu0 0.0
        %1689 = vmatpush1.msra.mxu0 0.0
        %1690 = vmatprep.subr.mxu0 0.0
        %1691 = vmatpush1.msra.mxu0 0.0
        %1692 = vmatprep.subr.mxu0 0.0
        %1693 = vmatpush1.msra.mxu0 0.0
        %1694 = vmatprep.subr.mxu0 0.0
        %1695 = vmatpush1.msra.mxu0 0.0
        %1696 = vmatprep.subr.mxu0 0.0
        %1697 = vmatpush1.msra.mxu0 0.0
        %1698 = vmatprep.subr.mxu0 0.0
        %1699 = vmatpush1.msra.mxu0 0.0
        %1700 = vmatprep.subr.mxu0 0.0
        %1701 = vmatpush1.msra.mxu0 0.0
        %1702 = vmatprep.subr.mxu0 0.0
        %1703 = vmatpush1.msra.mxu0 0.0
        %1704 = vmatprep.subr.mxu0 0.0
        %1705 = vmatpush1.msra.mxu0 0.0
        %1706 = vmatprep.subr.mxu0 0.0
        %1707 = vmatpush1.msra.mxu0 0.0
        %1708 = vmatprep.subr.mxu0 0.0
        %1709 = vmatpush1.msra.mxu0 0.0
        %1710 = vmatprep.subr.mxu0 0.0
        %1711 = vmatpush1.msra.mxu0 0.0
        %1712 = vmatprep.subr.mxu0 0.0
        %1713 = vmatpush1.msra.mxu0 0.0
        %1714 = vmatprep.subr.mxu0 0.0
        %1715 = vmatpush1.msra.mxu0 %v1682
        %1716 = vmatprep.subr.mxu0 0.0
        %1717 = vmatpush2.msra.mxu0 0.0
        %1718 = vmatprep.subr.mxu0 0.0
        %1719 = vmatpush2.msra.mxu0 0.0
        %1720 = vmatprep.subr.mxu0 0.0
        %1721 = vmatpush2.msra.mxu0 0.0
        %1722 = vmatprep.subr.mxu0 0.0
        %1723 = vmatpush2.msra.mxu0 0.0
        %1724 = vmatprep.subr.mxu0 0.0
        %1725 = vmatpush2.msra.mxu0 0.0
        %1726 = vmatprep.subr.mxu0 0.0
        %1727 = vmatpush2.msra.mxu0 0.0
        %1728 = vmatprep.subr.mxu0 0.0
        %1729 = vmatpush2.msra.mxu0 0.0
        %1730 = vmatprep.subr.mxu0 0.0
        %1731 = vmatpush2.msra.mxu0 0.0
        %1732 = vmatprep.subr.mxu0 0.0
        %1733 = vmatpush2.msra.mxu0 0.0
        %1734 = vmatprep.subr.mxu0 0.0
        %1735 = vmatpush2.msra.mxu0 0.0
        %1736 = vmatprep.subr.mxu0 0.0
        %1737 = vmatpush2.msra.mxu0 0.0
        %1738 = vmatprep.subr.mxu0 0.0
        %1739 = vmatpush2.msra.mxu0 0.0
        %1740 = vmatprep.subr.mxu0 0.0
        %1741 = vmatpush2.msra.mxu0 0.0
        %1742 = vmatprep.subr.mxu0 0.0
        %1743 = vmatpush2.msra.mxu0 0.0
        %1744 = vmatprep.subr.mxu0 0.0
        %1745 = vmatpush2.msra.mxu0 0.0
        %1746 = vmatprep.subr.mxu0 0.0
        %1747 = vmatpush2.msra.mxu0 0.0
        %1748 = vmatprep.mubr.f32.mxu0 0.0
        %1749 = vmatmul.mubr.f32.gmra.mxu0 %v413
        %v1750 = vpop.f32.mrf.mxu0
        %v1751 = vadd.f32 0.0, %v1750
        %v1752 = vpop.f32.mrf.mxu0
        %1753 = vmatprep.mubr.f32.mxu0 0.0
        %1754 = vmatmul.mubr.f32.gmra.mxu0 %v415
        %v1755 = vpop.f32.mrf.mxu0
        %v1756 = vadd.f32 0.0, %v1755
        %v1757 = vpop.f32.mrf.mxu0
        %1758 = vmatprep.mubr.f32.mxu0 0.0
        %1759 = vmatmul.mubr.f32.gmra.mxu0 %v417
        %v1760 = vpop.f32.mrf.mxu0
        %v1761 = vadd.f32 0.0, %v1760
        %v1762 = vpop.f32.mrf.mxu0
        %1763 = vmatprep.mubr.f32.mxu0 0.0
        %1764 = vmatmul.mubr.f32.gmra.mxu0 %v419
        %v1765 = vpop.f32.mrf.mxu0
        %v1766 = vadd.f32 0.0, %v1765
        %v1767 = vpop.f32.mrf.mxu0
        %1768 = vmatprep.mubr.f32.mxu0 0.0
        %1769 = vmatmul.mubr.f32.gmra.mxu0 %v421
        %v1770 = vpop.f32.mrf.mxu0
        %v1771 = vadd.f32 0.0, %v1770
        %v1772 = vpop.f32.mrf.mxu0
        %1773 = vmatprep.mubr.f32.mxu0 0.0
        %1774 = vmatmul.mubr.f32.gmra.mxu0 %v423
        %v1775 = vpop.f32.mrf.mxu0
        %v1776 = vadd.f32 0.0, %v1775
        %v1777 = vpop.f32.mrf.mxu0
        %1778 = vmatprep.mubr.f32.mxu0 0.0
        %1779 = vmatmul.mubr.f32.gmra.mxu0 %v425
        %v1780 = vpop.f32.mrf.mxu0
        %v1781 = vadd.f32 0.0, %v1780
        %v1782 = vpop.f32.mrf.mxu0
        %1783 = vmatprep.mubr.f32.mxu0 0.0
        %1784 = vmatmul.mubr.f32.gmra.mxu0 %v427
        %v1785 = vpop.f32.mrf.mxu0
        %v1786 = vadd.f32 0.0, %v1785
        %v1787 = vpop.f32.mrf.mxu0
        %1788 = vmatprep.mubr.f32.mxu0 0.0
        %1789 = vmatmul.mubr.f32.gmra.mxu0 %v429
        %v1790 = vpop.f32.mrf.mxu0
        %v1791 = vadd.f32 0.0, %v1790
        %v1792 = vpop.f32.mrf.mxu0
        %1793 = vmatprep.mubr.f32.mxu0 0.0
        %1794 = vmatmul.mubr.f32.gmra.mxu0 %v431
        %v1795 = vpop.f32.mrf.mxu0
        %v1796 = vadd.f32 0.0, %v1795
        %v1797 = vpop.f32.mrf.mxu0
        %1798 = vmatprep.mubr.f32.mxu0 0.0
        %1799 = vmatmul.mubr.f32.gmra.mxu0 %v433
        %v1800 = vpop.f32.mrf.mxu0
        %v1801 = vadd.f32 0.0, %v1800
        %v1802 = vpop.f32.mrf.mxu0
        %1803 = vmatprep.mubr.f32.mxu0 0.0
        %1804 = vmatmul.mubr.f32.gmra.mxu0 %v435
        %v1805 = vpop.f32.mrf.mxu0
        %v1806 = vadd.f32 0.0, %v1805
        %v1807 = vpop.f32.mrf.mxu0
        %1808 = vmatprep.mubr.f32.mxu0 0.0
        %1809 = vmatmul.mubr.f32.gmra.mxu0 %v437
        %v1810 = vpop.f32.mrf.mxu0
        %v1811 = vadd.f32 0.0, %v1810
        %v1812 = vpop.f32.mrf.mxu0
        %1813 = vmatprep.mubr.f32.mxu0 0.0
        %1814 = vmatmul.mubr.f32.gmra.mxu0 %v439
        %v1815 = vpop.f32.mrf.mxu0
        %v1816 = vadd.f32 0.0, %v1815
        %v1817 = vpop.f32.mrf.mxu0
        %1818 = vmatprep.mubr.f32.mxu0 0.0
        %1819 = vmatmul.mubr.f32.gmra.mxu0 %v441
        %v1820 = vpop.f32.mrf.mxu0
        %v1821 = vadd.f32 0.0, %v1820
        %v1822 = vpop.f32.mrf.mxu0
        %1823 = vmatprep.mubr.f32.mxu0 0.0
        %1824 = vmatmul.mubr.f32.gmra.mxu0 %v443
        %v1825 = vpop.f32.mrf.mxu0
        %v1826 = vadd.f32 0.0, %v1825
        %v1827 = vpop.f32.mrf.mxu0
        %1828 = vmatprep.mubr.f32.mxu0 0.0
        %1829 = vmatmul.mubr.f32.gmra.mxu0 %v445
        %v1830 = vpop.f32.mrf.mxu0
        %v1831 = vadd.f32 0.0, %v1830
        %v1832 = vpop.f32.mrf.mxu0
        %1833 = vmatprep.mubr.f32.mxu0 0.0
        %1834 = vmatmul.mubr.f32.gmra.mxu0 %v447
        %v1835 = vpop.f32.mrf.mxu0
        %v1836 = vadd.f32 0.0, %v1835
        %v1837 = vpop.f32.mrf.mxu0
        %1838 = vmatprep.mubr.f32.mxu0 0.0
        %1839 = vmatmul.mubr.f32.gmra.mxu0 %v449
        %v1840 = vpop.f32.mrf.mxu0
        %v1841 = vadd.f32 0.0, %v1840
        %v1842 = vpop.f32.mrf.mxu0
        %1843 = vmatprep.mubr.f32.mxu0 0.0
        %1844 = vmatmul.mubr.f32.gmra.mxu0 %v451
        %v1845 = vpop.f32.mrf.mxu0
        %v1846 = vadd.f32 0.0, %v1845
        %v1847 = vpop.f32.mrf.mxu0
        %1848 = vmatprep.mubr.f32.mxu0 0.0
        %1849 = vmatmul.mubr.f32.gmra.mxu0 %v453
        %v1850 = vpop.f32.mrf.mxu0
        %v1851 = vadd.f32 0.0, %v1850
        %v1852 = vpop.f32.mrf.mxu0
        %1853 = vmatprep.mubr.f32.mxu0 0.0
        %1854 = vmatmul.mubr.f32.gmra.mxu0 %v455
        %v1855 = vpop.f32.mrf.mxu0
        %v1856 = vadd.f32 0.0, %v1855
        %v1857 = vpop.f32.mrf.mxu0
        %1858 = vmatprep.mubr.f32.mxu0 0.0
        %1859 = vmatmul.mubr.f32.gmra.mxu0 %v457
        %v1860 = vpop.f32.mrf.mxu0
        %v1861 = vadd.f32 0.0, %v1860
        %v1862 = vpop.f32.mrf.mxu0
        %1863 = vmatprep.mubr.f32.mxu0 0.0
        %1864 = vmatmul.mubr.f32.gmra.mxu0 %v459
        %v1865 = vpop.f32.mrf.mxu0
        %v1866 = vadd.f32 0.0, %v1865
        %v1867 = vpop.f32.mrf.mxu0
        %1868 = vmatprep.mubr.f32.mxu0 0.0
        %1869 = vmatmul.mubr.f32.gmra.mxu0 %v461
        %v1870 = vpop.f32.mrf.mxu0
        %v1871 = vadd.f32 0.0, %v1870
        %v1872 = vpop.f32.mrf.mxu0
        %1873 = vmatprep.mubr.f32.mxu0 0.0
        %1874 = vmatmul.mubr.f32.gmra.mxu0 %v463
        %v1875 = vpop.f32.mrf.mxu0
        %v1876 = vadd.f32 0.0, %v1875
        %v1877 = vpop.f32.mrf.mxu0
        %1878 = vmatprep.mubr.f32.mxu0 0.0
        %1879 = vmatmul.mubr.f32.gmra.mxu0 %v465
        %v1880 = vpop.f32.mrf.mxu0
        %v1881 = vadd.f32 0.0, %v1880
        %v1882 = vpop.f32.mrf.mxu0
        %1883 = vmatprep.mubr.f32.mxu0 0.0
        %1884 = vmatmul.mubr.f32.gmra.mxu0 %v467
        %v1885 = vpop.f32.mrf.mxu0
        %v1886 = vadd.f32 0.0, %v1885
        %v1887 = vpop.f32.mrf.mxu0
        %1888 = vmatprep.mubr.f32.mxu0 0.0
        %1889 = vmatmul.mubr.f32.gmra.mxu0 %v469
        %v1890 = vpop.f32.mrf.mxu0
        %v1891 = vadd.f32 0.0, %v1890
        %v1892 = vpop.f32.mrf.mxu0
        %1893 = vmatprep.mubr.f32.mxu0 0.0
        %1894 = vmatmul.mubr.f32.gmra.mxu0 %v471
        %v1895 = vpop.f32.mrf.mxu0
        %v1896 = vadd.f32 0.0, %v1895
        %v1897 = vpop.f32.mrf.mxu0
        %1898 = vmatprep.mubr.f32.mxu0 0.0
        %1899 = vmatmul.mubr.f32.gmra.mxu0 %v1677
        %v1900 = vpop.f32.mrf.mxu0
        %v1901 = vadd.f32 0.0, %v1900
        %v1902 = vpop.f32.mrf.mxu0
        %1903 = vmatprep.mubr.f32.mxu0 0.0
        %1904 = vmatmul.mubr.f32.gmra.mxu0 %v1679
        %v1905 = vpop.f32.mrf.mxu0
        %v1906 = vadd.f32 0.0, %v1905
        %v1907 = vpop.f32.mrf.mxu0
        %1908 = vdwg.mxu0
        %v1909 = vadd.f32 %v1637, %v1751
        %v1910 = vadd.f32 %v1638, %v1756
        %v1911 = vadd.f32 %v1639, %v1761
        %v1912 = vadd.f32 %v1640, %v1766
        %v1913 = vadd.f32 %v1641, %v1771
        %v1914 = vadd.f32 %v1642, %v1776
        %v1915 = vadd.f32 %v1643, %v1781
        %v1916 = vadd.f32 %v1644, %v1786
        %v1917 = vadd.f32 %v1645, %v1791
        %v1918 = vadd.f32 %v1646, %v1796
        %v1919 = vadd.f32 %v1647, %v1801
        %v1920 = vadd.f32 %v1648, %v1806
        %v1921 = vadd.f32 %v1649, %v1811
        %v1922 = vadd.f32 %v1650, %v1816
        %v1923 = vadd.f32 %v1651, %v1821
        %v1924 = vadd.f32 %v1652, %v1826
        %v1925 = vadd.f32 %v1653, %v1831
        %v1926 = vadd.f32 %v1654, %v1836
        %v1927 = vadd.f32 %v1655, %v1841
        %v1928 = vadd.f32 %v1656, %v1846
        %v1929 = vadd.f32 %v1657, %v1851
        %v1930 = vadd.f32 %v1658, %v1856
        %v1931 = vadd.f32 %v1659, %v1861
        %v1932 = vadd.f32 %v1660, %v1866
        %v1933 = vadd.f32 %v1661, %v1871
        %v1934 = vadd.f32 %v1662, %v1876
        %v1935 = vadd.f32 %v1663, %v1881
        %v1936 = vadd.f32 %v1664, %v1886
        %v1937 = vadd.f32 %v1665, %v1891
        %v1938 = vadd.f32 %v1666, %v1896
        %v1939 = vadd.f32 %v1667, %v1901
        %v1940 = vadd.f32 %v1668, %v1906
        %v1941 = vrot.slane %v270, 2
        %v1942 = vrot.slane %v271, 2
        %v1943 = vsel %vm994, %v1941, %v1942
        %v1944 = vrot.slane %v272, 2
        %v1945 = vsel %vm994, %v1942, %v1944
        %s1946 = scalar_lea.vmem %s1, 20
        %v1947 = vld [vmem:[%s1946] sm:$0xf]
        %v1948 = vsel %vm408, %v1943, 0
        %v1950 = vsel %vm408, %v1945, 0
        %v1953 = vsel %vm473, %v1947, 0
        %1955 = vmatprep.subr.mxu0 0.0
        %1956 = vmatpush1.msra.mxu0 0.0
        %1957 = vmatprep.subr.mxu0 0.0
        %1958 = vmatpush1.msra.mxu0 0.0
        %1959 = vmatprep.subr.mxu0 0.0
        %1960 = vmatpush1.msra.mxu0 0.0
        %1961 = vmatprep.subr.mxu0 0.0
        %1962 = vmatpush1.msra.mxu0 0.0
        %1963 = vmatprep.subr.mxu0 0.0
        %1964 = vmatpush1.msra.mxu0 0.0
        %1965 = vmatprep.subr.mxu0 0.0
        %1966 = vmatpush1.msra.mxu0 0.0
        %1967 = vmatprep.subr.mxu0 0.0
        %1968 = vmatpush1.msra.mxu0 0.0
        %1969 = vmatprep.subr.mxu0 0.0
        %1970 = vmatpush1.msra.mxu0 0.0
        %1971 = vmatprep.subr.mxu0 0.0
        %1972 = vmatpush1.msra.mxu0 0.0
        %1973 = vmatprep.subr.mxu0 0.0
        %1974 = vmatpush1.msra.mxu0 0.0
        %1975 = vmatprep.subr.mxu0 0.0
        %1976 = vmatpush1.msra.mxu0 0.0
        %1977 = vmatprep.subr.mxu0 0.0
        %1978 = vmatpush1.msra.mxu0 0.0
        %1979 = vmatprep.subr.mxu0 0.0
        %1980 = vmatpush1.msra.mxu0 0.0
        %1981 = vmatprep.subr.mxu0 0.0
        %1982 = vmatpush1.msra.mxu0 0.0
        %1983 = vmatprep.subr.mxu0 0.0
        %1984 = vmatpush1.msra.mxu0 0.0
        %1985 = vmatprep.subr.mxu0 0.0
        %1986 = vmatpush1.msra.mxu0 %v1953
        %1987 = vmatprep.subr.mxu0 0.0
        %1988 = vmatpush2.msra.mxu0 0.0
        %1989 = vmatprep.subr.mxu0 0.0
        %1990 = vmatpush2.msra.mxu0 0.0
        %1991 = vmatprep.subr.mxu0 0.0
        %1992 = vmatpush2.msra.mxu0 0.0
        %1993 = vmatprep.subr.mxu0 0.0
        %1994 = vmatpush2.msra.mxu0 0.0
        %1995 = vmatprep.subr.mxu0 0.0
        %1996 = vmatpush2.msra.mxu0 0.0
        %1997 = vmatprep.subr.mxu0 0.0
        %1998 = vmatpush2.msra.mxu0 0.0
        %1999 = vmatprep.subr.mxu0 0.0
        %2000 = vmatpush2.msra.mxu0 0.0
        %2001 = vmatprep.subr.mxu0 0.0
        %2002 = vmatpush2.msra.mxu0 0.0
        %2003 = vmatprep.subr.mxu0 0.0
        %2004 = vmatpush2.msra.mxu0 0.0
        %2005 = vmatprep.subr.mxu0 0.0
        %2006 = vmatpush2.msra.mxu0 0.0
        %2007 = vmatprep.subr.mxu0 0.0
        %2008 = vmatpush2.msra.mxu0 0.0
        %2009 = vmatprep.subr.mxu0 0.0
        %2010 = vmatpush2.msra.mxu0 0.0
        %2011 = vmatprep.subr.mxu0 0.0
        %2012 = vmatpush2.msra.mxu0 0.0
        %2013 = vmatprep.subr.mxu0 0.0
        %2014 = vmatpush2.msra.mxu0 0.0
        %2015 = vmatprep.subr.mxu0 0.0
        %2016 = vmatpush2.msra.mxu0 0.0
        %2017 = vmatprep.subr.mxu0 0.0
        %2018 = vmatpush2.msra.mxu0 0.0
        %2019 = vmatprep.mubr.f32.mxu0 0.0
        %2020 = vmatmul.mubr.f32.gmra.mxu0 %v1081
        %v2021 = vpop.f32.mrf.mxu0
        %v2022 = vadd.f32 0.0, %v2021
        %v2023 = vpop.f32.mrf.mxu0
        %2024 = vmatprep.mubr.f32.mxu0 0.0
        %2025 = vmatmul.mubr.f32.gmra.mxu0 %v1083
        %v2026 = vpop.f32.mrf.mxu0
        %v2027 = vadd.f32 0.0, %v2026
        %v2028 = vpop.f32.mrf.mxu0
        %2029 = vmatprep.mubr.f32.mxu0 0.0
        %2030 = vmatmul.mubr.f32.gmra.mxu0 %v1085
        %v2031 = vpop.f32.mrf.mxu0
        %v2032 = vadd.f32 0.0, %v2031
        %v2033 = vpop.f32.mrf.mxu0
        %2034 = vmatprep.mubr.f32.mxu0 0.0
        %2035 = vmatmul.mubr.f32.gmra.mxu0 %v1087
        %v2036 = vpop.f32.mrf.mxu0
        %v2037 = vadd.f32 0.0, %v2036
        %v2038 = vpop.f32.mrf.mxu0
        %2039 = vmatprep.mubr.f32.mxu0 0.0
        %2040 = vmatmul.mubr.f32.gmra.mxu0 %v1089
        %v2041 = vpop.f32.mrf.mxu0
        %v2042 = vadd.f32 0.0, %v2041
        %v2043 = vpop.f32.mrf.mxu0
        %2044 = vmatprep.mubr.f32.mxu0 0.0
        %2045 = vmatmul.mubr.f32.gmra.mxu0 %v1091
        %v2046 = vpop.f32.mrf.mxu0
        %v2047 = vadd.f32 0.0, %v2046
        %v2048 = vpop.f32.mrf.mxu0
        %2049 = vmatprep.mubr.f32.mxu0 0.0
        %2050 = vmatmul.mubr.f32.gmra.mxu0 %v1093
        %v2051 = vpop.f32.mrf.mxu0
        %v2052 = vadd.f32 0.0, %v2051
        %v2053 = vpop.f32.mrf.mxu0
        %2054 = vmatprep.mubr.f32.mxu0 0.0
        %2055 = vmatmul.mubr.f32.gmra.mxu0 %v1095
        %v2056 = vpop.f32.mrf.mxu0
        %v2057 = vadd.f32 0.0, %v2056
        %v2058 = vpop.f32.mrf.mxu0
        %2059 = vmatprep.mubr.f32.mxu0 0.0
        %2060 = vmatmul.mubr.f32.gmra.mxu0 %v1097
        %v2061 = vpop.f32.mrf.mxu0
        %v2062 = vadd.f32 0.0, %v2061
        %v2063 = vpop.f32.mrf.mxu0
        %2064 = vmatprep.mubr.f32.mxu0 0.0
        %2065 = vmatmul.mubr.f32.gmra.mxu0 %v1099
        %v2066 = vpop.f32.mrf.mxu0
        %v2067 = vadd.f32 0.0, %v2066
        %v2068 = vpop.f32.mrf.mxu0
        %2069 = vmatprep.mubr.f32.mxu0 0.0
        %2070 = vmatmul.mubr.f32.gmra.mxu0 %v1101
        %v2071 = vpop.f32.mrf.mxu0
        %v2072 = vadd.f32 0.0, %v2071
        %v2073 = vpop.f32.mrf.mxu0
        %2074 = vmatprep.mubr.f32.mxu0 0.0
        %2075 = vmatmul.mubr.f32.gmra.mxu0 %v1103
        %v2076 = vpop.f32.mrf.mxu0
        %v2077 = vadd.f32 0.0, %v2076
        %v2078 = vpop.f32.mrf.mxu0
        %2079 = vmatprep.mubr.f32.mxu0 0.0
        %2080 = vmatmul.mubr.f32.gmra.mxu0 %v1105
        %v2081 = vpop.f32.mrf.mxu0
        %v2082 = vadd.f32 0.0, %v2081
        %v2083 = vpop.f32.mrf.mxu0
        %2084 = vmatprep.mubr.f32.mxu0 0.0
        %2085 = vmatmul.mubr.f32.gmra.mxu0 %v1107
        %v2086 = vpop.f32.mrf.mxu0
        %v2087 = vadd.f32 0.0, %v2086
        %v2088 = vpop.f32.mrf.mxu0
        %2089 = vmatprep.mubr.f32.mxu0 0.0
        %2090 = vmatmul.mubr.f32.gmra.mxu0 %v1109
        %v2091 = vpop.f32.mrf.mxu0
        %v2092 = vadd.f32 0.0, %v2091
        %v2093 = vpop.f32.mrf.mxu0
        %2094 = vmatprep.mubr.f32.mxu0 0.0
        %2095 = vmatmul.mubr.f32.gmra.mxu0 %v1111
        %v2096 = vpop.f32.mrf.mxu0
        %v2097 = vadd.f32 0.0, %v2096
        %v2098 = vpop.f32.mrf.mxu0
        %2099 = vmatprep.mubr.f32.mxu0 0.0
        %2100 = vmatmul.mubr.f32.gmra.mxu0 %v1113
        %v2101 = vpop.f32.mrf.mxu0
        %v2102 = vadd.f32 0.0, %v2101
        %v2103 = vpop.f32.mrf.mxu0
        %2104 = vmatprep.mubr.f32.mxu0 0.0
        %2105 = vmatmul.mubr.f32.gmra.mxu0 %v1115
        %v2106 = vpop.f32.mrf.mxu0
        %v2107 = vadd.f32 0.0, %v2106
        %v2108 = vpop.f32.mrf.mxu0
        %2109 = vmatprep.mubr.f32.mxu0 0.0
        %2110 = vmatmul.mubr.f32.gmra.mxu0 %v1117
        %v2111 = vpop.f32.mrf.mxu0
        %v2112 = vadd.f32 0.0, %v2111
        %v2113 = vpop.f32.mrf.mxu0
        %2114 = vmatprep.mubr.f32.mxu0 0.0
        %2115 = vmatmul.mubr.f32.gmra.mxu0 %v1119
        %v2116 = vpop.f32.mrf.mxu0
        %v2117 = vadd.f32 0.0, %v2116
        %v2118 = vpop.f32.mrf.mxu0
        %2119 = vmatprep.mubr.f32.mxu0 0.0
        %2120 = vmatmul.mubr.f32.gmra.mxu0 %v1121
        %v2121 = vpop.f32.mrf.mxu0
        %v2122 = vadd.f32 0.0, %v2121
        %v2123 = vpop.f32.mrf.mxu0
        %2124 = vmatprep.mubr.f32.mxu0 0.0
        %2125 = vmatmul.mubr.f32.gmra.mxu0 %v1123
        %v2126 = vpop.f32.mrf.mxu0
        %v2127 = vadd.f32 0.0, %v2126
        %v2128 = vpop.f32.mrf.mxu0
        %2129 = vmatprep.mubr.f32.mxu0 0.0
        %2130 = vmatmul.mubr.f32.gmra.mxu0 %v1125
        %v2131 = vpop.f32.mrf.mxu0
        %v2132 = vadd.f32 0.0, %v2131
        %v2133 = vpop.f32.mrf.mxu0
        %2134 = vmatprep.mubr.f32.mxu0 0.0
        %2135 = vmatmul.mubr.f32.gmra.mxu0 %v1127
        %v2136 = vpop.f32.mrf.mxu0
        %v2137 = vadd.f32 0.0, %v2136
        %v2138 = vpop.f32.mrf.mxu0
        %2139 = vmatprep.mubr.f32.mxu0 0.0
        %2140 = vmatmul.mubr.f32.gmra.mxu0 %v1129
        %v2141 = vpop.f32.mrf.mxu0
        %v2142 = vadd.f32 0.0, %v2141
        %v2143 = vpop.f32.mrf.mxu0
        %2144 = vmatprep.mubr.f32.mxu0 0.0
        %2145 = vmatmul.mubr.f32.gmra.mxu0 %v1131
        %v2146 = vpop.f32.mrf.mxu0
        %v2147 = vadd.f32 0.0, %v2146
        %v2148 = vpop.f32.mrf.mxu0
        %2149 = vmatprep.mubr.f32.mxu0 0.0
        %2150 = vmatmul.mubr.f32.gmra.mxu0 %v1133
        %v2151 = vpop.f32.mrf.mxu0
        %v2152 = vadd.f32 0.0, %v2151
        %v2153 = vpop.f32.mrf.mxu0
        %2154 = vmatprep.mubr.f32.mxu0 0.0
        %2155 = vmatmul.mubr.f32.gmra.mxu0 %v1135
        %v2156 = vpop.f32.mrf.mxu0
        %v2157 = vadd.f32 0.0, %v2156
        %v2158 = vpop.f32.mrf.mxu0
        %2159 = vmatprep.mubr.f32.mxu0 0.0
        %2160 = vmatmul.mubr.f32.gmra.mxu0 %v1137
        %v2161 = vpop.f32.mrf.mxu0
        %v2162 = vadd.f32 0.0, %v2161
        %v2163 = vpop.f32.mrf.mxu0
        %2164 = vmatprep.mubr.f32.mxu0 0.0
        %2165 = vmatmul.mubr.f32.gmra.mxu0 %v1139
        %v2166 = vpop.f32.mrf.mxu0
        %v2167 = vadd.f32 0.0, %v2166
        %v2168 = vpop.f32.mrf.mxu0
        %2169 = vmatprep.mubr.f32.mxu0 0.0
        %2170 = vmatmul.mubr.f32.gmra.mxu0 %v1948
        %v2171 = vpop.f32.mrf.mxu0
        %v2172 = vadd.f32 0.0, %v2171
        %v2173 = vpop.f32.mrf.mxu0
        %2174 = vmatprep.mubr.f32.mxu0 0.0
        %2175 = vmatmul.mubr.f32.gmra.mxu0 %v1950
        %v2176 = vpop.f32.mrf.mxu0
        %v2177 = vadd.f32 0.0, %v2176
        %v2178 = vpop.f32.mrf.mxu0
        %2179 = vdwg.mxu0
        %v2180 = vadd.f32 %v1909, %v2022
        %v2181 = vadd.f32 %v1910, %v2027
        %v2182 = vadd.f32 %v1911, %v2032
        %v2183 = vadd.f32 %v1912, %v2037
        %v2184 = vadd.f32 %v1913, %v2042
        %v2185 = vadd.f32 %v1914, %v2047
        %v2186 = vadd.f32 %v1915, %v2052
        %v2187 = vadd.f32 %v1916, %v2057
        %v2188 = vadd.f32 %v1917, %v2062
        %v2189 = vadd.f32 %v1918, %v2067
        %v2190 = vadd.f32 %v1919, %v2072
        %v2191 = vadd.f32 %v1920, %v2077
        %v2192 = vadd.f32 %v1921, %v2082
        %v2193 = vadd.f32 %v1922, %v2087
        %v2194 = vadd.f32 %v1923, %v2092
        %v2195 = vadd.f32 %v1924, %v2097
        %v2196 = vadd.f32 %v1925, %v2102
        %v2197 = vadd.f32 %v1926, %v2107
        %v2198 = vadd.f32 %v1927, %v2112
        %v2199 = vadd.f32 %v1928, %v2117
        %v2200 = vadd.f32 %v1929, %v2122
        %v2201 = vadd.f32 %v1930, %v2127
        %v2202 = vadd.f32 %v1931, %v2132
        %v2203 = vadd.f32 %v1932, %v2137
        %v2204 = vadd.f32 %v1933, %v2142
        %v2205 = vadd.f32 %v1934, %v2147
        %v2206 = vadd.f32 %v1935, %v2152
        %v2207 = vadd.f32 %v1936, %v2157
        %v2208 = vadd.f32 %v1937, %v2162
        %v2209 = vadd.f32 %v1938, %v2167
        %v2210 = vadd.f32 %v1939, %v2172
        %v2211 = vadd.f32 %v1940, %v2177
        %s2212 = scalar_lea.vmem %s1, 24
        %v2213 = vld [vmem:[%s2212] sm:$0xf]
        %v2215 = vsel %vm408, %v273, 0
        %v2218 = vsel %vm408, %v274, 0
        %v2221 = vsel %vm473, %v2213, 0
        %2223 = vmatprep.subr.mxu0 0.0
        %2224 = vmatpush1.msra.mxu0 0.0
        %2225 = vmatprep.subr.mxu0 0.0
        %2226 = vmatpush1.msra.mxu0 0.0
        %2227 = vmatprep.subr.mxu0 0.0
        %2228 = vmatpush1.msra.mxu0 0.0
        %2229 = vmatprep.subr.mxu0 0.0
        %2230 = vmatpush1.msra.mxu0 0.0
        %2231 = vmatprep.subr.mxu0 0.0
        %2232 = vmatpush1.msra.mxu0 0.0
        %2233 = vmatprep.subr.mxu0 0.0
        %2234 = vmatpush1.msra.mxu0 0.0
        %2235 = vmatprep.subr.mxu0 0.0
        %2236 = vmatpush1.msra.mxu0 0.0
        %2237 = vmatprep.subr.mxu0 0.0
        %2238 = vmatpush1.msra.mxu0 0.0
        %2239 = vmatprep.subr.mxu0 0.0
        %2240 = vmatpush1.msra.mxu0 0.0
        %2241 = vmatprep.subr.mxu0 0.0
        %2242 = vmatpush1.msra.mxu0 0.0
        %2243 = vmatprep.subr.mxu0 0.0
        %2244 = vmatpush1.msra.mxu0 0.0
        %2245 = vmatprep.subr.mxu0 0.0
        %2246 = vmatpush1.msra.mxu0 0.0
        %2247 = vmatprep.subr.mxu0 0.0
        %2248 = vmatpush1.msra.mxu0 0.0
        %2249 = vmatprep.subr.mxu0 0.0
        %2250 = vmatpush1.msra.mxu0 0.0
        %2251 = vmatprep.subr.mxu0 0.0
        %2252 = vmatpush1.msra.mxu0 0.0
        %2253 = vmatprep.subr.mxu0 0.0
        %2254 = vmatpush1.msra.mxu0 %v2221
        %2255 = vmatprep.subr.mxu0 0.0
        %2256 = vmatpush2.msra.mxu0 0.0
        %2257 = vmatprep.subr.mxu0 0.0
        %2258 = vmatpush2.msra.mxu0 0.0
        %2259 = vmatprep.subr.mxu0 0.0
        %2260 = vmatpush2.msra.mxu0 0.0
        %2261 = vmatprep.subr.mxu0 0.0
        %2262 = vmatpush2.msra.mxu0 0.0
        %2263 = vmatprep.subr.mxu0 0.0
        %2264 = vmatpush2.msra.mxu0 0.0
        %2265 = vmatprep.subr.mxu0 0.0
        %2266 = vmatpush2.msra.mxu0 0.0
        %2267 = vmatprep.subr.mxu0 0.0
        %2268 = vmatpush2.msra.mxu0 0.0
        %2269 = vmatprep.subr.mxu0 0.0
        %2270 = vmatpush2.msra.mxu0 0.0
        %2271 = vmatprep.subr.mxu0 0.0
        %2272 = vmatpush2.msra.mxu0 0.0
        %2273 = vmatprep.subr.mxu0 0.0
        %2274 = vmatpush2.msra.mxu0 0.0
        %2275 = vmatprep.subr.mxu0 0.0
        %2276 = vmatpush2.msra.mxu0 0.0
        %2277 = vmatprep.subr.mxu0 0.0
        %2278 = vmatpush2.msra.mxu0 0.0
        %2279 = vmatprep.subr.mxu0 0.0
        %2280 = vmatpush2.msra.mxu0 0.0
        %2281 = vmatprep.subr.mxu0 0.0
        %2282 = vmatpush2.msra.mxu0 0.0
        %2283 = vmatprep.subr.mxu0 0.0
        %2284 = vmatpush2.msra.mxu0 0.0
        %2285 = vmatprep.subr.mxu0 0.0
        %2286 = vmatpush2.msra.mxu0 0.0
        %2287 = vmatprep.mubr.f32.mxu0 0.0
        %2288 = vmatmul.mubr.f32.gmra.mxu0 %v710
        %v2289 = vpop.f32.mrf.mxu0
        %v2290 = vadd.f32 0.0, %v2289
        %v2291 = vpop.f32.mrf.mxu0
        %2292 = vmatprep.mubr.f32.mxu0 0.0
        %2293 = vmatmul.mubr.f32.gmra.mxu0 %v712
        %v2294 = vpop.f32.mrf.mxu0
        %v2295 = vadd.f32 0.0, %v2294
        %v2296 = vpop.f32.mrf.mxu0
        %2297 = vmatprep.mubr.f32.mxu0 0.0
        %2298 = vmatmul.mubr.f32.gmra.mxu0 %v714
        %v2299 = vpop.f32.mrf.mxu0
        %v2300 = vadd.f32 0.0, %v2299
        %v2301 = vpop.f32.mrf.mxu0
        %2302 = vmatprep.mubr.f32.mxu0 0.0
        %2303 = vmatmul.mubr.f32.gmra.mxu0 %v716
        %v2304 = vpop.f32.mrf.mxu0
        %v2305 = vadd.f32 0.0, %v2304
        %v2306 = vpop.f32.mrf.mxu0
        %2307 = vmatprep.mubr.f32.mxu0 0.0
        %2308 = vmatmul.mubr.f32.gmra.mxu0 %v718
        %v2309 = vpop.f32.mrf.mxu0
        %v2310 = vadd.f32 0.0, %v2309
        %v2311 = vpop.f32.mrf.mxu0
        %2312 = vmatprep.mubr.f32.mxu0 0.0
        %2313 = vmatmul.mubr.f32.gmra.mxu0 %v720
        %v2314 = vpop.f32.mrf.mxu0
        %v2315 = vadd.f32 0.0, %v2314
        %v2316 = vpop.f32.mrf.mxu0
        %2317 = vmatprep.mubr.f32.mxu0 0.0
        %2318 = vmatmul.mubr.f32.gmra.mxu0 %v722
        %v2319 = vpop.f32.mrf.mxu0
        %v2320 = vadd.f32 0.0, %v2319
        %v2321 = vpop.f32.mrf.mxu0
        %2322 = vmatprep.mubr.f32.mxu0 0.0
        %2323 = vmatmul.mubr.f32.gmra.mxu0 %v724
        %v2324 = vpop.f32.mrf.mxu0
        %v2325 = vadd.f32 0.0, %v2324
        %v2326 = vpop.f32.mrf.mxu0
        %2327 = vmatprep.mubr.f32.mxu0 0.0
        %2328 = vmatmul.mubr.f32.gmra.mxu0 %v726
        %v2329 = vpop.f32.mrf.mxu0
        %v2330 = vadd.f32 0.0, %v2329
        %v2331 = vpop.f32.mrf.mxu0
        %2332 = vmatprep.mubr.f32.mxu0 0.0
        %2333 = vmatmul.mubr.f32.gmra.mxu0 %v728
        %v2334 = vpop.f32.mrf.mxu0
        %v2335 = vadd.f32 0.0, %v2334
        %v2336 = vpop.f32.mrf.mxu0
        %2337 = vmatprep.mubr.f32.mxu0 0.0
        %2338 = vmatmul.mubr.f32.gmra.mxu0 %v730
        %v2339 = vpop.f32.mrf.mxu0
        %v2340 = vadd.f32 0.0, %v2339
        %v2341 = vpop.f32.mrf.mxu0
        %2342 = vmatprep.mubr.f32.mxu0 0.0
        %2343 = vmatmul.mubr.f32.gmra.mxu0 %v732
        %v2344 = vpop.f32.mrf.mxu0
        %v2345 = vadd.f32 0.0, %v2344
        %v2346 = vpop.f32.mrf.mxu0
        %2347 = vmatprep.mubr.f32.mxu0 0.0
        %2348 = vmatmul.mubr.f32.gmra.mxu0 %v734
        %v2349 = vpop.f32.mrf.mxu0
        %v2350 = vadd.f32 0.0, %v2349
        %v2351 = vpop.f32.mrf.mxu0
        %2352 = vmatprep.mubr.f32.mxu0 0.0
        %2353 = vmatmul.mubr.f32.gmra.mxu0 %v736
        %v2354 = vpop.f32.mrf.mxu0
        %v2355 = vadd.f32 0.0, %v2354
        %v2356 = vpop.f32.mrf.mxu0
        %2357 = vmatprep.mubr.f32.mxu0 0.0
        %2358 = vmatmul.mubr.f32.gmra.mxu0 %v738
        %v2359 = vpop.f32.mrf.mxu0
        %v2360 = vadd.f32 0.0, %v2359
        %v2361 = vpop.f32.mrf.mxu0
        %2362 = vmatprep.mubr.f32.mxu0 0.0
        %2363 = vmatmul.mubr.f32.gmra.mxu0 %v740
        %v2364 = vpop.f32.mrf.mxu0
        %v2365 = vadd.f32 0.0, %v2364
        %v2366 = vpop.f32.mrf.mxu0
        %2367 = vmatprep.mubr.f32.mxu0 0.0
        %2368 = vmatmul.mubr.f32.gmra.mxu0 %v742
        %v2369 = vpop.f32.mrf.mxu0
        %v2370 = vadd.f32 0.0, %v2369
        %v2371 = vpop.f32.mrf.mxu0
        %2372 = vmatprep.mubr.f32.mxu0 0.0
        %2373 = vmatmul.mubr.f32.gmra.mxu0 %v744
        %v2374 = vpop.f32.mrf.mxu0
        %v2375 = vadd.f32 0.0, %v2374
        %v2376 = vpop.f32.mrf.mxu0
        %2377 = vmatprep.mubr.f32.mxu0 0.0
        %2378 = vmatmul.mubr.f32.gmra.mxu0 %v746
        %v2379 = vpop.f32.mrf.mxu0
        %v2380 = vadd.f32 0.0, %v2379
        %v2381 = vpop.f32.mrf.mxu0
        %2382 = vmatprep.mubr.f32.mxu0 0.0
        %2383 = vmatmul.mubr.f32.gmra.mxu0 %v748
        %v2384 = vpop.f32.mrf.mxu0
        %v2385 = vadd.f32 0.0, %v2384
        %v2386 = vpop.f32.mrf.mxu0
        %2387 = vmatprep.mubr.f32.mxu0 0.0
        %2388 = vmatmul.mubr.f32.gmra.mxu0 %v750
        %v2389 = vpop.f32.mrf.mxu0
        %v2390 = vadd.f32 0.0, %v2389
        %v2391 = vpop.f32.mrf.mxu0
        %2392 = vmatprep.mubr.f32.mxu0 0.0
        %2393 = vmatmul.mubr.f32.gmra.mxu0 %v752
        %v2394 = vpop.f32.mrf.mxu0
        %v2395 = vadd.f32 0.0, %v2394
        %v2396 = vpop.f32.mrf.mxu0
        %2397 = vmatprep.mubr.f32.mxu0 0.0
        %2398 = vmatmul.mubr.f32.gmra.mxu0 %v754
        %v2399 = vpop.f32.mrf.mxu0
        %v2400 = vadd.f32 0.0, %v2399
        %v2401 = vpop.f32.mrf.mxu0
        %2402 = vmatprep.mubr.f32.mxu0 0.0
        %2403 = vmatmul.mubr.f32.gmra.mxu0 %v756
        %v2404 = vpop.f32.mrf.mxu0
        %v2405 = vadd.f32 0.0, %v2404
        %v2406 = vpop.f32.mrf.mxu0
        %2407 = vmatprep.mubr.f32.mxu0 0.0
        %2408 = vmatmul.mubr.f32.gmra.mxu0 %v758
        %v2409 = vpop.f32.mrf.mxu0
        %v2410 = vadd.f32 0.0, %v2409
        %v2411 = vpop.f32.mrf.mxu0
        %2412 = vmatprep.mubr.f32.mxu0 0.0
        %2413 = vmatmul.mubr.f32.gmra.mxu0 %v760
        %v2414 = vpop.f32.mrf.mxu0
        %v2415 = vadd.f32 0.0, %v2414
        %v2416 = vpop.f32.mrf.mxu0
        %2417 = vmatprep.mubr.f32.mxu0 0.0
        %2418 = vmatmul.mubr.f32.gmra.mxu0 %v762
        %v2419 = vpop.f32.mrf.mxu0
        %v2420 = vadd.f32 0.0, %v2419
        %v2421 = vpop.f32.mrf.mxu0
        %2422 = vmatprep.mubr.f32.mxu0 0.0
        %2423 = vmatmul.mubr.f32.gmra.mxu0 %v764
        %v2424 = vpop.f32.mrf.mxu0
        %v2425 = vadd.f32 0.0, %v2424
        %v2426 = vpop.f32.mrf.mxu0
        %2427 = vmatprep.mubr.f32.mxu0 0.0
        %2428 = vmatmul.mubr.f32.gmra.mxu0 %v1404
        %v2429 = vpop.f32.mrf.mxu0
        %v2430 = vadd.f32 0.0, %v2429
        %v2431 = vpop.f32.mrf.mxu0
        %2432 = vmatprep.mubr.f32.mxu0 0.0
        %2433 = vmatmul.mubr.f32.gmra.mxu0 %v1407
        %v2434 = vpop.f32.mrf.mxu0
        %v2435 = vadd.f32 0.0, %v2434
        %v2436 = vpop.f32.mrf.mxu0
        %2437 = vmatprep.mubr.f32.mxu0 0.0
        %2438 = vmatmul.mubr.f32.gmra.mxu0 %v2215
        %v2439 = vpop.f32.mrf.mxu0
        %v2440 = vadd.f32 0.0, %v2439
        %v2441 = vpop.f32.mrf.mxu0
        %2442 = vmatprep.mubr.f32.mxu0 0.0
        %2443 = vmatmul.mubr.f32.gmra.mxu0 %v2218
        %v2444 = vpop.f32.mrf.mxu0
        %v2445 = vadd.f32 0.0, %v2444
        %v2446 = vpop.f32.mrf.mxu0
        %2447 = vdwg.mxu0
        %v2448 = vadd.f32 %v2180, %v2290
        %v2449 = vadd.f32 %v2181, %v2295
        %v2450 = vadd.f32 %v2182, %v2300
        %v2451 = vadd.f32 %v2183, %v2305
        %v2452 = vadd.f32 %v2184, %v2310
        %v2453 = vadd.f32 %v2185, %v2315
        %v2454 = vadd.f32 %v2186, %v2320
        %v2455 = vadd.f32 %v2187, %v2325
        %v2456 = vadd.f32 %v2188, %v2330
        %v2457 = vadd.f32 %v2189, %v2335
        %v2458 = vadd.f32 %v2190, %v2340
        %v2459 = vadd.f32 %v2191, %v2345
        %v2460 = vadd.f32 %v2192, %v2350
        %v2461 = vadd.f32 %v2193, %v2355
        %v2462 = vadd.f32 %v2194, %v2360
        %v2463 = vadd.f32 %v2195, %v2365
        %v2464 = vadd.f32 %v2196, %v2370
        %v2465 = vadd.f32 %v2197, %v2375
        %v2466 = vadd.f32 %v2198, %v2380
        %v2467 = vadd.f32 %v2199, %v2385
        %v2468 = vadd.f32 %v2200, %v2390
        %v2469 = vadd.f32 %v2201, %v2395
        %v2470 = vadd.f32 %v2202, %v2400
        %v2471 = vadd.f32 %v2203, %v2405
        %v2472 = vadd.f32 %v2204, %v2410
        %v2473 = vadd.f32 %v2205, %v2415
        %v2474 = vadd.f32 %v2206, %v2420
        %v2475 = vadd.f32 %v2207, %v2425
        %v2476 = vadd.f32 %v2208, %v2430
        %v2477 = vadd.f32 %v2209, %v2435
        %v2478 = vadd.f32 %v2210, %v2440
        %v2479 = vadd.f32 %v2211, %v2445
        %v2481 = vrot.slane %v273, 1
        %v2482 = vrot.slane %v274, 1
        %v2483 = vsel %vm325, %v2481, %v2482
        %v2484 = vrot.slane %v275, 1
        %v2485 = vsel %vm325, %v2482, %v2484
        %s2486 = scalar_lea.vmem %s1, 28
        %v2487 = vld [vmem:[%s2486] sm:$0xf]
        %v2488 = vsel %vm408, %v2483, 0
        %v2490 = vsel %vm408, %v2485, 0
        %v2493 = vsel %vm473, %v2487, 0
        %2495 = vmatprep.subr.mxu0 0.0
        %2496 = vmatpush1.msra.mxu0 0.0
        %2497 = vmatprep.subr.mxu0 0.0
        %2498 = vmatpush1.msra.mxu0 0.0
        %2499 = vmatprep.subr.mxu0 0.0
        %2500 = vmatpush1.msra.mxu0 0.0
        %2501 = vmatprep.subr.mxu0 0.0
        %2502 = vmatpush1.msra.mxu0 0.0
        %2503 = vmatprep.subr.mxu0 0.0
        %2504 = vmatpush1.msra.mxu0 0.0
        %2505 = vmatprep.subr.mxu0 0.0
        %2506 = vmatpush1.msra.mxu0 0.0
        %2507 = vmatprep.subr.mxu0 0.0
        %2508 = vmatpush1.msra.mxu0 0.0
        %2509 = vmatprep.subr.mxu0 0.0
        %2510 = vmatpush1.msra.mxu0 0.0
        %2511 = vmatprep.subr.mxu0 0.0
        %2512 = vmatpush1.msra.mxu0 0.0
        %2513 = vmatprep.subr.mxu0 0.0
        %2514 = vmatpush1.msra.mxu0 0.0
        %2515 = vmatprep.subr.mxu0 0.0
        %2516 = vmatpush1.msra.mxu0 0.0
        %2517 = vmatprep.subr.mxu0 0.0
        %2518 = vmatpush1.msra.mxu0 0.0
        %2519 = vmatprep.subr.mxu0 0.0
        %2520 = vmatpush1.msra.mxu0 0.0
        %2521 = vmatprep.subr.mxu0 0.0
        %2522 = vmatpush1.msra.mxu0 0.0
        %2523 = vmatprep.subr.mxu0 0.0
        %2524 = vmatpush1.msra.mxu0 0.0
        %2525 = vmatprep.subr.mxu0 0.0
        %2526 = vmatpush1.msra.mxu0 %v2493
        %2527 = vmatprep.subr.mxu0 0.0
        %2528 = vmatpush2.msra.mxu0 0.0
        %2529 = vmatprep.subr.mxu0 0.0
        %2530 = vmatpush2.msra.mxu0 0.0
        %2531 = vmatprep.subr.mxu0 0.0
        %2532 = vmatpush2.msra.mxu0 0.0
        %2533 = vmatprep.subr.mxu0 0.0
        %2534 = vmatpush2.msra.mxu0 0.0
        %2535 = vmatprep.subr.mxu0 0.0
        %2536 = vmatpush2.msra.mxu0 0.0
        %2537 = vmatprep.subr.mxu0 0.0
        %2538 = vmatpush2.msra.mxu0 0.0
        %2539 = vmatprep.subr.mxu0 0.0
        %2540 = vmatpush2.msra.mxu0 0.0
        %2541 = vmatprep.subr.mxu0 0.0
        %2542 = vmatpush2.msra.mxu0 0.0
        %2543 = vmatprep.subr.mxu0 0.0
        %2544 = vmatpush2.msra.mxu0 0.0
        %2545 = vmatprep.subr.mxu0 0.0
        %2546 = vmatpush2.msra.mxu0 0.0
        %2547 = vmatprep.subr.mxu0 0.0
        %2548 = vmatpush2.msra.mxu0 0.0
        %2549 = vmatprep.subr.mxu0 0.0
        %2550 = vmatpush2.msra.mxu0 0.0
        %2551 = vmatprep.subr.mxu0 0.0
        %2552 = vmatpush2.msra.mxu0 0.0
        %2553 = vmatprep.subr.mxu0 0.0
        %2554 = vmatpush2.msra.mxu0 0.0
        %2555 = vmatprep.subr.mxu0 0.0
        %2556 = vmatpush2.msra.mxu0 0.0
        %2557 = vmatprep.subr.mxu0 0.0
        %2558 = vmatpush2.msra.mxu0 0.0
        %2559 = vmatprep.mubr.f32.mxu0 0.0
        %2560 = vmatmul.mubr.f32.gmra.mxu0 %v417
        %v2561 = vpop.f32.mrf.mxu0
        %v2562 = vadd.f32 0.0, %v2561
        %v2563 = vpop.f32.mrf.mxu0
        %2564 = vmatprep.mubr.f32.mxu0 0.0
        %2565 = vmatmul.mubr.f32.gmra.mxu0 %v419
        %v2566 = vpop.f32.mrf.mxu0
        %v2567 = vadd.f32 0.0, %v2566
        %v2568 = vpop.f32.mrf.mxu0
        %2569 = vmatprep.mubr.f32.mxu0 0.0
        %2570 = vmatmul.mubr.f32.gmra.mxu0 %v421
        %v2571 = vpop.f32.mrf.mxu0
        %v2572 = vadd.f32 0.0, %v2571
        %v2573 = vpop.f32.mrf.mxu0
        %2574 = vmatprep.mubr.f32.mxu0 0.0
        %2575 = vmatmul.mubr.f32.gmra.mxu0 %v423
        %v2576 = vpop.f32.mrf.mxu0
        %v2577 = vadd.f32 0.0, %v2576
        %v2578 = vpop.f32.mrf.mxu0
        %2579 = vmatprep.mubr.f32.mxu0 0.0
        %2580 = vmatmul.mubr.f32.gmra.mxu0 %v425
        %v2581 = vpop.f32.mrf.mxu0
        %v2582 = vadd.f32 0.0, %v2581
        %v2583 = vpop.f32.mrf.mxu0
        %2584 = vmatprep.mubr.f32.mxu0 0.0
        %2585 = vmatmul.mubr.f32.gmra.mxu0 %v427
        %v2586 = vpop.f32.mrf.mxu0
        %v2587 = vadd.f32 0.0, %v2586
        %v2588 = vpop.f32.mrf.mxu0
        %2589 = vmatprep.mubr.f32.mxu0 0.0
        %2590 = vmatmul.mubr.f32.gmra.mxu0 %v429
        %v2591 = vpop.f32.mrf.mxu0
        %v2592 = vadd.f32 0.0, %v2591
        %v2593 = vpop.f32.mrf.mxu0
        %2594 = vmatprep.mubr.f32.mxu0 0.0
        %2595 = vmatmul.mubr.f32.gmra.mxu0 %v431
        %v2596 = vpop.f32.mrf.mxu0
        %v2597 = vadd.f32 0.0, %v2596
        %v2598 = vpop.f32.mrf.mxu0
        %2599 = vmatprep.mubr.f32.mxu0 0.0
        %2600 = vmatmul.mubr.f32.gmra.mxu0 %v433
        %v2601 = vpop.f32.mrf.mxu0
        %v2602 = vadd.f32 0.0, %v2601
        %v2603 = vpop.f32.mrf.mxu0
        %2604 = vmatprep.mubr.f32.mxu0 0.0
        %2605 = vmatmul.mubr.f32.gmra.mxu0 %v435
        %v2606 = vpop.f32.mrf.mxu0
        %v2607 = vadd.f32 0.0, %v2606
        %v2608 = vpop.f32.mrf.mxu0
        %2609 = vmatprep.mubr.f32.mxu0 0.0
        %2610 = vmatmul.mubr.f32.gmra.mxu0 %v437
        %v2611 = vpop.f32.mrf.mxu0
        %v2612 = vadd.f32 0.0, %v2611
        %v2613 = vpop.f32.mrf.mxu0
        %2614 = vmatprep.mubr.f32.mxu0 0.0
        %2615 = vmatmul.mubr.f32.gmra.mxu0 %v439
        %v2616 = vpop.f32.mrf.mxu0
        %v2617 = vadd.f32 0.0, %v2616
        %v2618 = vpop.f32.mrf.mxu0
        %2619 = vmatprep.mubr.f32.mxu0 0.0
        %2620 = vmatmul.mubr.f32.gmra.mxu0 %v441
        %v2621 = vpop.f32.mrf.mxu0
        %v2622 = vadd.f32 0.0, %v2621
        %v2623 = vpop.f32.mrf.mxu0
        %2624 = vmatprep.mubr.f32.mxu0 0.0
        %2625 = vmatmul.mubr.f32.gmra.mxu0 %v443
        %v2626 = vpop.f32.mrf.mxu0
        %v2627 = vadd.f32 0.0, %v2626
        %v2628 = vpop.f32.mrf.mxu0
        %2629 = vmatprep.mubr.f32.mxu0 0.0
        %2630 = vmatmul.mubr.f32.gmra.mxu0 %v445
        %v2631 = vpop.f32.mrf.mxu0
        %v2632 = vadd.f32 0.0, %v2631
        %v2633 = vpop.f32.mrf.mxu0
        %2634 = vmatprep.mubr.f32.mxu0 0.0
        %2635 = vmatmul.mubr.f32.gmra.mxu0 %v447
        %v2636 = vpop.f32.mrf.mxu0
        %v2637 = vadd.f32 0.0, %v2636
        %v2638 = vpop.f32.mrf.mxu0
        %2639 = vmatprep.mubr.f32.mxu0 0.0
        %2640 = vmatmul.mubr.f32.gmra.mxu0 %v449
        %v2641 = vpop.f32.mrf.mxu0
        %v2642 = vadd.f32 0.0, %v2641
        %v2643 = vpop.f32.mrf.mxu0
        %2644 = vmatprep.mubr.f32.mxu0 0.0
        %2645 = vmatmul.mubr.f32.gmra.mxu0 %v451
        %v2646 = vpop.f32.mrf.mxu0
        %v2647 = vadd.f32 0.0, %v2646
        %v2648 = vpop.f32.mrf.mxu0
        %2649 = vmatprep.mubr.f32.mxu0 0.0
        %2650 = vmatmul.mubr.f32.gmra.mxu0 %v453
        %v2651 = vpop.f32.mrf.mxu0
        %v2652 = vadd.f32 0.0, %v2651
        %v2653 = vpop.f32.mrf.mxu0
        %2654 = vmatprep.mubr.f32.mxu0 0.0
        %2655 = vmatmul.mubr.f32.gmra.mxu0 %v455
        %v2656 = vpop.f32.mrf.mxu0
        %v2657 = vadd.f32 0.0, %v2656
        %v2658 = vpop.f32.mrf.mxu0
        %2659 = vmatprep.mubr.f32.mxu0 0.0
        %2660 = vmatmul.mubr.f32.gmra.mxu0 %v457
        %v2661 = vpop.f32.mrf.mxu0
        %v2662 = vadd.f32 0.0, %v2661
        %v2663 = vpop.f32.mrf.mxu0
        %2664 = vmatprep.mubr.f32.mxu0 0.0
        %2665 = vmatmul.mubr.f32.gmra.mxu0 %v459
        %v2666 = vpop.f32.mrf.mxu0
        %v2667 = vadd.f32 0.0, %v2666
        %v2668 = vpop.f32.mrf.mxu0
        %2669 = vmatprep.mubr.f32.mxu0 0.0
        %2670 = vmatmul.mubr.f32.gmra.mxu0 %v461
        %v2671 = vpop.f32.mrf.mxu0
        %v2672 = vadd.f32 0.0, %v2671
        %v2673 = vpop.f32.mrf.mxu0
        %2674 = vmatprep.mubr.f32.mxu0 0.0
        %2675 = vmatmul.mubr.f32.gmra.mxu0 %v463
        %v2676 = vpop.f32.mrf.mxu0
        %v2677 = vadd.f32 0.0, %v2676
        %v2678 = vpop.f32.mrf.mxu0
        %2679 = vmatprep.mubr.f32.mxu0 0.0
        %2680 = vmatmul.mubr.f32.gmra.mxu0 %v465
        %v2681 = vpop.f32.mrf.mxu0
        %v2682 = vadd.f32 0.0, %v2681
        %v2683 = vpop.f32.mrf.mxu0
        %2684 = vmatprep.mubr.f32.mxu0 0.0
        %2685 = vmatmul.mubr.f32.gmra.mxu0 %v467
        %v2686 = vpop.f32.mrf.mxu0
        %v2687 = vadd.f32 0.0, %v2686
        %v2688 = vpop.f32.mrf.mxu0
        %2689 = vmatprep.mubr.f32.mxu0 0.0
        %2690 = vmatmul.mubr.f32.gmra.mxu0 %v469
        %v2691 = vpop.f32.mrf.mxu0
        %v2692 = vadd.f32 0.0, %v2691
        %v2693 = vpop.f32.mrf.mxu0
        %2694 = vmatprep.mubr.f32.mxu0 0.0
        %2695 = vmatmul.mubr.f32.gmra.mxu0 %v471
        %v2696 = vpop.f32.mrf.mxu0
        %v2697 = vadd.f32 0.0, %v2696
        %v2698 = vpop.f32.mrf.mxu0
        %2699 = vmatprep.mubr.f32.mxu0 0.0
        %2700 = vmatmul.mubr.f32.gmra.mxu0 %v1677
        %v2701 = vpop.f32.mrf.mxu0
        %v2702 = vadd.f32 0.0, %v2701
        %v2703 = vpop.f32.mrf.mxu0
        %2704 = vmatprep.mubr.f32.mxu0 0.0
        %2705 = vmatmul.mubr.f32.gmra.mxu0 %v1679
        %v2706 = vpop.f32.mrf.mxu0
        %v2707 = vadd.f32 0.0, %v2706
        %v2708 = vpop.f32.mrf.mxu0
        %2709 = vmatprep.mubr.f32.mxu0 0.0
        %2710 = vmatmul.mubr.f32.gmra.mxu0 %v2488
        %v2711 = vpop.f32.mrf.mxu0
        %v2712 = vadd.f32 0.0, %v2711
        %v2713 = vpop.f32.mrf.mxu0
        %2714 = vmatprep.mubr.f32.mxu0 0.0
        %2715 = vmatmul.mubr.f32.gmra.mxu0 %v2490
        %v2716 = vpop.f32.mrf.mxu0
        %v2717 = vadd.f32 0.0, %v2716
        %v2718 = vpop.f32.mrf.mxu0
        %2719 = vdwg.mxu0
        %v2720 = vadd.f32 %v2448, %v2562
        %v2721 = vadd.f32 %v2449, %v2567
        %v2722 = vadd.f32 %v2450, %v2572
        %v2723 = vadd.f32 %v2451, %v2577
        %v2724 = vadd.f32 %v2452, %v2582
        %v2725 = vadd.f32 %v2453, %v2587
        %v2726 = vadd.f32 %v2454, %v2592
        %v2727 = vadd.f32 %v2455, %v2597
        %v2728 = vadd.f32 %v2456, %v2602
        %v2729 = vadd.f32 %v2457, %v2607
        %v2730 = vadd.f32 %v2458, %v2612
        %v2731 = vadd.f32 %v2459, %v2617
        %v2732 = vadd.f32 %v2460, %v2622
        %v2733 = vadd.f32 %v2461, %v2627
        %v2734 = vadd.f32 %v2462, %v2632
        %v2735 = vadd.f32 %v2463, %v2637
        %v2736 = vadd.f32 %v2464, %v2642
        %v2737 = vadd.f32 %v2465, %v2647
        %v2738 = vadd.f32 %v2466, %v2652
        %v2739 = vadd.f32 %v2467, %v2657
        %v2740 = vadd.f32 %v2468, %v2662
        %v2741 = vadd.f32 %v2469, %v2667
        %v2742 = vadd.f32 %v2470, %v2672
        %v2743 = vadd.f32 %v2471, %v2677
        %v2744 = vadd.f32 %v2472, %v2682
        %v2745 = vadd.f32 %v2473, %v2687
        %v2746 = vadd.f32 %v2474, %v2692
        %v2747 = vadd.f32 %v2475, %v2697
        %v2748 = vadd.f32 %v2476, %v2702
        %v2749 = vadd.f32 %v2477, %v2707
        %v2750 = vadd.f32 %v2478, %v2712
        %v2751 = vadd.f32 %v2479, %v2717
        %v2752 = vrot.slane %v273, 2
        %v2753 = vrot.slane %v274, 2
        %v2754 = vsel %vm994, %v2752, %v2753
        %v2755 = vrot.slane %v275, 2
        %v2756 = vsel %vm994, %v2753, %v2755
        %s2757 = scalar_lea.vmem %s1, 32
        %v2758 = vld [vmem:[%s2757] sm:$0xf]
        %v2759 = vsel %vm408, %v2754, 0
        %v2761 = vsel %vm408, %v2756, 0
        %v2764 = vsel %vm473, %v2758, 0
        %2766 = vmatprep.subr.mxu0 0.0
        %2767 = vmatpush1.msra.mxu0 0.0
        %2768 = vmatprep.subr.mxu0 0.0
        %2769 = vmatpush1.msra.mxu0 0.0
        %2770 = vmatprep.subr.mxu0 0.0
        %2771 = vmatpush1.msra.mxu0 0.0
        %2772 = vmatprep.subr.mxu0 0.0
        %2773 = vmatpush1.msra.mxu0 0.0
        %2774 = vmatprep.subr.mxu0 0.0
        %2775 = vmatpush1.msra.mxu0 0.0
        %2776 = vmatprep.subr.mxu0 0.0
        %2777 = vmatpush1.msra.mxu0 0.0
        %2778 = vmatprep.subr.mxu0 0.0
        %2779 = vmatpush1.msra.mxu0 0.0
        %2780 = vmatprep.subr.mxu0 0.0
        %2781 = vmatpush1.msra.mxu0 0.0
        %2782 = vmatprep.subr.mxu0 0.0
        %2783 = vmatpush1.msra.mxu0 0.0
        %2784 = vmatprep.subr.mxu0 0.0
        %2785 = vmatpush1.msra.mxu0 0.0
        %2786 = vmatprep.subr.mxu0 0.0
        %2787 = vmatpush1.msra.mxu0 0.0
        %2788 = vmatprep.subr.mxu0 0.0
        %2789 = vmatpush1.msra.mxu0 0.0
        %2790 = vmatprep.subr.mxu0 0.0
        %2791 = vmatpush1.msra.mxu0 0.0
        %2792 = vmatprep.subr.mxu0 0.0
        %2793 = vmatpush1.msra.mxu0 0.0
        %2794 = vmatprep.subr.mxu0 0.0
        %2795 = vmatpush1.msra.mxu0 0.0
        %2796 = vmatprep.subr.mxu0 0.0
        %2797 = vmatpush1.msra.mxu0 %v2764
        %2798 = vmatprep.subr.mxu0 0.0
        %2799 = vmatpush2.msra.mxu0 0.0
        %2800 = vmatprep.subr.mxu0 0.0
        %2801 = vmatpush2.msra.mxu0 0.0
        %2802 = vmatprep.subr.mxu0 0.0
        %2803 = vmatpush2.msra.mxu0 0.0
        %2804 = vmatprep.subr.mxu0 0.0
        %2805 = vmatpush2.msra.mxu0 0.0
        %2806 = vmatprep.subr.mxu0 0.0
        %2807 = vmatpush2.msra.mxu0 0.0
        %2808 = vmatprep.subr.mxu0 0.0
        %2809 = vmatpush2.msra.mxu0 0.0
        %2810 = vmatprep.subr.mxu0 0.0
        %2811 = vmatpush2.msra.mxu0 0.0
        %2812 = vmatprep.subr.mxu0 0.0
        %2813 = vmatpush2.msra.mxu0 0.0
        %2814 = vmatprep.subr.mxu0 0.0
        %2815 = vmatpush2.msra.mxu0 0.0
        %2816 = vmatprep.subr.mxu0 0.0
        %2817 = vmatpush2.msra.mxu0 0.0
        %2818 = vmatprep.subr.mxu0 0.0
        %2819 = vmatpush2.msra.mxu0 0.0
        %2820 = vmatprep.subr.mxu0 0.0
        %2821 = vmatpush2.msra.mxu0 0.0
        %2822 = vmatprep.subr.mxu0 0.0
        %2823 = vmatpush2.msra.mxu0 0.0
        %2824 = vmatprep.subr.mxu0 0.0
        %2825 = vmatpush2.msra.mxu0 0.0
        %2826 = vmatprep.subr.mxu0 0.0
        %2827 = vmatpush2.msra.mxu0 0.0
        %2828 = vmatprep.subr.mxu0 0.0
        %2829 = vmatpush2.msra.mxu0 0.0
        %2830 = vmatprep.mubr.f32.mxu0 0.0
        %2831 = vmatmul.mubr.f32.gmra.mxu0 %v1085
        %v2832 = vpop.f32.mrf.mxu0
        %v2833 = vadd.f32 0.0, %v2832
        %v2834 = vpop.f32.mrf.mxu0
        %2835 = vmatprep.mubr.f32.mxu0 0.0
        %2836 = vmatmul.mubr.f32.gmra.mxu0 %v1087
        %v2837 = vpop.f32.mrf.mxu0
        %v2838 = vadd.f32 0.0, %v2837
        %v2839 = vpop.f32.mrf.mxu0
        %2840 = vmatprep.mubr.f32.mxu0 0.0
        %2841 = vmatmul.mubr.f32.gmra.mxu0 %v1089
        %v2842 = vpop.f32.mrf.mxu0
        %v2843 = vadd.f32 0.0, %v2842
        %v2844 = vpop.f32.mrf.mxu0
        %2845 = vmatprep.mubr.f32.mxu0 0.0
        %2846 = vmatmul.mubr.f32.gmra.mxu0 %v1091
        %v2847 = vpop.f32.mrf.mxu0
        %v2848 = vadd.f32 0.0, %v2847
        %v2849 = vpop.f32.mrf.mxu0
        %2850 = vmatprep.mubr.f32.mxu0 0.0
        %2851 = vmatmul.mubr.f32.gmra.mxu0 %v1093
        %v2852 = vpop.f32.mrf.mxu0
        %v2853 = vadd.f32 0.0, %v2852
        %v2854 = vpop.f32.mrf.mxu0
        %2855 = vmatprep.mubr.f32.mxu0 0.0
        %2856 = vmatmul.mubr.f32.gmra.mxu0 %v1095
        %v2857 = vpop.f32.mrf.mxu0
        %v2858 = vadd.f32 0.0, %v2857
        %v2859 = vpop.f32.mrf.mxu0
        %2860 = vmatprep.mubr.f32.mxu0 0.0
        %2861 = vmatmul.mubr.f32.gmra.mxu0 %v1097
        %v2862 = vpop.f32.mrf.mxu0
        %v2863 = vadd.f32 0.0, %v2862
        %v2864 = vpop.f32.mrf.mxu0
        %2865 = vmatprep.mubr.f32.mxu0 0.0
        %2866 = vmatmul.mubr.f32.gmra.mxu0 %v1099
        %v2867 = vpop.f32.mrf.mxu0
        %v2868 = vadd.f32 0.0, %v2867
        %v2869 = vpop.f32.mrf.mxu0
        %2870 = vmatprep.mubr.f32.mxu0 0.0
        %2871 = vmatmul.mubr.f32.gmra.mxu0 %v1101
        %v2872 = vpop.f32.mrf.mxu0
        %v2873 = vadd.f32 0.0, %v2872
        %v2874 = vpop.f32.mrf.mxu0
        %2875 = vmatprep.mubr.f32.mxu0 0.0
        %2876 = vmatmul.mubr.f32.gmra.mxu0 %v1103
        %v2877 = vpop.f32.mrf.mxu0
        %v2878 = vadd.f32 0.0, %v2877
        %v2879 = vpop.f32.mrf.mxu0
        %2880 = vmatprep.mubr.f32.mxu0 0.0
        %2881 = vmatmul.mubr.f32.gmra.mxu0 %v1105
        %v2882 = vpop.f32.mrf.mxu0
        %v2883 = vadd.f32 0.0, %v2882
        %v2884 = vpop.f32.mrf.mxu0
        %2885 = vmatprep.mubr.f32.mxu0 0.0
        %2886 = vmatmul.mubr.f32.gmra.mxu0 %v1107
        %v2887 = vpop.f32.mrf.mxu0
        %v2888 = vadd.f32 0.0, %v2887
        %v2889 = vpop.f32.mrf.mxu0
        %2890 = vmatprep.mubr.f32.mxu0 0.0
        %2891 = vmatmul.mubr.f32.gmra.mxu0 %v1109
        %v2892 = vpop.f32.mrf.mxu0
        %v2893 = vadd.f32 0.0, %v2892
        %v2894 = vpop.f32.mrf.mxu0
        %2895 = vmatprep.mubr.f32.mxu0 0.0
        %2896 = vmatmul.mubr.f32.gmra.mxu0 %v1111
        %v2897 = vpop.f32.mrf.mxu0
        %v2898 = vadd.f32 0.0, %v2897
        %v2899 = vpop.f32.mrf.mxu0
        %2900 = vmatprep.mubr.f32.mxu0 0.0
        %2901 = vmatmul.mubr.f32.gmra.mxu0 %v1113
        %v2902 = vpop.f32.mrf.mxu0
        %v2903 = vadd.f32 0.0, %v2902
        %v2904 = vpop.f32.mrf.mxu0
        %2905 = vmatprep.mubr.f32.mxu0 0.0
        %2906 = vmatmul.mubr.f32.gmra.mxu0 %v1115
        %v2907 = vpop.f32.mrf.mxu0
        %v2908 = vadd.f32 0.0, %v2907
        %v2909 = vpop.f32.mrf.mxu0
        %2910 = vmatprep.mubr.f32.mxu0 0.0
        %2911 = vmatmul.mubr.f32.gmra.mxu0 %v1117
        %v2912 = vpop.f32.mrf.mxu0
        %v2913 = vadd.f32 0.0, %v2912
        %v2914 = vpop.f32.mrf.mxu0
        %2915 = vmatprep.mubr.f32.mxu0 0.0
        %2916 = vmatmul.mubr.f32.gmra.mxu0 %v1119
        %v2917 = vpop.f32.mrf.mxu0
        %v2918 = vadd.f32 0.0, %v2917
        %v2919 = vpop.f32.mrf.mxu0
        %2920 = vmatprep.mubr.f32.mxu0 0.0
        %2921 = vmatmul.mubr.f32.gmra.mxu0 %v1121
        %v2922 = vpop.f32.mrf.mxu0
        %v2923 = vadd.f32 0.0, %v2922
        %v2924 = vpop.f32.mrf.mxu0
        %2925 = vmatprep.mubr.f32.mxu0 0.0
        %2926 = vmatmul.mubr.f32.gmra.mxu0 %v1123
        %v2927 = vpop.f32.mrf.mxu0
        %v2928 = vadd.f32 0.0, %v2927
        %v2929 = vpop.f32.mrf.mxu0
        %2930 = vmatprep.mubr.f32.mxu0 0.0
        %2931 = vmatmul.mubr.f32.gmra.mxu0 %v1125
        %v2932 = vpop.f32.mrf.mxu0
        %v2933 = vadd.f32 0.0, %v2932
        %v2934 = vpop.f32.mrf.mxu0
        %2935 = vmatprep.mubr.f32.mxu0 0.0
        %2936 = vmatmul.mubr.f32.gmra.mxu0 %v1127
        %v2937 = vpop.f32.mrf.mxu0
        %v2938 = vadd.f32 0.0, %v2937
        %v2939 = vpop.f32.mrf.mxu0
        %2940 = vmatprep.mubr.f32.mxu0 0.0
        %2941 = vmatmul.mubr.f32.gmra.mxu0 %v1129
        %v2942 = vpop.f32.mrf.mxu0
        %v2943 = vadd.f32 0.0, %v2942
        %v2944 = vpop.f32.mrf.mxu0
        %2945 = vmatprep.mubr.f32.mxu0 0.0
        %2946 = vmatmul.mubr.f32.gmra.mxu0 %v1131
        %v2947 = vpop.f32.mrf.mxu0
        %v2948 = vadd.f32 0.0, %v2947
        %v2949 = vpop.f32.mrf.mxu0
        %2950 = vmatprep.mubr.f32.mxu0 0.0
        %2951 = vmatmul.mubr.f32.gmra.mxu0 %v1133
        %v2952 = vpop.f32.mrf.mxu0
        %v2953 = vadd.f32 0.0, %v2952
        %v2954 = vpop.f32.mrf.mxu0
        %2955 = vmatprep.mubr.f32.mxu0 0.0
        %2956 = vmatmul.mubr.f32.gmra.mxu0 %v1135
        %v2957 = vpop.f32.mrf.mxu0
        %v2958 = vadd.f32 0.0, %v2957
        %v2959 = vpop.f32.mrf.mxu0
        %2960 = vmatprep.mubr.f32.mxu0 0.0
        %2961 = vmatmul.mubr.f32.gmra.mxu0 %v1137
        %v2962 = vpop.f32.mrf.mxu0
        %v2963 = vadd.f32 0.0, %v2962
        %v2964 = vpop.f32.mrf.mxu0
        %2965 = vmatprep.mubr.f32.mxu0 0.0
        %2966 = vmatmul.mubr.f32.gmra.mxu0 %v1139
        %v2967 = vpop.f32.mrf.mxu0
        %v2968 = vadd.f32 0.0, %v2967
        %v2969 = vpop.f32.mrf.mxu0
        %2970 = vmatprep.mubr.f32.mxu0 0.0
        %2971 = vmatmul.mubr.f32.gmra.mxu0 %v1948
        %v2972 = vpop.f32.mrf.mxu0
        %v2973 = vadd.f32 0.0, %v2972
        %v2974 = vpop.f32.mrf.mxu0
        %2975 = vmatprep.mubr.f32.mxu0 0.0
        %2976 = vmatmul.mubr.f32.gmra.mxu0 %v1950
        %v2977 = vpop.f32.mrf.mxu0
        %v2978 = vadd.f32 0.0, %v2977
        %v2979 = vpop.f32.mrf.mxu0
        %2980 = vmatprep.mubr.f32.mxu0 0.0
        %2981 = vmatmul.mubr.f32.gmra.mxu0 %v2759
        %v2982 = vpop.f32.mrf.mxu0
        %v2983 = vadd.f32 0.0, %v2982
        %v2984 = vpop.f32.mrf.mxu0
        %2985 = vmatprep.mubr.f32.mxu0 0.0
        %2986 = vmatmul.mubr.f32.gmra.mxu0 %v2761
        %v2987 = vpop.f32.mrf.mxu0
        %v2988 = vadd.f32 0.0, %v2987
        %v2989 = vpop.f32.mrf.mxu0
        %2990 = vdwg.mxu0
        %v2991 = vadd.f32 %v2720, %v2833
        %v2992 = vadd.f32 %v2721, %v2838
        %v2993 = vadd.f32 %v2722, %v2843
        %v2994 = vadd.f32 %v2723, %v2848
        %v2995 = vadd.f32 %v2724, %v2853
        %v2996 = vadd.f32 %v2725, %v2858
        %v2997 = vadd.f32 %v2726, %v2863
        %v2998 = vadd.f32 %v2727, %v2868
        %v2999 = vadd.f32 %v2728, %v2873
        %v3000 = vadd.f32 %v2729, %v2878
        %v3001 = vadd.f32 %v2730, %v2883
        %v3002 = vadd.f32 %v2731, %v2888
        %v3003 = vadd.f32 %v2732, %v2893
        %v3004 = vadd.f32 %v2733, %v2898
        %v3005 = vadd.f32 %v2734, %v2903
        %v3006 = vadd.f32 %v2735, %v2908
        %v3007 = vadd.f32 %v2736, %v2913
        %v3008 = vadd.f32 %v2737, %v2918
        %v3009 = vadd.f32 %v2738, %v2923
        %v3010 = vadd.f32 %v2739, %v2928
        %v3011 = vadd.f32 %v2740, %v2933
        %v3012 = vadd.f32 %v2741, %v2938
        %v3013 = vadd.f32 %v2742, %v2943
        %v3014 = vadd.f32 %v2743, %v2948
        %v3015 = vadd.f32 %v2744, %v2953
        %v3016 = vadd.f32 %v2745, %v2958
        %v3017 = vadd.f32 %v2746, %v2963
        %v3018 = vadd.f32 %v2747, %v2968
        %v3019 = vadd.f32 %v2748, %v2973
        %v3020 = vadd.f32 %v2749, %v2978
        %v3021 = vadd.f32 %v2750, %v2983
        %v3022 = vadd.f32 %v2751, %v2988
        %v3023 = vld [vmem:[%s2] sm:$0x1]
        %v3025 = vlaneseq
        %v3026 = vshrl.u32 %v3025, 7
        %v3027 = vsub.s32 0, %v3026
        %v3028 = vrot.slane %v3023, %v3027
        %v3030 = vadd.f32 %v2991, %v3028
        %v3031 = vadd.f32 %v2992, %v3028
        %v3032 = vadd.f32 %v2993, %v3028
        %v3033 = vadd.f32 %v2994, %v3028
        %v3034 = vadd.f32 %v2995, %v3028
        %v3035 = vadd.f32 %v2996, %v3028
        %v3036 = vadd.f32 %v2997, %v3028
        %v3037 = vadd.f32 %v2998, %v3028
        %v3038 = vadd.f32 %v2999, %v3028
        %v3039 = vadd.f32 %v3000, %v3028
        %v3040 = vadd.f32 %v3001, %v3028
        %v3041 = vadd.f32 %v3002, %v3028
        %v3042 = vadd.f32 %v3003, %v3028
        %v3043 = vadd.f32 %v3004, %v3028
        %v3044 = vadd.f32 %v3005, %v3028
        %v3045 = vadd.f32 %v3006, %v3028
        %v3046 = vadd.f32 %v3007, %v3028
        %v3047 = vadd.f32 %v3008, %v3028
        %v3048 = vadd.f32 %v3009, %v3028
        %v3049 = vadd.f32 %v3010, %v3028
        %v3050 = vadd.f32 %v3011, %v3028
        %v3051 = vadd.f32 %v3012, %v3028
        %v3052 = vadd.f32 %v3013, %v3028
        %v3053 = vadd.f32 %v3014, %v3028
        %v3054 = vadd.f32 %v3015, %v3028
        %v3055 = vadd.f32 %v3016, %v3028
        %v3056 = vadd.f32 %v3017, %v3028
        %v3057 = vadd.f32 %v3018, %v3028
        %v3058 = vadd.f32 %v3019, %v3028
        %v3059 = vadd.f32 %v3020, %v3028
        %v3060 = vadd.f32 %v3021, %v3028
        %v3061 = vadd.f32 %v3022, %v3028
        %v3062 = vmax.f32 %v3030, 0.0
        %v3063 = vmax.f32 %v3031, 0.0
        %v3064 = vmax.f32 %v3032, 0.0
        %v3065 = vmax.f32 %v3033, 0.0
        %v3066 = vmax.f32 %v3034, 0.0
        %v3067 = vmax.f32 %v3035, 0.0
        %v3068 = vmax.f32 %v3036, 0.0
        %v3069 = vmax.f32 %v3037, 0.0
        %v3070 = vmax.f32 %v3038, 0.0
        %v3071 = vmax.f32 %v3039, 0.0
        %v3072 = vmax.f32 %v3040, 0.0
        %v3073 = vmax.f32 %v3041, 0.0
        %v3074 = vmax.f32 %v3042, 0.0
        %v3075 = vmax.f32 %v3043, 0.0
        %v3076 = vmax.f32 %v3044, 0.0
        %v3077 = vmax.f32 %v3045, 0.0
        %v3078 = vmax.f32 %v3046, 0.0
        %v3079 = vmax.f32 %v3047, 0.0
        %v3080 = vmax.f32 %v3048, 0.0
        %v3081 = vmax.f32 %v3049, 0.0
        %v3082 = vmax.f32 %v3050, 0.0
        %v3083 = vmax.f32 %v3051, 0.0
        %v3084 = vmax.f32 %v3052, 0.0
        %v3085 = vmax.f32 %v3053, 0.0
        %v3086 = vmax.f32 %v3054, 0.0
        %v3087 = vmax.f32 %v3055, 0.0
        %v3088 = vmax.f32 %v3056, 0.0
        %v3089 = vmax.f32 %v3057, 0.0
        %v3090 = vmax.f32 %v3058, 0.0
        %v3091 = vmax.f32 %v3059, 0.0
        %v3092 = vmax.f32 %v3060, 0.0
        %v3093 = vmax.f32 %v3061, 0.0
        %vm3094 = vcmask 64512
        %v3095 = vsel %vm3094, %v3062, 0.0
        %v3096 = vsel %vm3094, %v3063, 0.0
        %v3097 = vadd.f32 %v3095, %v3096
        %v3098 = vsel %vm3094, %v3064, 0.0
        %v3099 = vadd.f32 %v3097, %v3098
        %v3100 = vsel %vm3094, %v3065, 0.0
        %v3101 = vadd.f32 %v3099, %v3100
        %v3102 = vsel %vm3094, %v3066, 0.0
        %v3103 = vadd.f32 %v3101, %v3102
        %v3104 = vsel %vm3094, %v3067, 0.0
        %v3105 = vadd.f32 %v3103, %v3104
        %v3106 = vsel %vm3094, %v3068, 0.0
        %v3107 = vadd.f32 %v3105, %v3106
        %v3108 = vsel %vm3094, %v3069, 0.0
        %v3109 = vadd.f32 %v3107, %v3108
        %v3110 = vsel %vm3094, %v3070, 0.0
        %v3111 = vadd.f32 %v3109, %v3110
        %v3112 = vsel %vm3094, %v3071, 0.0
        %v3113 = vadd.f32 %v3111, %v3112
        %v3114 = vsel %vm3094, %v3072, 0.0
        %v3115 = vadd.f32 %v3113, %v3114
        %v3116 = vsel %vm3094, %v3073, 0.0
        %v3117 = vadd.f32 %v3115, %v3116
        %v3118 = vsel %vm3094, %v3074, 0.0
        %v3119 = vadd.f32 %v3117, %v3118
        %v3120 = vsel %vm3094, %v3075, 0.0
        %v3121 = vadd.f32 %v3119, %v3120
        %v3122 = vsel %vm3094, %v3076, 0.0
        %v3123 = vadd.f32 %v3121, %v3122
        %v3124 = vsel %vm3094, %v3077, 0.0
        %v3125 = vadd.f32 %v3123, %v3124
        %v3126 = vsel %vm3094, %v3078, 0.0
        %v3127 = vadd.f32 %v3125, %v3126
        %v3128 = vsel %vm3094, %v3079, 0.0
        %v3129 = vadd.f32 %v3127, %v3128
        %v3130 = vsel %vm3094, %v3080, 0.0
        %v3131 = vadd.f32 %v3129, %v3130
        %v3132 = vsel %vm3094, %v3081, 0.0
        %v3133 = vadd.f32 %v3131, %v3132
        %v3134 = vsel %vm3094, %v3082, 0.0
        %v3135 = vadd.f32 %v3133, %v3134
        %v3136 = vsel %vm3094, %v3083, 0.0
        %v3137 = vadd.f32 %v3135, %v3136
        %v3138 = vsel %vm3094, %v3084, 0.0
        %v3139 = vadd.f32 %v3137, %v3138
        %v3140 = vsel %vm3094, %v3085, 0.0
        %v3141 = vadd.f32 %v3139, %v3140
        %v3142 = vsel %vm3094, %v3086, 0.0
        %v3143 = vadd.f32 %v3141, %v3142
        %v3144 = vsel %vm3094, %v3087, 0.0
        %v3145 = vadd.f32 %v3143, %v3144
        %v3146 = vsel %vm3094, %v3088, 0.0
        %v3147 = vadd.f32 %v3145, %v3146
        %v3148 = vsel %vm3094, %v3089, 0.0
        %v3149 = vadd.f32 %v3147, %v3148
        %v3150 = vsel %vm3094, %v3090, 0.0
        %v3151 = vadd.f32 %v3149, %v3150
        %v3152 = vsel %vm3094, %v3091, 0.0
        %v3153 = vadd.f32 %v3151, %v3152
        %v3154 = vsel %vm3094, %v3092, 0.0
        %v3155 = vadd.f32 %v3153, %v3154
        %v3156 = vsel %vm3094, %v3093, 0.0
        %v3157 = vadd.f32 %v3155, %v3156
        %v3158 = vrot.slane %v3157, 4
        %v3159 = vadd.f32 %v3157, %v3158
        %v3160 = vrot.slane %v3159, 2
        %v3161 = vadd.f32 %v3159, %v3160
        %v3162 = vrot.slane %v3161, 1
        %v3163 = vadd.f32 %v3161, %v3162
        %v3164 = vmul.f32 %v3163, 0.00390625
        %v3165 = vld [vmem:[%s3] sm:$0xff]
        %v3166 = vld [vmem:[%s4] sm:$0x1]
        %v3168 = vsel %vm3094, %v3164, 0
        %3170 = vmatprep.subr.mxu0 0.0
        %3171 = vmatpush1.msra.mxu0 0.0
        %3172 = vmatprep.subr.mxu0 0.0
        %3173 = vmatpush1.msra.mxu0 0.0
        %3174 = vmatprep.subr.mxu0 0.0
        %3175 = vmatpush1.msra.mxu0 0.0
        %3176 = vmatprep.subr.mxu0 0.0
        %3177 = vmatpush1.msra.mxu0 0.0
        %3178 = vmatprep.subr.mxu0 0.0
        %3179 = vmatpush1.msra.mxu0 0.0
        %3180 = vmatprep.subr.mxu0 0.0
        %3181 = vmatpush1.msra.mxu0 0.0
        %3182 = vmatprep.subr.mxu0 0.0
        %3183 = vmatpush1.msra.mxu0 0.0
        %3184 = vmatprep.subr.mxu0 0.0
        %3185 = vmatpush1.msra.mxu0 0.0
        %3186 = vmatprep.subr.mxu0 0.0
        %3187 = vmatpush1.msra.mxu0 0.0
        %3188 = vmatprep.subr.mxu0 0.0
        %3189 = vmatpush1.msra.mxu0 0.0
        %3190 = vmatprep.subr.mxu0 0.0
        %3191 = vmatpush1.msra.mxu0 0.0
        %3192 = vmatprep.subr.mxu0 0.0
        %3193 = vmatpush1.msra.mxu0 0.0
        %3194 = vmatprep.subr.mxu0 0.0
        %3195 = vmatpush1.msra.mxu0 0.0
        %3196 = vmatprep.subr.mxu0 0.0
        %3197 = vmatpush1.msra.mxu0 0.0
        %3198 = vmatprep.subr.mxu0 0.0
        %3199 = vmatpush1.msra.mxu0 0.0
        %3200 = vmatprep.subr.mxu0 0.0
        %3201 = vmatpush1.msra.mxu0 %v3165
        %3202 = vmatprep.subr.mxu0 0.0
        %3203 = vmatpush2.msra.mxu0 0.0
        %3204 = vmatprep.subr.mxu0 0.0
        %3205 = vmatpush2.msra.mxu0 0.0
        %3206 = vmatprep.subr.mxu0 0.0
        %3207 = vmatpush2.msra.mxu0 0.0
        %3208 = vmatprep.subr.mxu0 0.0
        %3209 = vmatpush2.msra.mxu0 0.0
        %3210 = vmatprep.subr.mxu0 0.0
        %3211 = vmatpush2.msra.mxu0 0.0
        %3212 = vmatprep.subr.mxu0 0.0
        %3213 = vmatpush2.msra.mxu0 0.0
        %3214 = vmatprep.subr.mxu0 0.0
        %3215 = vmatpush2.msra.mxu0 0.0
        %3216 = vmatprep.subr.mxu0 0.0
        %3217 = vmatpush2.msra.mxu0 0.0
        %3218 = vmatprep.subr.mxu0 0.0
        %3219 = vmatpush2.msra.mxu0 0.0
        %3220 = vmatprep.subr.mxu0 0.0
        %3221 = vmatpush2.msra.mxu0 0.0
        %3222 = vmatprep.subr.mxu0 0.0
        %3223 = vmatpush2.msra.mxu0 0.0
        %3224 = vmatprep.subr.mxu0 0.0
        %3225 = vmatpush2.msra.mxu0 0.0
        %3226 = vmatprep.subr.mxu0 0.0
        %3227 = vmatpush2.msra.mxu0 0.0
        %3228 = vmatprep.subr.mxu0 0.0
        %3229 = vmatpush2.msra.mxu0 0.0
        %3230 = vmatprep.subr.mxu0 0.0
        %3231 = vmatpush2.msra.mxu0 0.0
        %3232 = vmatprep.subr.mxu0 0.0
        %3233 = vmatpush2.msra.mxu0 0.0
        %3234 = vmatprep.mubr.f32.mxu0 0.0
        %3235 = vmatmul.mubr.f32.gmra.mxu0 %v3168
        %v3236 = vpop.f32.mrf.mxu0
        %v3237 = vadd.f32 %v3166, %v3236
        %v3238 = vpop.f32.mrf.mxu0
        %3239 = vdwg.mxu0
        %3240 = vst [vmem:[%s216] sm:$0x1] %v3237
        %s3241 = sand.u32 %s137, 1
        %s3242 = scalar_lea.sflag [#allocation3], %s3241
        %s3243 = sand.u32 %s137, 1
        %s3244 = scalar_lea.vmem [#allocation2], %s3243
        // Predicated region
        $region41: #{tpu_custom_call.1} parent=39 // pred_check
          %p3245 = pneg %p147
        $region42: #{tpu_custom_call.1} parent=39 // pred_check_branch
          %3247 = sbr.rel (%p3245) target = $region44
        $region43: #{tpu_custom_call.1} parent=39 // pred_region
          %s3249 = ssub.s32 16, 16
          %3250 = vsyncadd %s3242, %s3249
          %s3251 = smul.addr %s19, 16
          %s3252 = scalar_lea.hbm %s5, %s3251
          %s3254 = sshll.u32 %s3244, 4
          %s3255 = int_to_ptr.vmem [resolvable:$true] %s3254
          %3257 = dma.vmem_to_hbm [thread:$0]  %s3255, 16, %s3252, %s3242
        $region44: #{tpu_custom_call.1} parent=39 // pred_fallthru
          _
      $region40: #{tpu_custom_call.1} parent=5 // pred_fallthru
        _
      %p3258 = scmp.le.s32.totalorder 2, %s14
      // Predicated region
      $region45: #{tpu_custom_call.1} parent=5 // pred_check
        %p3259 = pneg %p3258
      $region46: #{tpu_custom_call.1} parent=5 // pred_check_branch
        %3261 = sbr.rel (%p3259) target = $region48
      $region47: #{tpu_custom_call.1} parent=5 // pred_region
        %s3262 = ssub.s32 %s14, 2
        // Predicated region
        $region49: #{tpu_custom_call.1} parent=47 // pred_check
          %p3263 = pneg %p153
        $region50: #{tpu_custom_call.1} parent=47 // pred_check_branch
          %3265 = sbr.rel (%p3263) target = $region52
        $region51: #{tpu_custom_call.1} parent=47 // pred_region
          %s3266 = sand.u32 %s138, 1
          %s3267 = scalar_lea.sflag [#allocation3], %s3266
          %s3268 = sand.u32 %s138, 1
          %s3269 = scalar_lea.vmem [#allocation2], %s3268
          %3270 = dma.done %s3267, 16
        $region52: #{tpu_custom_call.1} parent=47 // pred_fallthru
          _
      $region48: #{tpu_custom_call.1} parent=5 // pred_fallthru
        _
    $region6: #{tpu_custom_call.1} parent=1 // loop_footer
      %s18 = sadd.s32 1, %s14
    $region7: #{tpu_custom_call.1} parent=1 // loop_footer_branch
      %13 = sbr.rel target = $region3
    $region8: #{tpu_custom_call.1} parent=1 // loop_exit
      _
    %3271 = vsyncpa [#allocation3], 1
    %s3272 = scalar_lea.sflag [#allocation3], 1
    %3273 = vsyncpa %s3272, 1

</llo_original>
